<compile_context>
chip_gen: v5e
topology: v5e:2x2
jax: 0.10.0
libtpu: 0.0.40
codegen_flags: <defaults>
</compile_context>

<pallas_src>
import jax
import jax.numpy as jnp
from jax import lax
from jax.experimental import pallas as pl
from jax.experimental.pallas import tpu as pltpu


def upconv_fused_kernel(xs_ref, xc_ref, w1_ref, b1_ref, w2t_ref, b2_ref, o_ref,
                        xpad_ref, mid_ref):
    """One batch item:
       xs_ref : (1, H2, W2, C_up)   pixel-shuffled input, NHWC
       xc_ref : (1, H2, W2, C_skip) skip connection, NHWC
       w1_ref : (9*Cin, Cout)   im2col conv1 weights, BN scale folded in
       b1_ref : (1, Cout)       folded conv1 bias
       w2t_ref: (Cout, 9*Cout)  im2col conv2 weights (transposed), BN scale folded in
       b2_ref : (Cout, 1)       folded conv2 bias
       o_ref  : (1, Cout, H2*W2) lane-dense NCHW-order output slab
       xpad_ref/mid_ref: VMEM zero-halo scratch (H2+2, W2+2, C)."""
    H2, W2 = xs_ref.shape[1], xs_ref.shape[2]
    Cout = w1_ref.shape[1]
    HW = H2 * W2

    # ---- padded + channel-concatenated input, built in VMEM --------------------
    xpad_ref[...] = jnp.zeros_like(xpad_ref)
    mid_ref[...] = jnp.zeros_like(mid_ref)
    xpad_ref[1:1 + H2, 1:1 + W2, :] = jnp.concatenate(
        [xs_ref[0], xc_ref[0]], axis=-1)

    def im2col(padded):
        # (H2+2, W2+2, C) -> (H2*W2, 9*C); tap order dy*3+dx matches weight layout.
        cols = [padded[dy:dy + H2, dx:dx + W2, :]
                for dy in range(3) for dx in range(3)]
        return jnp.concatenate(cols, axis=-1).reshape(HW, -1)

    # ---- conv1 (+ folded BN) + ReLU --------------------------------------------
    p1 = im2col(xpad_ref[...])                                    # (HW, 9*Cin)
    y1 = jnp.dot(p1, w1_ref[...], preferred_element_type=jnp.float32)
    y1 = jnp.maximum(y1 + b1_ref[...], 0.0)                       # (HW, Cout)
    mid_ref[1:1 + H2, 1:1 + W2, :] = y1.reshape(H2, W2, Cout)

    # ---- conv2 (+ folded BN) + ReLU, produced lane-dense as (Cout, HW) ----------
    p2 = im2col(mid_ref[...])                                     # (HW, 9*Cout)
    y2 = lax.dot_general(w2t_ref[...], p2,
                         dimension_numbers=(((1,), (1,)), ((), ())),
                         preferred_element_type=jnp.float32)      # (Cout, HW)
    y2 = jnp.maximum(y2 + b2_ref[...], 0.0)
    o_ref[0] = y2


def upconv_pxshuffle(x, x_cat, params):
    """x: (N, 4*C_up, H, W) NCHW; x_cat: (N, C_skip, 2H, 2W) NCHW
       -> (N, Cout, 2H, 2W) NCHW (eval-mode BatchNorm)."""
    N, C4, H, W = x.shape
    C_up = C4 // 4
    _, C_skip, H2, W2 = x_cat.shape
    assert (H2, W2) == (2 * H, 2 * W)
    Cin = C_up + C_skip

    w1, b1, w2t, b2 = params
    Cout = w1.shape[1]

    # PixelShuffle(2) + NCHW->NHWC fused into a single transpose (tiny tensor).
    xs_nhwc = (x.reshape(N, C_up, 2, 2, H, W)
                .transpose(0, 4, 2, 5, 3, 1)
                .reshape(N, H2, W2, C_up))
    xc_nhwc = x_cat.transpose(0, 2, 3, 1)

    Hp, Wp = H2 + 2, W2 + 2
    out = pl.pallas_call(
        upconv_fused_kernel,
        out_shape=jax.ShapeDtypeStruct((N, Cout, H2 * W2), jnp.float32),
        grid_spec=pltpu.PrefetchScalarGridSpec(
            num_scalar_prefetch=0,
            grid=(N,),
            in_specs=[
                pl.BlockSpec((1, H2, W2, C_up), lambda n: (n, 0, 0, 0)),
                pl.BlockSpec((1, H2, W2, C_skip), lambda n: (n, 0, 0, 0)),
                pl.BlockSpec((9 * Cin, Cout), lambda n: (0, 0)),
                pl.BlockSpec((1, Cout), lambda n: (0, 0)),
                pl.BlockSpec((Cout, 9 * Cout), lambda n: (0, 0)),
                pl.BlockSpec((Cout, 1), lambda n: (0, 0)),
            ],
            out_specs=pl.BlockSpec((1, Cout, H2 * W2), lambda n: (n, 0, 0)),
            scratch_shapes=[
                pltpu.VMEM((Hp, Wp, Cin), jnp.float32),    # padded concat input
                pltpu.VMEM((Hp, Wp, Cout), jnp.float32),   # padded conv1 output
            ],
        ),
        compiler_params=pltpu.CompilerParams(
            dimension_semantics=("parallel",)),
    )(xs_nhwc, xc_nhwc, w1, b1, w2t, b2)

    # (N, Cout, H2*W2) is already NCHW element order -> free metadata reshape.
    return out.reshape(N, Cout, H2, W2)


def make_params(key, c_in1, c_out, eps=1e-5):
    """Deterministic Conv3x3+BN params for both blocks, pre-folded for the kernel.
       Returns (kernel_params, raw_params)."""
    def one(k, cin, cout):
        ks = jax.random.split(k, 6)
        w = 0.1 * jax.random.normal(ks[0], (cout, cin, 3, 3), jnp.float32)  # OIHW
        b = 0.1 * jax.random.normal(ks[1], (cout,), jnp.float32)
        gamma = 1.0 + 0.1 * jax.random.normal(ks[2], (cout,), jnp.float32)
        beta = 0.1 * jax.random.normal(ks[3], (cout,), jnp.float32)
        mean = 0.1 * jax.random.normal(ks[4], (cout,), jnp.float32)
        var = jnp.abs(1.0 + 0.1 * jax.random.normal(ks[5], (cout,), jnp.float32))
        return w, b, gamma, beta, mean, var

    k1, k2 = jax.random.split(key)
    raw1 = one(k1, c_in1, c_out)
    raw2 = one(k2, c_out, c_out)

    def fold(w, b, gamma, beta, mean, var):
        scale = gamma / jnp.sqrt(var + eps)                         # (Cout,)
        # OIHW -> (kh, kw, Cin, Cout) -> (9*Cin, Cout); BN scale folded into weights.
        w_col = jnp.transpose(w, (2, 3, 1, 0)).reshape(-1, w.shape[0]) * scale[None, :]
        bias = (b - mean) * scale + beta
        return w_col, bias

    w1, bias1 = fold(*raw1)
    w2, bias2 = fold(*raw2)
    kernel_params = (w1, bias1.reshape(1, -1), w2.T, bias2.reshape(-1, 1))
    return kernel_params, {"conv1": raw1, "conv2": raw2}


def reference_forward(x, x_cat, raw, eps=1e-5):
    """Pure-JAX reference matching the PyTorch module (eval-mode BN)."""
    def pixel_shuffle_nchw(t, r=2):
        N, C4, H, W = t.shape
        C = C4 // (r * r)
        t = t.reshape(N, C, r, r, H, W).transpose(0, 1, 4, 2, 5, 3)
        return t.reshape(N, C, H * r, W * r)

    def conv_bn_relu(t, w, b, gamma, beta, mean, var):
        y = lax.conv_general_dilated(
            t, w, window_strides=(1, 1), padding=((1, 1), (1, 1)),
            dimension_numbers=("NCHW", "OIHW", "NCHW"),
            precision=lax.Precision.HIGHEST)
        y = y + b[None, :, None, None]
        y = (y - mean[None, :, None, None]) * (
            gamma[None, :, None, None] / jnp.sqrt(var[None, :, None, None] + eps)
        ) + beta[None, :, None, None]
        return jnp.maximum(y, 0.0)

    t = jnp.concatenate([pixel_shuffle_nchw(x), x_cat], axis=1)
    t = conv_bn_relu(t, *raw["conv1"])
    t = conv_bn_relu(t, *raw["conv2"])
    return t


if __name__ == "__main__":
    key = jax.random.PRNGKey(0)
    k_x, k_cat, k_p = jax.random.split(key, 3)

    # UpConvPxShuffle(in_channels=4, out_channels=8, in_channels_up=4):
    #   x has 16 channels before PixelShuffle(2) (-> 4 after); skip has 4 channels.
    N, C_low, H, W = 2, 16, 8, 8
    C_skip, C_out = 4, 8
    C_in1 = C_low // 4 + C_skip          # = 8 conv1 input channels

    x = jax.random.normal(k_x, (N, C_low, H, W), jnp.float32)
    x_cat = jax.random.normal(k_cat, (N, C_skip, 2 * H, 2 * W), jnp.float32)

    params, raw = make_params(k_p, C_in1, C_out)

    out = upconv_pxshuffle(x, x_cat, params)
    jax.block_until_ready(out)
    assert out.shape == (N, C_out, 2 * H, 2 * W), out.shape
    assert out.dtype == jnp.float32

    ref = reference_forward(x, x_cat, raw)
    err = float(jnp.max(jnp.abs(out - ref)))
    assert err < 5e-2, f"max |err| = {err}"

    print("KERNEL_OK")
</pallas_src>

<mosaic_0001>
module attributes {stable_mosaic.version = 11 : i64} {
  func.func @upconv_fused_kernel(%arg0: i32, %arg1: memref<1x16x16x4xf32, #tpu.memory_space<vmem>>, %arg2: memref<1x16x16x4xf32, #tpu.memory_space<vmem>>, %arg3: memref<72x8xf32, #tpu.memory_space<vmem>>, %arg4: memref<1x8xf32, #tpu.memory_space<vmem>>, %arg5: memref<8x72xf32, #tpu.memory_space<vmem>>, %arg6: memref<8x1xf32, #tpu.memory_space<vmem>>, %arg7: memref<1x8x256xf32, #tpu.memory_space<vmem>>, %arg8: memref<18x18x8xf32, #tpu.memory_space<vmem>>, %arg9: memref<18x18x8xf32, #tpu.memory_space<vmem>>) attributes {dimension_semantics = [#tpu.dimension_semantics<parallel>], iteration_bounds = array<i64: 2>, scalar_prefetch = 0 : i64, scratch_operands = 2 : i64, tpu.core_type = #tpu.core_type<tc>, window_params = [{transform_indices = @transform_0, window_bounds = array<i64: 1, 16, 16, 4>}, {transform_indices = @transform_1, window_bounds = array<i64: 1, 16, 16, 4>}, {pipeline_mode = #tpu.pipeline_mode<synchronous>, transform_indices = @transform_2, window_bounds = array<i64: 72, 8>}, {pipeline_mode = #tpu.pipeline_mode<synchronous>, transform_indices = @transform_3, window_bounds = array<i64: 1, 8>}, {pipeline_mode = #tpu.pipeline_mode<synchronous>, transform_indices = @transform_4, window_bounds = array<i64: 8, 72>}, {pipeline_mode = #tpu.pipeline_mode<synchronous>, transform_indices = @transform_5, window_bounds = array<i64: 8, 1>}, {transform_indices = @transform_6, window_bounds = array<i64: 1, 8, 256>}]} {
    %cst = arith.constant 0.000000e+00 : f32
    %0 = vector.broadcast %cst : f32 to vector<18x18x8xf32>
    %c0 = arith.constant 0 : index
    %c0_0 = arith.constant 0 : index
    %c0_1 = arith.constant 0 : index
    %1 = vector.load %arg8[%c0, %c0_0, %c0_1] : memref<18x18x8xf32, #tpu.memory_space<vmem>>, vector<18x18x8xf32>
    tpu.vector_store %arg8[%c0, %c0_0, %c0_1], %0 {strides = array<i32>} : memref<18x18x8xf32, #tpu.memory_space<vmem>>, vector<18x18x8xf32>,
    %cst_2 = arith.constant 0.000000e+00 : f32
    %2 = vector.broadcast %cst_2 : f32 to vector<18x18x8xf32>
    %c0_3 = arith.constant 0 : index
    %c0_4 = arith.constant 0 : index
    %c0_5 = arith.constant 0 : index
    %3 = vector.load %arg9[%c0_3, %c0_4, %c0_5] : memref<18x18x8xf32, #tpu.memory_space<vmem>>, vector<18x18x8xf32>
    tpu.vector_store %arg9[%c0_3, %c0_4, %c0_5], %2 {strides = array<i32>} : memref<18x18x8xf32, #tpu.memory_space<vmem>>, vector<18x18x8xf32>,
    %c0_6 = arith.constant 0 : index
    %c0_7 = arith.constant 0 : index
    %c0_8 = arith.constant 0 : index
    %c0_9 = arith.constant 0 : index
    %4 = vector.load %arg1[%c0_6, %c0_7, %c0_8, %c0_9] : memref<1x16x16x4xf32, #tpu.memory_space<vmem>>, vector<1x16x16x4xf32>
    %5 = vector.shape_cast %4 : vector<1x16x16x4xf32> to vector<16x16x4xf32>
    %c0_10 = arith.constant 0 : index
    %c0_11 = arith.constant 0 : index
    %c0_12 = arith.constant 0 : index
    %c0_13 = arith.constant 0 : index
    %6 = vector.load %arg2[%c0_10, %c0_11, %c0_12, %c0_13] : memref<1x16x16x4xf32, #tpu.memory_space<vmem>>, vector<1x16x16x4xf32>
    %7 = vector.shape_cast %6 : vector<1x16x16x4xf32> to vector<16x16x4xf32>
    %8 = tpu.concatenate %5, %7 in 2 : vector<16x16x4xf32>, vector<16x16x4xf32> -> vector<16x16x8xf32>
    %c1 = arith.constant 1 : index
    %c1_14 = arith.constant 1 : index
    %c0_15 = arith.constant 0 : index
    %9 = vector.load %arg8[%c1, %c1_14, %c0_15] : memref<18x18x8xf32, #tpu.memory_space<vmem>>, vector<16x16x8xf32>
    tpu.vector_store %arg8[%c1, %c1_14, %c0_15], %8 {strides = array<i32>} : memref<18x18x8xf32, #tpu.memory_space<vmem>>, vector<16x16x8xf32>,
    %c0_16 = arith.constant 0 : index
    %c0_17 = arith.constant 0 : index
    %c0_18 = arith.constant 0 : index
    %10 = vector.load %arg8[%c0_16, %c0_17, %c0_18] : memref<18x18x8xf32, #tpu.memory_space<vmem>>, vector<18x18x8xf32>
    %11 = vector.extract_strided_slice %10 {offsets = [0, 0, 0], sizes = [16, 16, 8], strides = [1, 1, 1]} : vector<18x18x8xf32> to vector<16x16x8xf32>
    %12 = vector.extract_strided_slice %10 {offsets = [0, 1, 0], sizes = [16, 16, 8], strides = [1, 1, 1]} : vector<18x18x8xf32> to vector<16x16x8xf32>
    %13 = vector.extract_strided_slice %10 {offsets = [0, 2, 0], sizes = [16, 16, 8], strides = [1, 1, 1]} : vector<18x18x8xf32> to vector<16x16x8xf32>
    %14 = vector.extract_strided_slice %10 {offsets = [1, 0, 0], sizes = [16, 16, 8], strides = [1, 1, 1]} : vector<18x18x8xf32> to vector<16x16x8xf32>
    %15 = vector.extract_strided_slice %10 {offsets = [1, 1, 0], sizes = [16, 16, 8], strides = [1, 1, 1]} : vector<18x18x8xf32> to vector<16x16x8xf32>
    %16 = vector.extract_strided_slice %10 {offsets = [1, 2, 0], sizes = [16, 16, 8], strides = [1, 1, 1]} : vector<18x18x8xf32> to vector<16x16x8xf32>
    %17 = vector.extract_strided_slice %10 {offsets = [2, 0, 0], sizes = [16, 16, 8], strides = [1, 1, 1]} : vector<18x18x8xf32> to vector<16x16x8xf32>
    %18 = vector.extract_strided_slice %10 {offsets = [2, 1, 0], sizes = [16, 16, 8], strides = [1, 1, 1]} : vector<18x18x8xf32> to vector<16x16x8xf32>
    %19 = vector.extract_strided_slice %10 {offsets = [2, 2, 0], sizes = [16, 16, 8], strides = [1, 1, 1]} : vector<18x18x8xf32> to vector<16x16x8xf32>
    %20 = tpu.concatenate %11, %12, %13, %14, %15, %16, %17, %18, %19 in 2 : vector<16x16x8xf32>, vector<16x16x8xf32>, vector<16x16x8xf32>, vector<16x16x8xf32>, vector<16x16x8xf32>, vector<16x16x8xf32>, vector<16x16x8xf32>, vector<16x16x8xf32>, vector<16x16x8xf32> -> vector<16x16x72xf32>
    %21 = vector.shape_cast %20 : vector<16x16x72xf32> to vector<256x72xf32>
    %c0_19 = arith.constant 0 : index
    %c0_20 = arith.constant 0 : index
    %22 = vector.load %arg3[%c0_19, %c0_20] : memref<72x8xf32, #tpu.memory_space<vmem>>, vector<72x8xf32>
    %cst_21 = arith.constant dense<0.000000e+00> : vector<256x8xf32>
    %23 = tpu.matmul %21, %22, %cst_21 {dimension_numbers = #tpu.dot_dimension_numbers<[1], [0], [0], [1], [0, 0, 1, 1], [], []>} : vector<256x72xf32>, vector<72x8xf32>, vector<256x8xf32> -> vector<256x8xf32>
    %c0_22 = arith.constant 0 : index
    %c0_23 = arith.constant 0 : index
    %24 = vector.load %arg4[%c0_22, %c0_23] : memref<1x8xf32, #tpu.memory_space<vmem>>, vector<1x8xf32>
    %25 = vector.broadcast %24 : vector<1x8xf32> to vector<256x8xf32>
    %26 = arith.addf %23, %25 : vector<256x8xf32>
    %cst_24 = arith.constant 0.000000e+00 : f32
    %27 = vector.broadcast %cst_24 : f32 to vector<256x8xf32>
    %28 = arith.maximumf %26, %27 : vector<256x8xf32>
    %29 = vector.shape_cast %28 : vector<256x8xf32> to vector<16x16x8xf32>
    %c1_25 = arith.constant 1 : index
    %c1_26 = arith.constant 1 : index
    %c0_27 = arith.constant 0 : index
    %30 = vector.load %arg9[%c1_25, %c1_26, %c0_27] : memref<18x18x8xf32, #tpu.memory_space<vmem>>, vector<16x16x8xf32>
    tpu.vector_store %arg9[%c1_25, %c1_26, %c0_27], %29 {strides = array<i32>} : memref<18x18x8xf32, #tpu.memory_space<vmem>>, vector<16x16x8xf32>,
    %c0_28 = arith.constant 0 : index
    %c0_29 = arith.constant 0 : index
    %c0_30 = arith.constant 0 : index
    %31 = vector.load %arg9[%c0_28, %c0_29, %c0_30] : memref<18x18x8xf32, #tpu.memory_space<vmem>>, vector<18x18x8xf32>
    %32 = vector.extract_strided_slice %31 {offsets = [0, 0, 0], sizes = [16, 16, 8], strides = [1, 1, 1]} : vector<18x18x8xf32> to vector<16x16x8xf32>
    %33 = vector.extract_strided_slice %31 {offsets = [0, 1, 0], sizes = [16, 16, 8], strides = [1, 1, 1]} : vector<18x18x8xf32> to vector<16x16x8xf32>
    %34 = vector.extract_strided_slice %31 {offsets = [0, 2, 0], sizes = [16, 16, 8], strides = [1, 1, 1]} : vector<18x18x8xf32> to vector<16x16x8xf32>
    %35 = vector.extract_strided_slice %31 {offsets = [1, 0, 0], sizes = [16, 16, 8], strides = [1, 1, 1]} : vector<18x18x8xf32> to vector<16x16x8xf32>
    %36 = vector.extract_strided_slice %31 {offsets = [1, 1, 0], sizes = [16, 16, 8], strides = [1, 1, 1]} : vector<18x18x8xf32> to vector<16x16x8xf32>
    %37 = vector.extract_strided_slice %31 {offsets = [1, 2, 0], sizes = [16, 16, 8], strides = [1, 1, 1]} : vector<18x18x8xf32> to vector<16x16x8xf32>
    %38 = vector.extract_strided_slice %31 {offsets = [2, 0, 0], sizes = [16, 16, 8], strides = [1, 1, 1]} : vector<18x18x8xf32> to vector<16x16x8xf32>
    %39 = vector.extract_strided_slice %31 {offsets = [2, 1, 0], sizes = [16, 16, 8], strides = [1, 1, 1]} : vector<18x18x8xf32> to vector<16x16x8xf32>
    %40 = vector.extract_strided_slice %31 {offsets = [2, 2, 0], sizes = [16, 16, 8], strides = [1, 1, 1]} : vector<18x18x8xf32> to vector<16x16x8xf32>
    %41 = tpu.concatenate %32, %33, %34, %35, %36, %37, %38, %39, %40 in 2 : vector<16x16x8xf32>, vector<16x16x8xf32>, vector<16x16x8xf32>, vector<16x16x8xf32>, vector<16x16x8xf32>, vector<16x16x8xf32>, vector<16x16x8xf32>, vector<16x16x8xf32>, vector<16x16x8xf32> -> vector<16x16x72xf32>
    %42 = vector.shape_cast %41 : vector<16x16x72xf32> to vector<256x72xf32>
    %c0_31 = arith.constant 0 : index
    %c0_32 = arith.constant 0 : index
    %43 = vector.load %arg5[%c0_31, %c0_32] : memref<8x72xf32, #tpu.memory_space<vmem>>, vector<8x72xf32>
    %cst_33 = arith.constant dense<0.000000e+00> : vector<8x256xf32>
    %44 = tpu.matmul %43, %42, %cst_33 {dimension_numbers = #tpu.dot_dimension_numbers<[1], [1], [0], [0], [0, 0, 1, 0], [], []>} : vector<8x72xf32>, vector<256x72xf32>, vector<8x256xf32> -> vector<8x256xf32>
    %c0_34 = arith.constant 0 : index
    %c0_35 = arith.constant 0 : index
    %45 = vector.load %arg6[%c0_34, %c0_35] : memref<8x1xf32, #tpu.memory_space<vmem>>, vector<8x1xf32>
    %46 = vector.broadcast %45 : vector<8x1xf32> to vector<8x256xf32>
    %47 = arith.addf %44, %46 : vector<8x256xf32>
    %cst_36 = arith.constant 0.000000e+00 : f32
    %48 = vector.broadcast %cst_36 : f32 to vector<8x256xf32>
    %49 = arith.maximumf %47, %48 : vector<8x256xf32>
    %c0_37 = arith.constant 0 : index
    %c0_38 = arith.constant 0 : index
    %c0_39 = arith.constant 0 : index
    %50 = vector.load %arg7[%c0_37, %c0_38, %c0_39] : memref<1x8x256xf32, #tpu.memory_space<vmem>>, vector<1x8x256xf32>
    %51 = vector.shape_cast %50 : vector<1x8x256xf32> to vector<8x256xf32>
    %52 = vector.shape_cast %49 : vector<8x256xf32> to vector<1x8x256xf32>
    tpu.vector_store %arg7[%c0_37, %c0_38, %c0_39], %52 {strides = array<i32>} : memref<1x8x256xf32, #tpu.memory_space<vmem>>, vector<1x8x256xf32>,
    return
  }
  func.func @transform_0(%arg0: i32) -> (i32, i32, i32, i32) {
    %c0_i32 = arith.constant 0 : i32
    %c0_i32_0 = arith.constant 0 : i32
    %c0_i32_1 = arith.constant 0 : i32
    %c0_i32_2 = arith.constant 0 : i32
    return %arg0, %c0_i32, %c0_i32_0, %c0_i32_1 : i32, i32, i32, i32
  }
  func.func @transform_1(%arg0: i32) -> (i32, i32, i32, i32) {
    %c0_i32 = arith.constant 0 : i32
    %c0_i32_0 = arith.constant 0 : i32
    %c0_i32_1 = arith.constant 0 : i32
    %c0_i32_2 = arith.constant 0 : i32
    return %arg0, %c0_i32, %c0_i32_0, %c0_i32_1 : i32, i32, i32, i32
  }
  func.func @transform_2(%arg0: i32) -> (i32, i32) {
    %c0_i32 = arith.constant 0 : i32
    %c0_i32_0 = arith.constant 0 : i32
    %c0_i32_1 = arith.constant 0 : i32
    return %c0_i32, %c0_i32_0 : i32, i32
  }
  func.func @transform_3(%arg0: i32) -> (i32, i32) {
    %c0_i32 = arith.constant 0 : i32
    %c0_i32_0 = arith.constant 0 : i32
    %c0_i32_1 = arith.constant 0 : i32
    return %c0_i32, %c0_i32_0 : i32, i32
  }
  func.func @transform_4(%arg0: i32) -> (i32, i32) {
    %c0_i32 = arith.constant 0 : i32
    %c0_i32_0 = arith.constant 0 : i32
    %c0_i32_1 = arith.constant 0 : i32
    return %c0_i32, %c0_i32_0 : i32, i32
  }
  func.func @transform_5(%arg0: i32) -> (i32, i32) {
    %c0_i32 = arith.constant 0 : i32
    %c0_i32_0 = arith.constant 0 : i32
    %c0_i32_1 = arith.constant 0 : i32
    return %c0_i32, %c0_i32_0 : i32, i32
  }
  func.func @transform_6(%arg0: i32) -> (i32, i32, i32) {
    %c0_i32 = arith.constant 0 : i32
    %c0_i32_0 = arith.constant 0 : i32
    %c0_i32_1 = arith.constant 0 : i32
    return %arg0, %c0_i32, %c0_i32_0 : i32, i32, i32
  }
}

</mosaic_0001>

<llo_original>
// kernel: tpu_custom_call.1
$region0: #{tpu_custom_call.1}
  #allocation0 [shape = 'u32[]', space=smem, size = 0x4, offset = 0x4, fixed_abs, tag = 'smem constant byte address 0x4 - core index']
  #allocation1 [shape = 'u32[72,128]{1,0:T(1,128)}', space=vmem, size = 0x9000, scoped, tag = 'internal scratch']
  #allocation2 [shape = 'f32[18,18,8]{2,1,0:T(8,128)}', space=vmem, size = 0x36000, scoped, tag = 'scratch operand']
  #allocation3 [shape = 'f32[18,18,8]{2,1,0:T(8,128)}', space=vmem, size = 0x36000, scoped, tag = 'scratch operand']
  %s0 = inlined_call_operand.vmem [shape: f32[2,16,16,4], index: 0, kind: input, shape index: {}]
  %s1 = inlined_call_operand.vmem [shape: f32[2,16,16,4], index: 1, kind: input, shape index: {}]
  %s2 = inlined_call_operand.vmem [shape: f32[72,8], index: 2, kind: input, shape index: {}]
  %s3 = inlined_call_operand.vmem [shape: f32[1,8], index: 3, kind: input, shape index: {}]
  %s4 = inlined_call_operand.vmem [shape: f32[8,72], index: 4, kind: input, shape index: {}]
  %s5 = inlined_call_operand.vmem [shape: f32[8,1], index: 5, kind: input, shape index: {}]
  %s6 = inlined_call_operand.hbm [shape: f32[2,8,256], index: 6, kind: output, shape index: {}]
  %s7 = sld [smem:[#allocation0]]
  $region57: #{tpu_custom_call.1} parent=0
    _
  %s9 = ssub.s32 1, %s7
  %s10 = scalar_select 0, %s9, %s7
  $region1: #{tpu_custom_call.1} parent=0
    #allocation4 [shape = 'u8[16384]{0}', space=vmem, size = 0x4000, scoped, tag = 'output window, operand 0']
    #allocation5 [shape = 's32[2]{0}', space=sflag, size = 0x8, scoped, tag = 'scoped memory for tpu_custom_call.1']
    %11 = vsyncpa [#allocation5], 0
    %s12 = scalar_lea.sflag [#allocation5], 1
    %13 = vsyncpa %s12, 0
    loop: start=0, step=1, limit=4
    $region2: #{tpu_custom_call.1} parent=1 // loop_pre_header
      _
    $region3: #{tpu_custom_call.1} parent=1 // loop_header
      %s15 = sphi 0, %s19
      %p16 = scmp.ge.s32.totalorder %s15, 4
      %s25 = sphi 0, %s27
      %s28 = sphi 0, %s25
      %s29 = sphi 0, %s28
      %s45 = sphi 0, %s29
      %s51 = sphi 0, %s53
      %s54 = sphi 0, %s51
      %s55 = sphi 0, %s54
      %s71 = sphi 0, %s55
      %s75 = sphi 0, %s75
      %s77 = sphi 0, %s75
      %s78 = sphi 0, %s77
      %s92 = sphi 0, %s78
      %s96 = sphi 0, %s96
      %s98 = sphi 0, %s96
      %s99 = sphi 0, %s98
      %s113 = sphi 0, %s99
      %s117 = sphi 0, %s117
      %s119 = sphi 0, %s117
      %s120 = sphi 0, %s119
      %s134 = sphi 0, %s120
      %s138 = sphi 0, %s138
      %s140 = sphi 0, %s138
      %s141 = sphi 0, %s140
      %s155 = sphi 0, %s141
      %s161 = sphi 0, %s163
      %s164 = sphi 0, %s161
      %s165 = sphi 0, %s164
      %s181 = sphi 0, %s165
    $region4: #{tpu_custom_call.1} parent=1 // loop_header_branch
      %18 = sbr.rel (%p16) target = $region8
    $region5: #{tpu_custom_call.1} parent=1 // loop_body
      %s20 = ssub.s32 %s15, 1
      %s21 = ssub.s32 %s15, 2
      %s22 = sadd.s32 %s15, 1
      %s23 = ssub.s32 %s15, %s22
      %p24 = scmp.eq.s32.totalorder %s23, 0
      %s26 = sadd.s32 %s25, 1
      %s27 = scalar_select %p24, %s25, %s26
      %p30 = pneg %p24
      %p31 = scmp.eq.s32.totalorder %s15, 1
      %p32 = por %p30, %p31
      %p33 = scmp.ne.s32.totalorder %s25, %s28
      %p34 = scmp.eq.s32.totalorder %s15, 0
      %p35 = por %p33, %p34
      %p36 = scmp.ne.s32.totalorder %s25, %s28
      %p37 = scmp.eq.s32.totalorder %s20, 1
      %p38 = por %p36, %p37
      %p39 = scmp.ne.s32.totalorder %s28, %s29
      %p40 = scmp.eq.s32.totalorder %s20, 0
      %p41 = por %p39, %p40
      %p42 = scmp.ne.s32.totalorder %s28, %s29
      %p43 = scmp.eq.s32.totalorder %s21, 1
      %p44 = por %p42, %p43
      %p46 = scmp.ne.s32.totalorder %s29, %s45
      %p47 = scmp.eq.s32.totalorder %s21, 0
      %p48 = por %p46, %p47
      %s49 = ssub.s32 %s15, %s22
      %p50 = scmp.eq.s32.totalorder %s49, 0
      %s52 = sadd.s32 %s51, 1
      %s53 = scalar_select %p50, %s51, %s52
      %p56 = pneg %p50
      %p57 = scmp.eq.s32.totalorder %s15, 1
      %p58 = por %p56, %p57
      %p59 = scmp.ne.s32.totalorder %s51, %s54
      %p60 = scmp.eq.s32.totalorder %s15, 0
      %p61 = por %p59, %p60
      %p62 = scmp.ne.s32.totalorder %s51, %s54
      %p63 = scmp.eq.s32.totalorder %s20, 1
      %p64 = por %p62, %p63
      %p65 = scmp.ne.s32.totalorder %s54, %s55
      %p66 = scmp.eq.s32.totalorder %s20, 0
      %p67 = por %p65, %p66
      %p68 = scmp.ne.s32.totalorder %s54, %s55
      %p69 = scmp.eq.s32.totalorder %s21, 1
      %p70 = por %p68, %p69
      %p72 = scmp.ne.s32.totalorder %s55, %s71
      %p73 = scmp.eq.s32.totalorder %s21, 0
      %p74 = por %p72, %p73
      %s76 = sadd.s32 %s75, 1
      %p79 = scmp.eq.s32.totalorder %s15, 1
      %p80 = scmp.ne.s32.totalorder %s75, %s77
      %p81 = scmp.eq.s32.totalorder %s15, 0
      %p82 = por %p80, %p81
      %p83 = scmp.ne.s32.totalorder %s75, %s77
      %p84 = scmp.eq.s32.totalorder %s20, 1
      %p85 = por %p83, %p84
      %p86 = scmp.ne.s32.totalorder %s77, %s78
      %p87 = scmp.eq.s32.totalorder %s20, 0
      %p88 = por %p86, %p87
      %p89 = scmp.ne.s32.totalorder %s77, %s78
      %p90 = scmp.eq.s32.totalorder %s21, 1
      %p91 = por %p89, %p90
      %p93 = scmp.ne.s32.totalorder %s78, %s92
      %p94 = scmp.eq.s32.totalorder %s21, 0
      %p95 = por %p93, %p94
      %s97 = sadd.s32 %s96, 1
      %p100 = scmp.eq.s32.totalorder %s15, 1
      %p101 = scmp.ne.s32.totalorder %s96, %s98
      %p102 = scmp.eq.s32.totalorder %s15, 0
      %p103 = por %p101, %p102
      %p104 = scmp.ne.s32.totalorder %s96, %s98
      %p105 = scmp.eq.s32.totalorder %s20, 1
      %p106 = por %p104, %p105
      %p107 = scmp.ne.s32.totalorder %s98, %s99
      %p108 = scmp.eq.s32.totalorder %s20, 0
      %p109 = por %p107, %p108
      %p110 = scmp.ne.s32.totalorder %s98, %s99
      %p111 = scmp.eq.s32.totalorder %s21, 1
      %p112 = por %p110, %p111
      %p114 = scmp.ne.s32.totalorder %s99, %s113
      %p115 = scmp.eq.s32.totalorder %s21, 0
      %p116 = por %p114, %p115
      %s118 = sadd.s32 %s117, 1
      %p121 = scmp.eq.s32.totalorder %s15, 1
      %p122 = scmp.ne.s32.totalorder %s117, %s119
      %p123 = scmp.eq.s32.totalorder %s15, 0
      %p124 = por %p122, %p123
      %p125 = scmp.ne.s32.totalorder %s117, %s119
      %p126 = scmp.eq.s32.totalorder %s20, 1
      %p127 = por %p125, %p126
      %p128 = scmp.ne.s32.totalorder %s119, %s120
      %p129 = scmp.eq.s32.totalorder %s20, 0
      %p130 = por %p128, %p129
      %p131 = scmp.ne.s32.totalorder %s119, %s120
      %p132 = scmp.eq.s32.totalorder %s21, 1
      %p133 = por %p131, %p132
      %p135 = scmp.ne.s32.totalorder %s120, %s134
      %p136 = scmp.eq.s32.totalorder %s21, 0
      %p137 = por %p135, %p136
      %s139 = sadd.s32 %s138, 1
      %p142 = scmp.eq.s32.totalorder %s15, 1
      %p143 = scmp.ne.s32.totalorder %s138, %s140
      %p144 = scmp.eq.s32.totalorder %s15, 0
      %p145 = por %p143, %p144
      %p146 = scmp.ne.s32.totalorder %s138, %s140
      %p147 = scmp.eq.s32.totalorder %s20, 1
      %p148 = por %p146, %p147
      %p149 = scmp.ne.s32.totalorder %s140, %s141
      %p150 = scmp.eq.s32.totalorder %s20, 0
      %p151 = por %p149, %p150
      %p152 = scmp.ne.s32.totalorder %s140, %s141
      %p153 = scmp.eq.s32.totalorder %s21, 1
      %p154 = por %p152, %p153
      %p156 = scmp.ne.s32.totalorder %s141, %s155
      %p157 = scmp.eq.s32.totalorder %s21, 0
      %p158 = por %p156, %p157
      %s159 = ssub.s32 %s15, %s22
      %p160 = scmp.eq.s32.totalorder %s159, 0
      %s162 = sadd.s32 %s161, 1
      %s163 = scalar_select %p160, %s161, %s162
      %p166 = pneg %p160
      %p167 = scmp.eq.s32.totalorder %s15, 1
      %p168 = por %p166, %p167
      %p169 = scmp.ne.s32.totalorder %s161, %s164
      %p170 = scmp.eq.s32.totalorder %s15, 0
      %p171 = por %p169, %p170
      %p172 = scmp.ne.s32.totalorder %s161, %s164
      %p173 = scmp.eq.s32.totalorder %s20, 1
      %p174 = por %p172, %p173
      %p175 = scmp.ne.s32.totalorder %s164, %s165
      %p176 = scmp.eq.s32.totalorder %s20, 0
      %p177 = por %p175, %p176
      %p178 = scmp.ne.s32.totalorder %s164, %s165
      %p179 = scmp.eq.s32.totalorder %s21, 1
      %p180 = por %p178, %p179
      %p182 = scmp.ne.s32.totalorder %s165, %s181
      %p183 = scmp.eq.s32.totalorder %s21, 0
      %p184 = por %p182, %p183
      %p185 = scmp.le.s32.totalorder 1, %s15
      %p186 = scmp.lt.s32.totalorder %s15, 3
      %p187 = pnand %p185, %p186
      %p188 = pneg %p187
      // Predicated region
      $region9: #{tpu_custom_call.1} parent=5 // pred_check
        _
      $region10: #{tpu_custom_call.1} parent=5 // pred_check_branch
        %190 = sbr.rel (%p187) target = $region12
      $region11: #{tpu_custom_call.1} parent=5 // pred_region
        %s191 = ssub.s32 %s15, 1
        // Predicated region
        $region13: #{tpu_custom_call.1} parent=11 // pred_check
          %p192 = pneg %p88
        $region14: #{tpu_custom_call.1} parent=11 // pred_check_branch
          %194 = sbr.rel (%p192) target = $region16
        $region15: #{tpu_custom_call.1} parent=11 // pred_region
          _
        $region16: #{tpu_custom_call.1} parent=11 // pred_fallthru
          _
        // Predicated region
        $region17: #{tpu_custom_call.1} parent=11 // pred_check
          %p195 = pneg %p109
        $region18: #{tpu_custom_call.1} parent=11 // pred_check_branch
          %197 = sbr.rel (%p195) target = $region20
        $region19: #{tpu_custom_call.1} parent=11 // pred_region
          _
        $region20: #{tpu_custom_call.1} parent=11 // pred_fallthru
          _
        // Predicated region
        $region21: #{tpu_custom_call.1} parent=11 // pred_check
          %p198 = pneg %p130
        $region22: #{tpu_custom_call.1} parent=11 // pred_check_branch
          %200 = sbr.rel (%p198) target = $region24
        $region23: #{tpu_custom_call.1} parent=11 // pred_region
          _
        $region24: #{tpu_custom_call.1} parent=11 // pred_fallthru
          _
        // Predicated region
        $region25: #{tpu_custom_call.1} parent=11 // pred_check
          %p201 = pneg %p151
        $region26: #{tpu_custom_call.1} parent=11 // pred_check_branch
          %203 = sbr.rel (%p201) target = $region28
        $region27: #{tpu_custom_call.1} parent=11 // pred_region
          _
        $region28: #{tpu_custom_call.1} parent=11 // pred_fallthru
          _
      $region12: #{tpu_custom_call.1} parent=5 // pred_fallthru
        _
      %p204 = scmp.lt.s32.totalorder %s15, 2
      // Predicated region
      $region29: #{tpu_custom_call.1} parent=5 // pred_check
        %p205 = pneg %p204
      $region30: #{tpu_custom_call.1} parent=5 // pred_check_branch
        %207 = sbr.rel (%p205) target = $region32
      $region31: #{tpu_custom_call.1} parent=5 // pred_region
        // Predicated region
        $region33: #{tpu_custom_call.1} parent=31 // pred_check
          %p208 = pneg %p35
        $region34: #{tpu_custom_call.1} parent=31 // pred_check_branch
          %210 = sbr.rel (%p208) target = $region36
        $region35: #{tpu_custom_call.1} parent=31 // pred_region
          %p211 = scmp.lt.s32.totalorder %s15, 1
          %s212 = scalar_select %p211, %s15, 1
          %s213 = smul.addr %s212, 32
          %s214 = smul.addr %s213, 8
          %s215 = scalar_lea.vmem %s0, %s214
        $region36: #{tpu_custom_call.1} parent=31 // pred_fallthru
          _
        // Predicated region
        $region37: #{tpu_custom_call.1} parent=31 // pred_check
          %p216 = pneg %p61
        $region38: #{tpu_custom_call.1} parent=31 // pred_check_branch
          %218 = sbr.rel (%p216) target = $region40
        $region39: #{tpu_custom_call.1} parent=31 // pred_region
          %p219 = scmp.lt.s32.totalorder %s15, 1
          %s220 = scalar_select %p219, %s15, 1
          %s221 = smul.addr %s220, 32
          %s222 = smul.addr %s221, 8
          %s223 = scalar_lea.vmem %s1, %s222
        $region40: #{tpu_custom_call.1} parent=31 // pred_fallthru
          _
      $region32: #{tpu_custom_call.1} parent=5 // pred_fallthru
        _
      %p224 = scmp.le.s32.totalorder 1, %s15
      %p225 = scmp.lt.s32.totalorder %s15, 3
      %p226 = pnand %p224, %p225
      %p227 = pneg %p226
      // Predicated region
      $region41: #{tpu_custom_call.1} parent=5 // pred_check
        _
      $region42: #{tpu_custom_call.1} parent=5 // pred_check_branch
        %229 = sbr.rel (%p226) target = $region44
      $region43: #{tpu_custom_call.1} parent=5 // pred_region
        %s230 = ssub.s32 %s15, 1
        %p231 = scmp.lt.s32.totalorder %s20, 1
        %s232 = scalar_select %p231, %s20, 1
        %s233 = smul.addr %s232, 32
        %s234 = smul.addr %s233, 8
        %s235 = scalar_lea.vmem %s0, %s234
        %p236 = pneg %p41
        %p237 = pneg %p38
        %p238 = scmp.lt.s32.totalorder %s20, 1
        %s239 = scalar_select %p238, %s20, 1
        %s240 = smul.addr %s239, 32
        %s241 = smul.addr %s240, 8
        %s242 = scalar_lea.vmem %s1, %s241
        %p243 = pneg %p67
        %p244 = pneg %p64
        %p245 = pneg %p88
        %p246 = pneg %p85
        %p247 = pneg %p109
        %p248 = pneg %p106
        %p249 = pneg %p130
        %p250 = pneg %p127
        %p251 = pneg %p151
        %p252 = pneg %p148
        %p253 = pneg %p177
        %p254 = pneg %p174
        %s255 = sand.u32 %s164, 1
        %s256 = scalar_lea.sflag [#allocation5], %s255
        %s257 = sand.u32 %s164, 1
        %s258 = smul.addr %s257, 16
        %s259 = scalar_lea.vmem [#allocation4], %s258
        %p260 = scmp.lt.s32.totalorder %s20, 1
        %s261 = scalar_select %p260, %s20, 1
        %s262 = smul.addr %s261, 32
        %s263 = smul.addr %s262, 8
        %s264 = scalar_lea.vmem %s0, %s263
        %p265 = scmp.lt.s32.totalorder %s20, 1
        %s266 = scalar_select %p265, %s20, 1
        %s267 = smul.addr %s266, 32
        %s268 = smul.addr %s267, 8
        %s269 = scalar_lea.vmem %s1, %s268
        %vm270 = vcmask 64512
        %271 = vst.msk [vmem:[#allocation2] sm:$0xff] %vm270, 0.0
        %272 = vst.msk [vmem:[#allocation2 + $0x8] sm:$0xff] %vm270, 0.0
        %vm273 = vcmask 58368
        %274 = vst.msk [vmem:[#allocation2 + $0x10] sm:$0x3] %vm273, 0.0
        %275 = vst.msk [vmem:[#allocation2 + $0x18] sm:$0xff] %vm270, 0.0
        %276 = vst.msk [vmem:[#allocation2 + $0x20] sm:$0xff] %vm270, 0.0
        %277 = vst.msk [vmem:[#allocation2 + $0x28] sm:$0x3] %vm273, 0.0
        %278 = vst.msk [vmem:[#allocation2 + $0x30] sm:$0xff] %vm270, 0.0
        %279 = vst.msk [vmem:[#allocation2 + $0x38] sm:$0xff] %vm270, 0.0
        %280 = vst.msk [vmem:[#allocation2 + $0x40] sm:$0x3] %vm273, 0.0
        %281 = vst.msk [vmem:[#allocation2 + $0x48] sm:$0xff] %vm270, 0.0
        %282 = vst.msk [vmem:[#allocation2 + $0x50] sm:$0xff] %vm270, 0.0
        %283 = vst.msk [vmem:[#allocation2 + $0x58] sm:$0x3] %vm273, 0.0
        %284 = vst.msk [vmem:[#allocation2 + $0x60] sm:$0xff] %vm270, 0.0
        %285 = vst.msk [vmem:[#allocation2 + $0x68] sm:$0xff] %vm270, 0.0
        %286 = vst.msk [vmem:[#allocation2 + $0x70] sm:$0x3] %vm273, 0.0
        %287 = vst.msk [vmem:[#allocation2 + $0x78] sm:$0xff] %vm270, 0.0
        %288 = vst.msk [vmem:[#allocation2 + $0x80] sm:$0xff] %vm270, 0.0
        %289 = vst.msk [vmem:[#allocation2 + $0x88] sm:$0x3] %vm273, 0.0
        %290 = vst.msk [vmem:[#allocation2 + $0x90] sm:$0xff] %vm270, 0.0
        %291 = vst.msk [vmem:[#allocation2 + $0x98] sm:$0xff] %vm270, 0.0
        %292 = vst.msk [vmem:[#allocation2 + $0xa0] sm:$0x3] %vm273, 0.0
        %293 = vst.msk [vmem:[#allocation2 + $0xa8] sm:$0xff] %vm270, 0.0
        %294 = vst.msk [vmem:[#allocation2 + $0xb0] sm:$0xff] %vm270, 0.0
        %295 = vst.msk [vmem:[#allocation2 + $0xb8] sm:$0x3] %vm273, 0.0
        %296 = vst.msk [vmem:[#allocation2 + $0xc0] sm:$0xff] %vm270, 0.0
        %297 = vst.msk [vmem:[#allocation2 + $0xc8] sm:$0xff] %vm270, 0.0
        %298 = vst.msk [vmem:[#allocation2 + $0xd0] sm:$0x3] %vm273, 0.0
        %299 = vst.msk [vmem:[#allocation2 + $0xd8] sm:$0xff] %vm270, 0.0
        %300 = vst.msk [vmem:[#allocation2 + $0xe0] sm:$0xff] %vm270, 0.0
        %301 = vst.msk [vmem:[#allocation2 + $0xe8] sm:$0x3] %vm273, 0.0
        %302 = vst.msk [vmem:[#allocation2 + $0xf0] sm:$0xff] %vm270, 0.0
        %303 = vst.msk [vmem:[#allocation2 + $0xf8] sm:$0xff] %vm270, 0.0
        %304 = vst.msk [vmem:[#allocation2 + $0x100] sm:$0x3] %vm273, 0.0
        %305 = vst.msk [vmem:[#allocation2 + $0x108] sm:$0xff] %vm270, 0.0
        %306 = vst.msk [vmem:[#allocation2 + $0x110] sm:$0xff] %vm270, 0.0
        %307 = vst.msk [vmem:[#allocation2 + $0x118] sm:$0x3] %vm273, 0.0
        %308 = vst.msk [vmem:[#allocation2 + $0x120] sm:$0xff] %vm270, 0.0
        %309 = vst.msk [vmem:[#allocation2 + $0x128] sm:$0xff] %vm270, 0.0
        %310 = vst.msk [vmem:[#allocation2 + $0x130] sm:$0x3] %vm273, 0.0
        %311 = vst.msk [vmem:[#allocation2 + $0x138] sm:$0xff] %vm270, 0.0
        %312 = vst.msk [vmem:[#allocation2 + $0x140] sm:$0xff] %vm270, 0.0
        %313 = vst.msk [vmem:[#allocation2 + $0x148] sm:$0x3] %vm273, 0.0
        %314 = vst.msk [vmem:[#allocation2 + $0x150] sm:$0xff] %vm270, 0.0
        %315 = vst.msk [vmem:[#allocation2 + $0x158] sm:$0xff] %vm270, 0.0
        %316 = vst.msk [vmem:[#allocation2 + $0x160] sm:$0x3] %vm273, 0.0
        %317 = vst.msk [vmem:[#allocation2 + $0x168] sm:$0xff] %vm270, 0.0
        %318 = vst.msk [vmem:[#allocation2 + $0x170] sm:$0xff] %vm270, 0.0
        %319 = vst.msk [vmem:[#allocation2 + $0x178] sm:$0x3] %vm273, 0.0
        %320 = vst.msk [vmem:[#allocation2 + $0x180] sm:$0xff] %vm270, 0.0
        %321 = vst.msk [vmem:[#allocation2 + $0x188] sm:$0xff] %vm270, 0.0
        %322 = vst.msk [vmem:[#allocation2 + $0x190] sm:$0x3] %vm273, 0.0
        %323 = vst.msk [vmem:[#allocation2 + $0x198] sm:$0xff] %vm270, 0.0
        %324 = vst.msk [vmem:[#allocation2 + $0x1a0] sm:$0xff] %vm270, 0.0
        %325 = vst.msk [vmem:[#allocation2 + $0x1a8] sm:$0x3] %vm273, 0.0
        %326 = vst.msk [vmem:[#allocation3] sm:$0xff] %vm270, 0.0
        %327 = vst.msk [vmem:[#allocation3 + $0x8] sm:$0xff] %vm270, 0.0
        %328 = vst.msk [vmem:[#allocation3 + $0x10] sm:$0x3] %vm273, 0.0
        %329 = vst.msk [vmem:[#allocation3 + $0x18] sm:$0xff] %vm270, 0.0
        %330 = vst.msk [vmem:[#allocation3 + $0x20] sm:$0xff] %vm270, 0.0
        %331 = vst.msk [vmem:[#allocation3 + $0x28] sm:$0x3] %vm273, 0.0
        %332 = vst.msk [vmem:[#allocation3 + $0x30] sm:$0xff] %vm270, 0.0
        %333 = vst.msk [vmem:[#allocation3 + $0x38] sm:$0xff] %vm270, 0.0
        %334 = vst.msk [vmem:[#allocation3 + $0x40] sm:$0x3] %vm273, 0.0
        %335 = vst.msk [vmem:[#allocation3 + $0x48] sm:$0xff] %vm270, 0.0
        %336 = vst.msk [vmem:[#allocation3 + $0x50] sm:$0xff] %vm270, 0.0
        %337 = vst.msk [vmem:[#allocation3 + $0x58] sm:$0x3] %vm273, 0.0
        %338 = vst.msk [vmem:[#allocation3 + $0x60] sm:$0xff] %vm270, 0.0
        %339 = vst.msk [vmem:[#allocation3 + $0x68] sm:$0xff] %vm270, 0.0
        %340 = vst.msk [vmem:[#allocation3 + $0x70] sm:$0x3] %vm273, 0.0
        %341 = vst.msk [vmem:[#allocation3 + $0x78] sm:$0xff] %vm270, 0.0
        %342 = vst.msk [vmem:[#allocation3 + $0x80] sm:$0xff] %vm270, 0.0
        %343 = vst.msk [vmem:[#allocation3 + $0x88] sm:$0x3] %vm273, 0.0
        %344 = vst.msk [vmem:[#allocation3 + $0x90] sm:$0xff] %vm270, 0.0
        %345 = vst.msk [vmem:[#allocation3 + $0x98] sm:$0xff] %vm270, 0.0
        %346 = vst.msk [vmem:[#allocation3 + $0xa0] sm:$0x3] %vm273, 0.0
        %347 = vst.msk [vmem:[#allocation3 + $0xa8] sm:$0xff] %vm270, 0.0
        %348 = vst.msk [vmem:[#allocation3 + $0xb0] sm:$0xff] %vm270, 0.0
        %349 = vst.msk [vmem:[#allocation3 + $0xb8] sm:$0x3] %vm273, 0.0
        %350 = vst.msk [vmem:[#allocation3 + $0xc0] sm:$0xff] %vm270, 0.0
        %351 = vst.msk [vmem:[#allocation3 + $0xc8] sm:$0xff] %vm270, 0.0
        %352 = vst.msk [vmem:[#allocation3 + $0xd0] sm:$0x3] %vm273, 0.0
        %353 = vst.msk [vmem:[#allocation3 + $0xd8] sm:$0xff] %vm270, 0.0
        %354 = vst.msk [vmem:[#allocation3 + $0xe0] sm:$0xff] %vm270, 0.0
        %355 = vst.msk [vmem:[#allocation3 + $0xe8] sm:$0x3] %vm273, 0.0
        %356 = vst.msk [vmem:[#allocation3 + $0xf0] sm:$0xff] %vm270, 0.0
        %357 = vst.msk [vmem:[#allocation3 + $0xf8] sm:$0xff] %vm270, 0.0
        %358 = vst.msk [vmem:[#allocation3 + $0x100] sm:$0x3] %vm273, 0.0
        %359 = vst.msk [vmem:[#allocation3 + $0x108] sm:$0xff] %vm270, 0.0
        %360 = vst.msk [vmem:[#allocation3 + $0x110] sm:$0xff] %vm270, 0.0
        %361 = vst.msk [vmem:[#allocation3 + $0x118] sm:$0x3] %vm273, 0.0
        %362 = vst.msk [vmem:[#allocation3 + $0x120] sm:$0xff] %vm270, 0.0
        %363 = vst.msk [vmem:[#allocation3 + $0x128] sm:$0xff] %vm270, 0.0
        %364 = vst.msk [vmem:[#allocation3 + $0x130] sm:$0x3] %vm273, 0.0
        %365 = vst.msk [vmem:[#allocation3 + $0x138] sm:$0xff] %vm270, 0.0
        %366 = vst.msk [vmem:[#allocation3 + $0x140] sm:$0xff] %vm270, 0.0
        %367 = vst.msk [vmem:[#allocation3 + $0x148] sm:$0x3] %vm273, 0.0
        %368 = vst.msk [vmem:[#allocation3 + $0x150] sm:$0xff] %vm270, 0.0
        %369 = vst.msk [vmem:[#allocation3 + $0x158] sm:$0xff] %vm270, 0.0
        %370 = vst.msk [vmem:[#allocation3 + $0x160] sm:$0x3] %vm273, 0.0
        %371 = vst.msk [vmem:[#allocation3 + $0x168] sm:$0xff] %vm270, 0.0
        %372 = vst.msk [vmem:[#allocation3 + $0x170] sm:$0xff] %vm270, 0.0
        %373 = vst.msk [vmem:[#allocation3 + $0x178] sm:$0x3] %vm273, 0.0
        %374 = vst.msk [vmem:[#allocation3 + $0x180] sm:$0xff] %vm270, 0.0
        %375 = vst.msk [vmem:[#allocation3 + $0x188] sm:$0xff] %vm270, 0.0
        %376 = vst.msk [vmem:[#allocation3 + $0x190] sm:$0x3] %vm273, 0.0
        %377 = vst.msk [vmem:[#allocation3 + $0x198] sm:$0xff] %vm270, 0.0
        %378 = vst.msk [vmem:[#allocation3 + $0x1a0] sm:$0xff] %vm270, 0.0
        %379 = vst.msk [vmem:[#allocation3 + $0x1a8] sm:$0x3] %vm273, 0.0
        %v380 = vld [vmem:[%s264] sm:$0xff]
        %v381 = vld [vmem:[%s264 + $0x8] sm:$0xff]
        %v382 = vld [vmem:[%s264 + $0x10] sm:$0xff]
        %v383 = vld [vmem:[%s264 + $0x18] sm:$0xff]
        %v384 = vld [vmem:[%s264 + $0x20] sm:$0xff]
        %v385 = vld [vmem:[%s264 + $0x28] sm:$0xff]
        %v386 = vld [vmem:[%s264 + $0x30] sm:$0xff]
        %v387 = vld [vmem:[%s264 + $0x38] sm:$0xff]
        %v388 = vld [vmem:[%s264 + $0x40] sm:$0xff]
        %v389 = vld [vmem:[%s264 + $0x48] sm:$0xff]
        %v390 = vld [vmem:[%s264 + $0x50] sm:$0xff]
        %v391 = vld [vmem:[%s264 + $0x58] sm:$0xff]
        %v392 = vld [vmem:[%s264 + $0x60] sm:$0xff]
        %v393 = vld [vmem:[%s264 + $0x68] sm:$0xff]
        %v394 = vld [vmem:[%s264 + $0x70] sm:$0xff]
        %v395 = vld [vmem:[%s264 + $0x78] sm:$0xff]
        %v396 = vld [vmem:[%s264 + $0x80] sm:$0xff]
        %v397 = vld [vmem:[%s264 + $0x88] sm:$0xff]
        %v398 = vld [vmem:[%s264 + $0x90] sm:$0xff]
        %v399 = vld [vmem:[%s264 + $0x98] sm:$0xff]
        %v400 = vld [vmem:[%s264 + $0xa0] sm:$0xff]
        %v401 = vld [vmem:[%s264 + $0xa8] sm:$0xff]
        %v402 = vld [vmem:[%s264 + $0xb0] sm:$0xff]
        %v403 = vld [vmem:[%s264 + $0xb8] sm:$0xff]
        %v404 = vld [vmem:[%s264 + $0xc0] sm:$0xff]
        %v405 = vld [vmem:[%s264 + $0xc8] sm:$0xff]
        %v406 = vld [vmem:[%s264 + $0xd0] sm:$0xff]
        %v407 = vld [vmem:[%s264 + $0xd8] sm:$0xff]
        %v408 = vld [vmem:[%s264 + $0xe0] sm:$0xff]
        %v409 = vld [vmem:[%s264 + $0xe8] sm:$0xff]
        %v410 = vld [vmem:[%s264 + $0xf0] sm:$0xff]
        %v411 = vld [vmem:[%s264 + $0xf8] sm:$0xff]
        %v412 = vld [vmem:[%s269] sm:$0xff]
        %v413 = vld [vmem:[%s269 + $0x8] sm:$0xff]
        %v414 = vld [vmem:[%s269 + $0x10] sm:$0xff]
        %v415 = vld [vmem:[%s269 + $0x18] sm:$0xff]
        %v416 = vld [vmem:[%s269 + $0x20] sm:$0xff]
        %v417 = vld [vmem:[%s269 + $0x28] sm:$0xff]
        %v418 = vld [vmem:[%s269 + $0x30] sm:$0xff]
        %v419 = vld [vmem:[%s269 + $0x38] sm:$0xff]
        %v420 = vld [vmem:[%s269 + $0x40] sm:$0xff]
        %v421 = vld [vmem:[%s269 + $0x48] sm:$0xff]
        %v422 = vld [vmem:[%s269 + $0x50] sm:$0xff]
        %v423 = vld [vmem:[%s269 + $0x58] sm:$0xff]
        %v424 = vld [vmem:[%s269 + $0x60] sm:$0xff]
        %v425 = vld [vmem:[%s269 + $0x68] sm:$0xff]
        %v426 = vld [vmem:[%s269 + $0x70] sm:$0xff]
        %v427 = vld [vmem:[%s269 + $0x78] sm:$0xff]
        %v428 = vld [vmem:[%s269 + $0x80] sm:$0xff]
        %v429 = vld [vmem:[%s269 + $0x88] sm:$0xff]
        %v430 = vld [vmem:[%s269 + $0x90] sm:$0xff]
        %v431 = vld [vmem:[%s269 + $0x98] sm:$0xff]
        %v432 = vld [vmem:[%s269 + $0xa0] sm:$0xff]
        %v433 = vld [vmem:[%s269 + $0xa8] sm:$0xff]
        %v434 = vld [vmem:[%s269 + $0xb0] sm:$0xff]
        %v435 = vld [vmem:[%s269 + $0xb8] sm:$0xff]
        %v436 = vld [vmem:[%s269 + $0xc0] sm:$0xff]
        %v437 = vld [vmem:[%s269 + $0xc8] sm:$0xff]
        %v438 = vld [vmem:[%s269 + $0xd0] sm:$0xff]
        %v439 = vld [vmem:[%s269 + $0xd8] sm:$0xff]
        %v440 = vld [vmem:[%s269 + $0xe0] sm:$0xff]
        %v441 = vld [vmem:[%s269 + $0xe8] sm:$0xff]
        %v442 = vld [vmem:[%s269 + $0xf0] sm:$0xff]
        %v443 = vld [vmem:[%s269 + $0xf8] sm:$0xff]
        %476 = vrot.lane.b32.xlu0 %v412, 4
        %v477 = vpop.permute.xlu0 %476
        %478 = vrot.lane.b32.xlu0 %v413, 4
        %v479 = vpop.permute.xlu0 %478
        %480 = vrot.lane.b32.xlu0 %v414, 4
        %v481 = vpop.permute.xlu0 %480
        %482 = vrot.lane.b32.xlu0 %v415, 4
        %v483 = vpop.permute.xlu0 %482
        %484 = vrot.lane.b32.xlu0 %v416, 4
        %v485 = vpop.permute.xlu0 %484
        %486 = vrot.lane.b32.xlu0 %v417, 4
        %v487 = vpop.permute.xlu0 %486
        %488 = vrot.lane.b32.xlu0 %v418, 4
        %v489 = vpop.permute.xlu0 %488
        %490 = vrot.lane.b32.xlu0 %v419, 4
        %v491 = vpop.permute.xlu0 %490
        %492 = vrot.lane.b32.xlu0 %v420, 4
        %v493 = vpop.permute.xlu0 %492
        %494 = vrot.lane.b32.xlu0 %v421, 4
        %v495 = vpop.permute.xlu0 %494
        %496 = vrot.lane.b32.xlu0 %v422, 4
        %v497 = vpop.permute.xlu0 %496
        %498 = vrot.lane.b32.xlu0 %v423, 4
        %v499 = vpop.permute.xlu0 %498
        %500 = vrot.lane.b32.xlu0 %v424, 4
        %v501 = vpop.permute.xlu0 %500
        %502 = vrot.lane.b32.xlu0 %v425, 4
        %v503 = vpop.permute.xlu0 %502
        %504 = vrot.lane.b32.xlu0 %v426, 4
        %v505 = vpop.permute.xlu0 %504
        %506 = vrot.lane.b32.xlu0 %v427, 4
        %v507 = vpop.permute.xlu0 %506
        %508 = vrot.lane.b32.xlu0 %v428, 4
        %v509 = vpop.permute.xlu0 %508
        %510 = vrot.lane.b32.xlu0 %v429, 4
        %v511 = vpop.permute.xlu0 %510
        %512 = vrot.lane.b32.xlu0 %v430, 4
        %v513 = vpop.permute.xlu0 %512
        %514 = vrot.lane.b32.xlu0 %v431, 4
        %v515 = vpop.permute.xlu0 %514
        %516 = vrot.lane.b32.xlu0 %v432, 4
        %v517 = vpop.permute.xlu0 %516
        %518 = vrot.lane.b32.xlu0 %v433, 4
        %v519 = vpop.permute.xlu0 %518
        %520 = vrot.lane.b32.xlu0 %v434, 4
        %v521 = vpop.permute.xlu0 %520
        %522 = vrot.lane.b32.xlu0 %v435, 4
        %v523 = vpop.permute.xlu0 %522
        %524 = vrot.lane.b32.xlu0 %v436, 4
        %v525 = vpop.permute.xlu0 %524
        %526 = vrot.lane.b32.xlu0 %v437, 4
        %v527 = vpop.permute.xlu0 %526
        %528 = vrot.lane.b32.xlu0 %v438, 4
        %v529 = vpop.permute.xlu0 %528
        %530 = vrot.lane.b32.xlu0 %v439, 4
        %v531 = vpop.permute.xlu0 %530
        %532 = vrot.lane.b32.xlu0 %v440, 4
        %v533 = vpop.permute.xlu0 %532
        %534 = vrot.lane.b32.xlu0 %v441, 4
        %v535 = vpop.permute.xlu0 %534
        %536 = vrot.lane.b32.xlu0 %v442, 4
        %v537 = vpop.permute.xlu0 %536
        %538 = vrot.lane.b32.xlu0 %v443, 4
        %v539 = vpop.permute.xlu0 %538
        %vm572 = vcmask 31744
        %v573 = vsel %vm572, %v380, %v477
        %v574 = vsel %vm572, %v381, %v479
        %v575 = vsel %vm572, %v382, %v481
        %v576 = vsel %vm572, %v383, %v483
        %v577 = vsel %vm572, %v384, %v485
        %v578 = vsel %vm572, %v385, %v487
        %v579 = vsel %vm572, %v386, %v489
        %v580 = vsel %vm572, %v387, %v491
        %v581 = vsel %vm572, %v388, %v493
        %v582 = vsel %vm572, %v389, %v495
        %v583 = vsel %vm572, %v390, %v497
        %v584 = vsel %vm572, %v391, %v499
        %v585 = vsel %vm572, %v392, %v501
        %v586 = vsel %vm572, %v393, %v503
        %v587 = vsel %vm572, %v394, %v505
        %v588 = vsel %vm572, %v395, %v507
        %v589 = vsel %vm572, %v396, %v509
        %v590 = vsel %vm572, %v397, %v511
        %v591 = vsel %vm572, %v398, %v513
        %v592 = vsel %vm572, %v399, %v515
        %v593 = vsel %vm572, %v400, %v517
        %v594 = vsel %vm572, %v401, %v519
        %v595 = vsel %vm572, %v402, %v521
        %v596 = vsel %vm572, %v403, %v523
        %v597 = vsel %vm572, %v404, %v525
        %v598 = vsel %vm572, %v405, %v527
        %v599 = vsel %vm572, %v406, %v529
        %v600 = vsel %vm572, %v407, %v531
        %v601 = vsel %vm572, %v408, %v533
        %v602 = vsel %vm572, %v409, %v535
        %v603 = vsel %vm572, %v410, %v537
        %v604 = vsel %vm572, %v411, %v539
        %s605 = scalar_lea.vmem [#allocation2], 24
        %606 = vst.msk [vmem:[%s605 + $0x1] sm:$0xff] %vm270, %v573
        %607 = vst.msk [vmem:[%s605 + $0x9] sm:$0xff] %vm270, %v574
        %608 = vst.msk [vmem:[%s605 + $0x19] sm:$0xff] %vm270, %v575
        %609 = vst.msk [vmem:[%s605 + $0x21] sm:$0xff] %vm270, %v576
        %610 = vst.msk [vmem:[%s605 + $0x31] sm:$0xff] %vm270, %v577
        %611 = vst.msk [vmem:[%s605 + $0x39] sm:$0xff] %vm270, %v578
        %612 = vst.msk [vmem:[%s605 + $0x49] sm:$0xff] %vm270, %v579
        %613 = vst.msk [vmem:[%s605 + $0x51] sm:$0xff] %vm270, %v580
        %614 = vst.msk [vmem:[%s605 + $0x61] sm:$0xff] %vm270, %v581
        %615 = vst.msk [vmem:[%s605 + $0x69] sm:$0xff] %vm270, %v582
        %616 = vst.msk [vmem:[%s605 + $0x79] sm:$0xff] %vm270, %v583
        %617 = vst.msk [vmem:[%s605 + $0x81] sm:$0xff] %vm270, %v584
        %618 = vst.msk [vmem:[%s605 + $0x91] sm:$0xff] %vm270, %v585
        %619 = vst.msk [vmem:[%s605 + $0x99] sm:$0xff] %vm270, %v586
        %620 = vst.msk [vmem:[%s605 + $0xa9] sm:$0xff] %vm270, %v587
        %621 = vst.msk [vmem:[%s605 + $0xb1] sm:$0xff] %vm270, %v588
        %622 = vst.msk [vmem:[%s605 + $0xc1] sm:$0xff] %vm270, %v589
        %623 = vst.msk [vmem:[%s605 + $0xc9] sm:$0xff] %vm270, %v590
        %624 = vst.msk [vmem:[%s605 + $0xd9] sm:$0xff] %vm270, %v591
        %625 = vst.msk [vmem:[%s605 + $0xe1] sm:$0xff] %vm270, %v592
        %626 = vst.msk [vmem:[%s605 + $0xf1] sm:$0xff] %vm270, %v593
        %627 = vst.msk [vmem:[%s605 + $0xf9] sm:$0xff] %vm270, %v594
        %628 = vst.msk [vmem:[%s605 + $0x109] sm:$0xff] %vm270, %v595
        %629 = vst.msk [vmem:[%s605 + $0x111] sm:$0xff] %vm270, %v596
        %630 = vst.msk [vmem:[%s605 + $0x121] sm:$0xff] %vm270, %v597
        %631 = vst.msk [vmem:[%s605 + $0x129] sm:$0xff] %vm270, %v598
        %632 = vst.msk [vmem:[%s605 + $0x139] sm:$0xff] %vm270, %v599
        %633 = vst.msk [vmem:[%s605 + $0x141] sm:$0xff] %vm270, %v600
        %634 = vst.msk [vmem:[%s605 + $0x151] sm:$0xff] %vm270, %v601
        %635 = vst.msk [vmem:[%s605 + $0x159] sm:$0xff] %vm270, %v602
        %636 = vst.msk [vmem:[%s605 + $0x169] sm:$0xff] %vm270, %v603
        %637 = vst.msk [vmem:[%s605 + $0x171] sm:$0xff] %vm270, %v604
        %v638 = vld [vmem:[#allocation2] sm:$0xff]
        %v639 = vld [vmem:[#allocation2 + $0x8] sm:$0xff]
        %v640 = vld [vmem:[#allocation2 + $0x10] sm:$0x3]
        %v641 = vld [vmem:[#allocation2 + $0x18] sm:$0xff]
        %v642 = vld [vmem:[#allocation2 + $0x20] sm:$0xff]
        %v643 = vld [vmem:[#allocation2 + $0x28] sm:$0x3]
        %v644 = vld [vmem:[#allocation2 + $0x30] sm:$0xff]
        %v645 = vld [vmem:[#allocation2 + $0x38] sm:$0xff]
        %v646 = vld [vmem:[#allocation2 + $0x40] sm:$0x3]
        %v647 = vld [vmem:[#allocation2 + $0x48] sm:$0xff]
        %v648 = vld [vmem:[#allocation2 + $0x50] sm:$0xff]
        %v649 = vld [vmem:[#allocation2 + $0x58] sm:$0x3]
        %v650 = vld [vmem:[#allocation2 + $0x60] sm:$0xff]
        %v651 = vld [vmem:[#allocation2 + $0x68] sm:$0xff]
        %v652 = vld [vmem:[#allocation2 + $0x70] sm:$0x3]
        %v653 = vld [vmem:[#allocation2 + $0x78] sm:$0xff]
        %v654 = vld [vmem:[#allocation2 + $0x80] sm:$0xff]
        %v655 = vld [vmem:[#allocation2 + $0x88] sm:$0x3]
        %v656 = vld [vmem:[#allocation2 + $0x90] sm:$0xff]
        %v657 = vld [vmem:[#allocation2 + $0x98] sm:$0xff]
        %v658 = vld [vmem:[#allocation2 + $0xa0] sm:$0x3]
        %v659 = vld [vmem:[#allocation2 + $0xa8] sm:$0xff]
        %v660 = vld [vmem:[#allocation2 + $0xb0] sm:$0xff]
        %v661 = vld [vmem:[#allocation2 + $0xb8] sm:$0x3]
        %v662 = vld [vmem:[#allocation2 + $0xc0] sm:$0xff]
        %v663 = vld [vmem:[#allocation2 + $0xc8] sm:$0xff]
        %v664 = vld [vmem:[#allocation2 + $0xd0] sm:$0x3]
        %v665 = vld [vmem:[#allocation2 + $0xd8] sm:$0xff]
        %v666 = vld [vmem:[#allocation2 + $0xe0] sm:$0xff]
        %v667 = vld [vmem:[#allocation2 + $0xe8] sm:$0x3]
        %v668 = vld [vmem:[#allocation2 + $0xf0] sm:$0xff]
        %v669 = vld [vmem:[#allocation2 + $0xf8] sm:$0xff]
        %v670 = vld [vmem:[#allocation2 + $0x100] sm:$0x3]
        %v671 = vld [vmem:[#allocation2 + $0x108] sm:$0xff]
        %v672 = vld [vmem:[#allocation2 + $0x110] sm:$0xff]
        %v673 = vld [vmem:[#allocation2 + $0x118] sm:$0x3]
        %v674 = vld [vmem:[#allocation2 + $0x120] sm:$0xff]
        %v675 = vld [vmem:[#allocation2 + $0x128] sm:$0xff]
        %v676 = vld [vmem:[#allocation2 + $0x130] sm:$0x3]
        %v677 = vld [vmem:[#allocation2 + $0x138] sm:$0xff]
        %v678 = vld [vmem:[#allocation2 + $0x140] sm:$0xff]
        %v679 = vld [vmem:[#allocation2 + $0x148] sm:$0x3]
        %v680 = vld [vmem:[#allocation2 + $0x150] sm:$0xff]
        %v681 = vld [vmem:[#allocation2 + $0x158] sm:$0xff]
        %v682 = vld [vmem:[#allocation2 + $0x160] sm:$0x3]
        %v683 = vld [vmem:[#allocation2 + $0x168] sm:$0xff]
        %v684 = vld [vmem:[#allocation2 + $0x170] sm:$0xff]
        %v685 = vld [vmem:[#allocation2 + $0x178] sm:$0x3]
        %v686 = vld [vmem:[#allocation2 + $0x180] sm:$0xff]
        %v687 = vld [vmem:[#allocation2 + $0x188] sm:$0xff]
        %v688 = vld [vmem:[#allocation2 + $0x190] sm:$0x3]
        %v689 = vld [vmem:[#allocation2 + $0x198] sm:$0xff]
        %v690 = vld [vmem:[#allocation2 + $0x1a0] sm:$0xff]
        %v691 = vld [vmem:[#allocation2 + $0x1a8] sm:$0x3]
        %vm740 = vcmask 1046528
        %v741 = vrot.slane %v638, 1
        %v742 = vrot.slane %v639, 1
        %v743 = vsel %vm740, %v741, %v742
        %v744 = vrot.slane %v640, 1
        %v745 = vsel %vm740, %v742, %v744
        %v746 = vrot.slane %v641, 1
        %v747 = vrot.slane %v642, 1
        %v748 = vsel %vm740, %v746, %v747
        %v749 = vrot.slane %v643, 1
        %v750 = vsel %vm740, %v747, %v749
        %v751 = vrot.slane %v644, 1
        %v752 = vrot.slane %v645, 1
        %v753 = vsel %vm740, %v751, %v752
        %v754 = vrot.slane %v646, 1
        %v755 = vsel %vm740, %v752, %v754
        %v756 = vrot.slane %v647, 1
        %v757 = vrot.slane %v648, 1
        %v758 = vsel %vm740, %v756, %v757
        %v759 = vrot.slane %v649, 1
        %v760 = vsel %vm740, %v757, %v759
        %v761 = vrot.slane %v650, 1
        %v762 = vrot.slane %v651, 1
        %v763 = vsel %vm740, %v761, %v762
        %v764 = vrot.slane %v652, 1
        %v765 = vsel %vm740, %v762, %v764
        %v766 = vrot.slane %v653, 1
        %v767 = vrot.slane %v654, 1
        %v768 = vsel %vm740, %v766, %v767
        %v769 = vrot.slane %v655, 1
        %v770 = vsel %vm740, %v767, %v769
        %v771 = vrot.slane %v656, 1
        %v772 = vrot.slane %v657, 1
        %v773 = vsel %vm740, %v771, %v772
        %v774 = vrot.slane %v658, 1
        %v775 = vsel %vm740, %v772, %v774
        %v776 = vrot.slane %v659, 1
        %v777 = vrot.slane %v660, 1
        %v778 = vsel %vm740, %v776, %v777
        %v779 = vrot.slane %v661, 1
        %v780 = vsel %vm740, %v777, %v779
        %v781 = vrot.slane %v662, 1
        %v782 = vrot.slane %v663, 1
        %v783 = vsel %vm740, %v781, %v782
        %v784 = vrot.slane %v664, 1
        %v785 = vsel %vm740, %v782, %v784
        %v786 = vrot.slane %v665, 1
        %v787 = vrot.slane %v666, 1
        %v788 = vsel %vm740, %v786, %v787
        %v789 = vrot.slane %v667, 1
        %v790 = vsel %vm740, %v787, %v789
        %v791 = vrot.slane %v668, 1
        %v792 = vrot.slane %v669, 1
        %v793 = vsel %vm740, %v791, %v792
        %v794 = vrot.slane %v670, 1
        %v795 = vsel %vm740, %v792, %v794
        %v796 = vrot.slane %v671, 1
        %v797 = vrot.slane %v672, 1
        %v798 = vsel %vm740, %v796, %v797
        %v799 = vrot.slane %v673, 1
        %v800 = vsel %vm740, %v797, %v799
        %v801 = vrot.slane %v674, 1
        %v802 = vrot.slane %v675, 1
        %v803 = vsel %vm740, %v801, %v802
        %v804 = vrot.slane %v676, 1
        %v805 = vsel %vm740, %v802, %v804
        %v806 = vrot.slane %v677, 1
        %v807 = vrot.slane %v678, 1
        %v808 = vsel %vm740, %v806, %v807
        %v809 = vrot.slane %v679, 1
        %v810 = vsel %vm740, %v807, %v809
        %v811 = vrot.slane %v680, 1
        %v812 = vrot.slane %v681, 1
        %v813 = vsel %vm740, %v811, %v812
        %v814 = vrot.slane %v682, 1
        %v815 = vsel %vm740, %v812, %v814
        %v816 = vrot.slane %v683, 1
        %v817 = vrot.slane %v684, 1
        %v818 = vsel %vm740, %v816, %v817
        %v819 = vrot.slane %v685, 1
        %v820 = vsel %vm740, %v817, %v819
        %821 = vrot.lane.b32.xlu0 %v743, 8
        %v822 = vpop.permute.xlu0 %821
        %823 = vrot.lane.b32.xlu0 %v745, 8
        %v824 = vpop.permute.xlu0 %823
        %825 = vrot.lane.b32.xlu0 %v748, 8
        %v826 = vpop.permute.xlu0 %825
        %827 = vrot.lane.b32.xlu0 %v750, 8
        %v828 = vpop.permute.xlu0 %827
        %829 = vrot.lane.b32.xlu0 %v753, 8
        %v830 = vpop.permute.xlu0 %829
        %831 = vrot.lane.b32.xlu0 %v755, 8
        %v832 = vpop.permute.xlu0 %831
        %833 = vrot.lane.b32.xlu0 %v758, 8
        %v834 = vpop.permute.xlu0 %833
        %835 = vrot.lane.b32.xlu0 %v760, 8
        %v836 = vpop.permute.xlu0 %835
        %837 = vrot.lane.b32.xlu0 %v763, 8
        %v838 = vpop.permute.xlu0 %837
        %839 = vrot.lane.b32.xlu0 %v765, 8
        %v840 = vpop.permute.xlu0 %839
        %841 = vrot.lane.b32.xlu0 %v768, 8
        %v842 = vpop.permute.xlu0 %841
        %843 = vrot.lane.b32.xlu0 %v770, 8
        %v844 = vpop.permute.xlu0 %843
        %845 = vrot.lane.b32.xlu0 %v773, 8
        %v846 = vpop.permute.xlu0 %845
        %847 = vrot.lane.b32.xlu0 %v775, 8
        %v848 = vpop.permute.xlu0 %847
        %849 = vrot.lane.b32.xlu0 %v778, 8
        %v850 = vpop.permute.xlu0 %849
        %851 = vrot.lane.b32.xlu0 %v780, 8
        %v852 = vpop.permute.xlu0 %851
        %853 = vrot.lane.b32.xlu0 %v783, 8
        %v854 = vpop.permute.xlu0 %853
        %855 = vrot.lane.b32.xlu0 %v785, 8
        %v856 = vpop.permute.xlu0 %855
        %857 = vrot.lane.b32.xlu0 %v788, 8
        %v858 = vpop.permute.xlu0 %857
        %859 = vrot.lane.b32.xlu0 %v790, 8
        %v860 = vpop.permute.xlu0 %859
        %861 = vrot.lane.b32.xlu0 %v793, 8
        %v862 = vpop.permute.xlu0 %861
        %863 = vrot.lane.b32.xlu0 %v795, 8
        %v864 = vpop.permute.xlu0 %863
        %865 = vrot.lane.b32.xlu0 %v798, 8
        %v866 = vpop.permute.xlu0 %865
        %867 = vrot.lane.b32.xlu0 %v800, 8
        %v868 = vpop.permute.xlu0 %867
        %869 = vrot.lane.b32.xlu0 %v803, 8
        %v870 = vpop.permute.xlu0 %869
        %871 = vrot.lane.b32.xlu0 %v805, 8
        %v872 = vpop.permute.xlu0 %871
        %873 = vrot.lane.b32.xlu0 %v808, 8
        %v874 = vpop.permute.xlu0 %873
        %875 = vrot.lane.b32.xlu0 %v810, 8
        %v876 = vpop.permute.xlu0 %875
        %877 = vrot.lane.b32.xlu0 %v813, 8
        %v878 = vpop.permute.xlu0 %877
        %879 = vrot.lane.b32.xlu0 %v815, 8
        %v880 = vpop.permute.xlu0 %879
        %881 = vrot.lane.b32.xlu0 %v818, 8
        %v882 = vpop.permute.xlu0 %881
        %883 = vrot.lane.b32.xlu0 %v820, 8
        %v884 = vpop.permute.xlu0 %883
        %vm917 = vcmask 1045504
        %v918 = vrot.slane %v638, 2
        %v919 = vrot.slane %v639, 2
        %v920 = vsel %vm917, %v918, %v919
        %v921 = vrot.slane %v640, 2
        %v922 = vsel %vm917, %v919, %v921
        %v923 = vrot.slane %v641, 2
        %v924 = vrot.slane %v642, 2
        %v925 = vsel %vm917, %v923, %v924
        %v926 = vrot.slane %v643, 2
        %v927 = vsel %vm917, %v924, %v926
        %v928 = vrot.slane %v644, 2
        %v929 = vrot.slane %v645, 2
        %v930 = vsel %vm917, %v928, %v929
        %v931 = vrot.slane %v646, 2
        %v932 = vsel %vm917, %v929, %v931
        %v933 = vrot.slane %v647, 2
        %v934 = vrot.slane %v648, 2
        %v935 = vsel %vm917, %v933, %v934
        %v936 = vrot.slane %v649, 2
        %v937 = vsel %vm917, %v934, %v936
        %v938 = vrot.slane %v650, 2
        %v939 = vrot.slane %v651, 2
        %v940 = vsel %vm917, %v938, %v939
        %v941 = vrot.slane %v652, 2
        %v942 = vsel %vm917, %v939, %v941
        %v943 = vrot.slane %v653, 2
        %v944 = vrot.slane %v654, 2
        %v945 = vsel %vm917, %v943, %v944
        %v946 = vrot.slane %v655, 2
        %v947 = vsel %vm917, %v944, %v946
        %v948 = vrot.slane %v656, 2
        %v949 = vrot.slane %v657, 2
        %v950 = vsel %vm917, %v948, %v949
        %v951 = vrot.slane %v658, 2
        %v952 = vsel %vm917, %v949, %v951
        %v953 = vrot.slane %v659, 2
        %v954 = vrot.slane %v660, 2
        %v955 = vsel %vm917, %v953, %v954
        %v956 = vrot.slane %v661, 2
        %v957 = vsel %vm917, %v954, %v956
        %v958 = vrot.slane %v662, 2
        %v959 = vrot.slane %v663, 2
        %v960 = vsel %vm917, %v958, %v959
        %v961 = vrot.slane %v664, 2
        %v962 = vsel %vm917, %v959, %v961
        %v963 = vrot.slane %v665, 2
        %v964 = vrot.slane %v666, 2
        %v965 = vsel %vm917, %v963, %v964
        %v966 = vrot.slane %v667, 2
        %v967 = vsel %vm917, %v964, %v966
        %v968 = vrot.slane %v668, 2
        %v969 = vrot.slane %v669, 2
        %v970 = vsel %vm917, %v968, %v969
        %v971 = vrot.slane %v670, 2
        %v972 = vsel %vm917, %v969, %v971
        %v973 = vrot.slane %v671, 2
        %v974 = vrot.slane %v672, 2
        %v975 = vsel %vm917, %v973, %v974
        %v976 = vrot.slane %v673, 2
        %v977 = vsel %vm917, %v974, %v976
        %v978 = vrot.slane %v674, 2
        %v979 = vrot.slane %v675, 2
        %v980 = vsel %vm917, %v978, %v979
        %v981 = vrot.slane %v676, 2
        %v982 = vsel %vm917, %v979, %v981
        %v983 = vrot.slane %v677, 2
        %v984 = vrot.slane %v678, 2
        %v985 = vsel %vm917, %v983, %v984
        %v986 = vrot.slane %v679, 2
        %v987 = vsel %vm917, %v984, %v986
        %v988 = vrot.slane %v680, 2
        %v989 = vrot.slane %v681, 2
        %v990 = vsel %vm917, %v988, %v989
        %v991 = vrot.slane %v682, 2
        %v992 = vsel %vm917, %v989, %v991
        %v993 = vrot.slane %v683, 2
        %v994 = vrot.slane %v684, 2
        %v995 = vsel %vm917, %v993, %v994
        %v996 = vrot.slane %v685, 2
        %v997 = vsel %vm917, %v994, %v996
        %998 = vrot.lane.b32.xlu0 %v920, 16
        %v999 = vpop.permute.xlu0 %998
        %1000 = vrot.lane.b32.xlu0 %v922, 16
        %v1001 = vpop.permute.xlu0 %1000
        %1002 = vrot.lane.b32.xlu0 %v925, 16
        %v1003 = vpop.permute.xlu0 %1002
        %1004 = vrot.lane.b32.xlu0 %v927, 16
        %v1005 = vpop.permute.xlu0 %1004
        %1006 = vrot.lane.b32.xlu0 %v930, 16
        %v1007 = vpop.permute.xlu0 %1006
        %1008 = vrot.lane.b32.xlu0 %v932, 16
        %v1009 = vpop.permute.xlu0 %1008
        %1010 = vrot.lane.b32.xlu0 %v935, 16
        %v1011 = vpop.permute.xlu0 %1010
        %1012 = vrot.lane.b32.xlu0 %v937, 16
        %v1013 = vpop.permute.xlu0 %1012
        %1014 = vrot.lane.b32.xlu0 %v940, 16
        %v1015 = vpop.permute.xlu0 %1014
        %1016 = vrot.lane.b32.xlu0 %v942, 16
        %v1017 = vpop.permute.xlu0 %1016
        %1018 = vrot.lane.b32.xlu0 %v945, 16
        %v1019 = vpop.permute.xlu0 %1018
        %1020 = vrot.lane.b32.xlu0 %v947, 16
        %v1021 = vpop.permute.xlu0 %1020
        %1022 = vrot.lane.b32.xlu0 %v950, 16
        %v1023 = vpop.permute.xlu0 %1022
        %1024 = vrot.lane.b32.xlu0 %v952, 16
        %v1025 = vpop.permute.xlu0 %1024
        %1026 = vrot.lane.b32.xlu0 %v955, 16
        %v1027 = vpop.permute.xlu0 %1026
        %1028 = vrot.lane.b32.xlu0 %v957, 16
        %v1029 = vpop.permute.xlu0 %1028
        %1030 = vrot.lane.b32.xlu0 %v960, 16
        %v1031 = vpop.permute.xlu0 %1030
        %1032 = vrot.lane.b32.xlu0 %v962, 16
        %v1033 = vpop.permute.xlu0 %1032
        %1034 = vrot.lane.b32.xlu0 %v965, 16
        %v1035 = vpop.permute.xlu0 %1034
        %1036 = vrot.lane.b32.xlu0 %v967, 16
        %v1037 = vpop.permute.xlu0 %1036
        %1038 = vrot.lane.b32.xlu0 %v970, 16
        %v1039 = vpop.permute.xlu0 %1038
        %1040 = vrot.lane.b32.xlu0 %v972, 16
        %v1041 = vpop.permute.xlu0 %1040
        %1042 = vrot.lane.b32.xlu0 %v975, 16
        %v1043 = vpop.permute.xlu0 %1042
        %1044 = vrot.lane.b32.xlu0 %v977, 16
        %v1045 = vpop.permute.xlu0 %1044
        %1046 = vrot.lane.b32.xlu0 %v980, 16
        %v1047 = vpop.permute.xlu0 %1046
        %1048 = vrot.lane.b32.xlu0 %v982, 16
        %v1049 = vpop.permute.xlu0 %1048
        %1050 = vrot.lane.b32.xlu0 %v985, 16
        %v1051 = vpop.permute.xlu0 %1050
        %1052 = vrot.lane.b32.xlu0 %v987, 16
        %v1053 = vpop.permute.xlu0 %1052
        %1054 = vrot.lane.b32.xlu0 %v990, 16
        %v1055 = vpop.permute.xlu0 %1054
        %1056 = vrot.lane.b32.xlu0 %v992, 16
        %v1057 = vpop.permute.xlu0 %1056
        %1058 = vrot.lane.b32.xlu0 %v995, 16
        %v1059 = vpop.permute.xlu0 %1058
        %1060 = vrot.lane.b32.xlu0 %v997, 16
        %v1061 = vpop.permute.xlu0 %1060
        %1096 = vrot.lane.b32.xlu0 %v641, 24
        %v1097 = vpop.permute.xlu0 %1096
        %1098 = vrot.lane.b32.xlu0 %v642, 24
        %v1099 = vpop.permute.xlu0 %1098
        %1100 = vrot.lane.b32.xlu0 %v644, 24
        %v1101 = vpop.permute.xlu0 %1100
        %1102 = vrot.lane.b32.xlu0 %v645, 24
        %v1103 = vpop.permute.xlu0 %1102
        %1104 = vrot.lane.b32.xlu0 %v647, 24
        %v1105 = vpop.permute.xlu0 %1104
        %1106 = vrot.lane.b32.xlu0 %v648, 24
        %v1107 = vpop.permute.xlu0 %1106
        %1108 = vrot.lane.b32.xlu0 %v650, 24
        %v1109 = vpop.permute.xlu0 %1108
        %1110 = vrot.lane.b32.xlu0 %v651, 24
        %v1111 = vpop.permute.xlu0 %1110
        %1112 = vrot.lane.b32.xlu0 %v653, 24
        %v1113 = vpop.permute.xlu0 %1112
        %1114 = vrot.lane.b32.xlu0 %v654, 24
        %v1115 = vpop.permute.xlu0 %1114
        %1116 = vrot.lane.b32.xlu0 %v656, 24
        %v1117 = vpop.permute.xlu0 %1116
        %1118 = vrot.lane.b32.xlu0 %v657, 24
        %v1119 = vpop.permute.xlu0 %1118
        %1120 = vrot.lane.b32.xlu0 %v659, 24
        %v1121 = vpop.permute.xlu0 %1120
        %1122 = vrot.lane.b32.xlu0 %v660, 24
        %v1123 = vpop.permute.xlu0 %1122
        %1124 = vrot.lane.b32.xlu0 %v662, 24
        %v1125 = vpop.permute.xlu0 %1124
        %1126 = vrot.lane.b32.xlu0 %v663, 24
        %v1127 = vpop.permute.xlu0 %1126
        %1128 = vrot.lane.b32.xlu0 %v665, 24
        %v1129 = vpop.permute.xlu0 %1128
        %1130 = vrot.lane.b32.xlu0 %v666, 24
        %v1131 = vpop.permute.xlu0 %1130
        %1132 = vrot.lane.b32.xlu0 %v668, 24
        %v1133 = vpop.permute.xlu0 %1132
        %1134 = vrot.lane.b32.xlu0 %v669, 24
        %v1135 = vpop.permute.xlu0 %1134
        %1136 = vrot.lane.b32.xlu0 %v671, 24
        %v1137 = vpop.permute.xlu0 %1136
        %1138 = vrot.lane.b32.xlu0 %v672, 24
        %v1139 = vpop.permute.xlu0 %1138
        %1140 = vrot.lane.b32.xlu0 %v674, 24
        %v1141 = vpop.permute.xlu0 %1140
        %1142 = vrot.lane.b32.xlu0 %v675, 24
        %v1143 = vpop.permute.xlu0 %1142
        %1144 = vrot.lane.b32.xlu0 %v677, 24
        %v1145 = vpop.permute.xlu0 %1144
        %1146 = vrot.lane.b32.xlu0 %v678, 24
        %v1147 = vpop.permute.xlu0 %1146
        %1148 = vrot.lane.b32.xlu0 %v680, 24
        %v1149 = vpop.permute.xlu0 %1148
        %1150 = vrot.lane.b32.xlu0 %v681, 24
        %v1151 = vpop.permute.xlu0 %1150
        %1152 = vrot.lane.b32.xlu0 %v683, 24
        %v1153 = vpop.permute.xlu0 %1152
        %1154 = vrot.lane.b32.xlu0 %v684, 24
        %v1155 = vpop.permute.xlu0 %1154
        %1156 = vrot.lane.b32.xlu0 %v686, 24
        %v1157 = vpop.permute.xlu0 %1156
        %1158 = vrot.lane.b32.xlu0 %v687, 24
        %v1159 = vpop.permute.xlu0 %1158
        %v1193 = vrot.slane %v686, 1
        %v1194 = vrot.slane %v687, 1
        %v1195 = vsel %vm740, %v1193, %v1194
        %v1196 = vrot.slane %v688, 1
        %v1197 = vsel %vm740, %v1194, %v1196
        %1198 = vrot.lane.b32.xlu0 %v748, 32
        %v1199 = vpop.permute.xlu0 %1198
        %1200 = vrot.lane.b32.xlu0 %v750, 32
        %v1201 = vpop.permute.xlu0 %1200
        %1202 = vrot.lane.b32.xlu0 %v753, 32
        %v1203 = vpop.permute.xlu0 %1202
        %1204 = vrot.lane.b32.xlu0 %v755, 32
        %v1205 = vpop.permute.xlu0 %1204
        %1206 = vrot.lane.b32.xlu0 %v758, 32
        %v1207 = vpop.permute.xlu0 %1206
        %1208 = vrot.lane.b32.xlu0 %v760, 32
        %v1209 = vpop.permute.xlu0 %1208
        %1210 = vrot.lane.b32.xlu0 %v763, 32
        %v1211 = vpop.permute.xlu0 %1210
        %1212 = vrot.lane.b32.xlu0 %v765, 32
        %v1213 = vpop.permute.xlu0 %1212
        %1214 = vrot.lane.b32.xlu0 %v768, 32
        %v1215 = vpop.permute.xlu0 %1214
        %1216 = vrot.lane.b32.xlu0 %v770, 32
        %v1217 = vpop.permute.xlu0 %1216
        %1218 = vrot.lane.b32.xlu0 %v773, 32
        %v1219 = vpop.permute.xlu0 %1218
        %1220 = vrot.lane.b32.xlu0 %v775, 32
        %v1221 = vpop.permute.xlu0 %1220
        %1222 = vrot.lane.b32.xlu0 %v778, 32
        %v1223 = vpop.permute.xlu0 %1222
        %1224 = vrot.lane.b32.xlu0 %v780, 32
        %v1225 = vpop.permute.xlu0 %1224
        %1226 = vrot.lane.b32.xlu0 %v783, 32
        %v1227 = vpop.permute.xlu0 %1226
        %1228 = vrot.lane.b32.xlu0 %v785, 32
        %v1229 = vpop.permute.xlu0 %1228
        %1230 = vrot.lane.b32.xlu0 %v788, 32
        %v1231 = vpop.permute.xlu0 %1230
        %1232 = vrot.lane.b32.xlu0 %v790, 32
        %v1233 = vpop.permute.xlu0 %1232
        %1234 = vrot.lane.b32.xlu0 %v793, 32
        %v1235 = vpop.permute.xlu0 %1234
        %1236 = vrot.lane.b32.xlu0 %v795, 32
        %v1237 = vpop.permute.xlu0 %1236
        %1238 = vrot.lane.b32.xlu0 %v798, 32
        %v1239 = vpop.permute.xlu0 %1238
        %1240 = vrot.lane.b32.xlu0 %v800, 32
        %v1241 = vpop.permute.xlu0 %1240
        %1242 = vrot.lane.b32.xlu0 %v803, 32
        %v1243 = vpop.permute.xlu0 %1242
        %1244 = vrot.lane.b32.xlu0 %v805, 32
        %v1245 = vpop.permute.xlu0 %1244
        %1246 = vrot.lane.b32.xlu0 %v808, 32
        %v1247 = vpop.permute.xlu0 %1246
        %1248 = vrot.lane.b32.xlu0 %v810, 32
        %v1249 = vpop.permute.xlu0 %1248
        %1250 = vrot.lane.b32.xlu0 %v813, 32
        %v1251 = vpop.permute.xlu0 %1250
        %1252 = vrot.lane.b32.xlu0 %v815, 32
        %v1253 = vpop.permute.xlu0 %1252
        %1254 = vrot.lane.b32.xlu0 %v818, 32
        %v1255 = vpop.permute.xlu0 %1254
        %1256 = vrot.lane.b32.xlu0 %v820, 32
        %v1257 = vpop.permute.xlu0 %1256
        %1258 = vrot.lane.b32.xlu0 %v1195, 32
        %v1259 = vpop.permute.xlu0 %1258
        %1260 = vrot.lane.b32.xlu0 %v1197, 32
        %v1261 = vpop.permute.xlu0 %1260
        %v1294 = vrot.slane %v686, 2
        %v1295 = vrot.slane %v687, 2
        %v1296 = vsel %vm917, %v1294, %v1295
        %v1297 = vrot.slane %v688, 2
        %v1298 = vsel %vm917, %v1295, %v1297
        %1299 = vrot.lane.b32.xlu0 %v925, 40
        %v1300 = vpop.permute.xlu0 %1299
        %1301 = vrot.lane.b32.xlu0 %v927, 40
        %v1302 = vpop.permute.xlu0 %1301
        %1303 = vrot.lane.b32.xlu0 %v930, 40
        %v1304 = vpop.permute.xlu0 %1303
        %1305 = vrot.lane.b32.xlu0 %v932, 40
        %v1306 = vpop.permute.xlu0 %1305
        %1307 = vrot.lane.b32.xlu0 %v935, 40
        %v1308 = vpop.permute.xlu0 %1307
        %1309 = vrot.lane.b32.xlu0 %v937, 40
        %v1310 = vpop.permute.xlu0 %1309
        %1311 = vrot.lane.b32.xlu0 %v940, 40
        %v1312 = vpop.permute.xlu0 %1311
        %1313 = vrot.lane.b32.xlu0 %v942, 40
        %v1314 = vpop.permute.xlu0 %1313
        %1315 = vrot.lane.b32.xlu0 %v945, 40
        %v1316 = vpop.permute.xlu0 %1315
        %1317 = vrot.lane.b32.xlu0 %v947, 40
        %v1318 = vpop.permute.xlu0 %1317
        %1319 = vrot.lane.b32.xlu0 %v950, 40
        %v1320 = vpop.permute.xlu0 %1319
        %1321 = vrot.lane.b32.xlu0 %v952, 40
        %v1322 = vpop.permute.xlu0 %1321
        %1323 = vrot.lane.b32.xlu0 %v955, 40
        %v1324 = vpop.permute.xlu0 %1323
        %1325 = vrot.lane.b32.xlu0 %v957, 40
        %v1326 = vpop.permute.xlu0 %1325
        %1327 = vrot.lane.b32.xlu0 %v960, 40
        %v1328 = vpop.permute.xlu0 %1327
        %1329 = vrot.lane.b32.xlu0 %v962, 40
        %v1330 = vpop.permute.xlu0 %1329
        %1331 = vrot.lane.b32.xlu0 %v965, 40
        %v1332 = vpop.permute.xlu0 %1331
        %1333 = vrot.lane.b32.xlu0 %v967, 40
        %v1334 = vpop.permute.xlu0 %1333
        %1335 = vrot.lane.b32.xlu0 %v970, 40
        %v1336 = vpop.permute.xlu0 %1335
        %1337 = vrot.lane.b32.xlu0 %v972, 40
        %v1338 = vpop.permute.xlu0 %1337
        %1339 = vrot.lane.b32.xlu0 %v975, 40
        %v1340 = vpop.permute.xlu0 %1339
        %1341 = vrot.lane.b32.xlu0 %v977, 40
        %v1342 = vpop.permute.xlu0 %1341
        %1343 = vrot.lane.b32.xlu0 %v980, 40
        %v1344 = vpop.permute.xlu0 %1343
        %1345 = vrot.lane.b32.xlu0 %v982, 40
        %v1346 = vpop.permute.xlu0 %1345
        %1347 = vrot.lane.b32.xlu0 %v985, 40
        %v1348 = vpop.permute.xlu0 %1347
        %1349 = vrot.lane.b32.xlu0 %v987, 40
        %v1350 = vpop.permute.xlu0 %1349
        %1351 = vrot.lane.b32.xlu0 %v990, 40
        %v1352 = vpop.permute.xlu0 %1351
        %1353 = vrot.lane.b32.xlu0 %v992, 40
        %v1354 = vpop.permute.xlu0 %1353
        %1355 = vrot.lane.b32.xlu0 %v995, 40
        %v1356 = vpop.permute.xlu0 %1355
        %1357 = vrot.lane.b32.xlu0 %v997, 40
        %v1358 = vpop.permute.xlu0 %1357
        %1359 = vrot.lane.b32.xlu0 %v1296, 40
        %v1360 = vpop.permute.xlu0 %1359
        %1361 = vrot.lane.b32.xlu0 %v1298, 40
        %v1362 = vpop.permute.xlu0 %1361
        %1397 = vrot.lane.b32.xlu0 %v644, 48
        %v1398 = vpop.permute.xlu0 %1397
        %1399 = vrot.lane.b32.xlu0 %v645, 48
        %v1400 = vpop.permute.xlu0 %1399
        %1401 = vrot.lane.b32.xlu0 %v647, 48
        %v1402 = vpop.permute.xlu0 %1401
        %1403 = vrot.lane.b32.xlu0 %v648, 48
        %v1404 = vpop.permute.xlu0 %1403
        %1405 = vrot.lane.b32.xlu0 %v650, 48
        %v1406 = vpop.permute.xlu0 %1405
        %1407 = vrot.lane.b32.xlu0 %v651, 48
        %v1408 = vpop.permute.xlu0 %1407
        %1409 = vrot.lane.b32.xlu0 %v653, 48
        %v1410 = vpop.permute.xlu0 %1409
        %1411 = vrot.lane.b32.xlu0 %v654, 48
        %v1412 = vpop.permute.xlu0 %1411
        %1413 = vrot.lane.b32.xlu0 %v656, 48
        %v1414 = vpop.permute.xlu0 %1413
        %1415 = vrot.lane.b32.xlu0 %v657, 48
        %v1416 = vpop.permute.xlu0 %1415
        %1417 = vrot.lane.b32.xlu0 %v659, 48
        %v1418 = vpop.permute.xlu0 %1417
        %1419 = vrot.lane.b32.xlu0 %v660, 48
        %v1420 = vpop.permute.xlu0 %1419
        %1421 = vrot.lane.b32.xlu0 %v662, 48
        %v1422 = vpop.permute.xlu0 %1421
        %1423 = vrot.lane.b32.xlu0 %v663, 48
        %v1424 = vpop.permute.xlu0 %1423
        %1425 = vrot.lane.b32.xlu0 %v665, 48
        %v1426 = vpop.permute.xlu0 %1425
        %1427 = vrot.lane.b32.xlu0 %v666, 48
        %v1428 = vpop.permute.xlu0 %1427
        %1429 = vrot.lane.b32.xlu0 %v668, 48
        %v1430 = vpop.permute.xlu0 %1429
        %1431 = vrot.lane.b32.xlu0 %v669, 48
        %v1432 = vpop.permute.xlu0 %1431
        %1433 = vrot.lane.b32.xlu0 %v671, 48
        %v1434 = vpop.permute.xlu0 %1433
        %1435 = vrot.lane.b32.xlu0 %v672, 48
        %v1436 = vpop.permute.xlu0 %1435
        %1437 = vrot.lane.b32.xlu0 %v674, 48
        %v1438 = vpop.permute.xlu0 %1437
        %1439 = vrot.lane.b32.xlu0 %v675, 48
        %v1440 = vpop.permute.xlu0 %1439
        %1441 = vrot.lane.b32.xlu0 %v677, 48
        %v1442 = vpop.permute.xlu0 %1441
        %1443 = vrot.lane.b32.xlu0 %v678, 48
        %v1444 = vpop.permute.xlu0 %1443
        %1445 = vrot.lane.b32.xlu0 %v680, 48
        %v1446 = vpop.permute.xlu0 %1445
        %1447 = vrot.lane.b32.xlu0 %v681, 48
        %v1448 = vpop.permute.xlu0 %1447
        %1449 = vrot.lane.b32.xlu0 %v683, 48
        %v1450 = vpop.permute.xlu0 %1449
        %1451 = vrot.lane.b32.xlu0 %v684, 48
        %v1452 = vpop.permute.xlu0 %1451
        %1453 = vrot.lane.b32.xlu0 %v686, 48
        %v1454 = vpop.permute.xlu0 %1453
        %1455 = vrot.lane.b32.xlu0 %v687, 48
        %v1456 = vpop.permute.xlu0 %1455
        %1457 = vrot.lane.b32.xlu0 %v689, 48
        %v1458 = vpop.permute.xlu0 %1457
        %1459 = vrot.lane.b32.xlu0 %v690, 48
        %v1460 = vpop.permute.xlu0 %1459
        %v1494 = vrot.slane %v689, 1
        %v1495 = vrot.slane %v690, 1
        %v1496 = vsel %vm740, %v1494, %v1495
        %v1497 = vrot.slane %v691, 1
        %v1498 = vsel %vm740, %v1495, %v1497
        %1499 = vrot.lane.b32.xlu0 %v753, 56
        %v1500 = vpop.permute.xlu0 %1499
        %1501 = vrot.lane.b32.xlu0 %v755, 56
        %v1502 = vpop.permute.xlu0 %1501
        %1503 = vrot.lane.b32.xlu0 %v758, 56
        %v1504 = vpop.permute.xlu0 %1503
        %1505 = vrot.lane.b32.xlu0 %v760, 56
        %v1506 = vpop.permute.xlu0 %1505
        %1507 = vrot.lane.b32.xlu0 %v763, 56
        %v1508 = vpop.permute.xlu0 %1507
        %1509 = vrot.lane.b32.xlu0 %v765, 56
        %v1510 = vpop.permute.xlu0 %1509
        %1511 = vrot.lane.b32.xlu0 %v768, 56
        %v1512 = vpop.permute.xlu0 %1511
        %1513 = vrot.lane.b32.xlu0 %v770, 56
        %v1514 = vpop.permute.xlu0 %1513
        %1515 = vrot.lane.b32.xlu0 %v773, 56
        %v1516 = vpop.permute.xlu0 %1515
        %1517 = vrot.lane.b32.xlu0 %v775, 56
        %v1518 = vpop.permute.xlu0 %1517
        %1519 = vrot.lane.b32.xlu0 %v778, 56
        %v1520 = vpop.permute.xlu0 %1519
        %1521 = vrot.lane.b32.xlu0 %v780, 56
        %v1522 = vpop.permute.xlu0 %1521
        %1523 = vrot.lane.b32.xlu0 %v783, 56
        %v1524 = vpop.permute.xlu0 %1523
        %1525 = vrot.lane.b32.xlu0 %v785, 56
        %v1526 = vpop.permute.xlu0 %1525
        %1527 = vrot.lane.b32.xlu0 %v788, 56
        %v1528 = vpop.permute.xlu0 %1527
        %1529 = vrot.lane.b32.xlu0 %v790, 56
        %v1530 = vpop.permute.xlu0 %1529
        %1531 = vrot.lane.b32.xlu0 %v793, 56
        %v1532 = vpop.permute.xlu0 %1531
        %1533 = vrot.lane.b32.xlu0 %v795, 56
        %v1534 = vpop.permute.xlu0 %1533
        %1535 = vrot.lane.b32.xlu0 %v798, 56
        %v1536 = vpop.permute.xlu0 %1535
        %1537 = vrot.lane.b32.xlu0 %v800, 56
        %v1538 = vpop.permute.xlu0 %1537
        %1539 = vrot.lane.b32.xlu0 %v803, 56
        %v1540 = vpop.permute.xlu0 %1539
        %1541 = vrot.lane.b32.xlu0 %v805, 56
        %v1542 = vpop.permute.xlu0 %1541
        %1543 = vrot.lane.b32.xlu0 %v808, 56
        %v1544 = vpop.permute.xlu0 %1543
        %1545 = vrot.lane.b32.xlu0 %v810, 56
        %v1546 = vpop.permute.xlu0 %1545
        %1547 = vrot.lane.b32.xlu0 %v813, 56
        %v1548 = vpop.permute.xlu0 %1547
        %1549 = vrot.lane.b32.xlu0 %v815, 56
        %v1550 = vpop.permute.xlu0 %1549
        %1551 = vrot.lane.b32.xlu0 %v818, 56
        %v1552 = vpop.permute.xlu0 %1551
        %1553 = vrot.lane.b32.xlu0 %v820, 56
        %v1554 = vpop.permute.xlu0 %1553
        %1555 = vrot.lane.b32.xlu0 %v1195, 56
        %v1556 = vpop.permute.xlu0 %1555
        %1557 = vrot.lane.b32.xlu0 %v1197, 56
        %v1558 = vpop.permute.xlu0 %1557
        %1559 = vrot.lane.b32.xlu0 %v1496, 56
        %v1560 = vpop.permute.xlu0 %1559
        %1561 = vrot.lane.b32.xlu0 %v1498, 56
        %v1562 = vpop.permute.xlu0 %1561
        %v1595 = vrot.slane %v689, 2
        %v1596 = vrot.slane %v690, 2
        %v1597 = vsel %vm917, %v1595, %v1596
        %v1598 = vrot.slane %v691, 2
        %v1599 = vsel %vm917, %v1596, %v1598
        %1600 = vrot.lane.b32.xlu0 %v930, 64
        %v1601 = vpop.permute.xlu0 %1600
        %1602 = vrot.lane.b32.xlu0 %v932, 64
        %v1603 = vpop.permute.xlu0 %1602
        %1604 = vrot.lane.b32.xlu0 %v935, 64
        %v1605 = vpop.permute.xlu0 %1604
        %1606 = vrot.lane.b32.xlu0 %v937, 64
        %v1607 = vpop.permute.xlu0 %1606
        %1608 = vrot.lane.b32.xlu0 %v940, 64
        %v1609 = vpop.permute.xlu0 %1608
        %1610 = vrot.lane.b32.xlu0 %v942, 64
        %v1611 = vpop.permute.xlu0 %1610
        %1612 = vrot.lane.b32.xlu0 %v945, 64
        %v1613 = vpop.permute.xlu0 %1612
        %1614 = vrot.lane.b32.xlu0 %v947, 64
        %v1615 = vpop.permute.xlu0 %1614
        %1616 = vrot.lane.b32.xlu0 %v950, 64
        %v1617 = vpop.permute.xlu0 %1616
        %1618 = vrot.lane.b32.xlu0 %v952, 64
        %v1619 = vpop.permute.xlu0 %1618
        %1620 = vrot.lane.b32.xlu0 %v955, 64
        %v1621 = vpop.permute.xlu0 %1620
        %1622 = vrot.lane.b32.xlu0 %v957, 64
        %v1623 = vpop.permute.xlu0 %1622
        %1624 = vrot.lane.b32.xlu0 %v960, 64
        %v1625 = vpop.permute.xlu0 %1624
        %1626 = vrot.lane.b32.xlu0 %v962, 64
        %v1627 = vpop.permute.xlu0 %1626
        %1628 = vrot.lane.b32.xlu0 %v965, 64
        %v1629 = vpop.permute.xlu0 %1628
        %1630 = vrot.lane.b32.xlu0 %v967, 64
        %v1631 = vpop.permute.xlu0 %1630
        %1632 = vrot.lane.b32.xlu0 %v970, 64
        %v1633 = vpop.permute.xlu0 %1632
        %1634 = vrot.lane.b32.xlu0 %v972, 64
        %v1635 = vpop.permute.xlu0 %1634
        %1636 = vrot.lane.b32.xlu0 %v975, 64
        %v1637 = vpop.permute.xlu0 %1636
        %1638 = vrot.lane.b32.xlu0 %v977, 64
        %v1639 = vpop.permute.xlu0 %1638
        %1640 = vrot.lane.b32.xlu0 %v980, 64
        %v1641 = vpop.permute.xlu0 %1640
        %1642 = vrot.lane.b32.xlu0 %v982, 64
        %v1643 = vpop.permute.xlu0 %1642
        %1644 = vrot.lane.b32.xlu0 %v985, 64
        %v1645 = vpop.permute.xlu0 %1644
        %1646 = vrot.lane.b32.xlu0 %v987, 64
        %v1647 = vpop.permute.xlu0 %1646
        %1648 = vrot.lane.b32.xlu0 %v990, 64
        %v1649 = vpop.permute.xlu0 %1648
        %1650 = vrot.lane.b32.xlu0 %v992, 64
        %v1651 = vpop.permute.xlu0 %1650
        %1652 = vrot.lane.b32.xlu0 %v995, 64
        %v1653 = vpop.permute.xlu0 %1652
        %1654 = vrot.lane.b32.xlu0 %v997, 64
        %v1655 = vpop.permute.xlu0 %1654
        %1656 = vrot.lane.b32.xlu0 %v1296, 64
        %v1657 = vpop.permute.xlu0 %1656
        %1658 = vrot.lane.b32.xlu0 %v1298, 64
        %v1659 = vpop.permute.xlu0 %1658
        %1660 = vrot.lane.b32.xlu0 %v1597, 64
        %v1661 = vpop.permute.xlu0 %1660
        %1662 = vrot.lane.b32.xlu0 %v1599, 64
        %v1663 = vpop.permute.xlu0 %1662
        %v1696 = vsel %vm270, %v638, %v822
        %v1697 = vsel %vm270, %v639, %v824
        %v1698 = vsel %vm270, %v641, %v826
        %v1699 = vsel %vm270, %v642, %v828
        %v1700 = vsel %vm270, %v644, %v830
        %v1701 = vsel %vm270, %v645, %v832
        %v1702 = vsel %vm270, %v647, %v834
        %v1703 = vsel %vm270, %v648, %v836
        %v1704 = vsel %vm270, %v650, %v838
        %v1705 = vsel %vm270, %v651, %v840
        %v1706 = vsel %vm270, %v653, %v842
        %v1707 = vsel %vm270, %v654, %v844
        %v1708 = vsel %vm270, %v656, %v846
        %v1709 = vsel %vm270, %v657, %v848
        %v1710 = vsel %vm270, %v659, %v850
        %v1711 = vsel %vm270, %v660, %v852
        %v1712 = vsel %vm270, %v662, %v854
        %v1713 = vsel %vm270, %v663, %v856
        %v1714 = vsel %vm270, %v665, %v858
        %v1715 = vsel %vm270, %v666, %v860
        %v1716 = vsel %vm270, %v668, %v862
        %v1717 = vsel %vm270, %v669, %v864
        %v1718 = vsel %vm270, %v671, %v866
        %v1719 = vsel %vm270, %v672, %v868
        %v1720 = vsel %vm270, %v674, %v870
        %v1721 = vsel %vm270, %v675, %v872
        %v1722 = vsel %vm270, %v677, %v874
        %v1723 = vsel %vm270, %v678, %v876
        %v1724 = vsel %vm270, %v680, %v878
        %v1725 = vsel %vm270, %v681, %v880
        %v1726 = vsel %vm270, %v683, %v882
        %v1727 = vsel %vm270, %v684, %v884
        %vm1728 = vcmask 130048
        %v1729 = vsel %vm1728, %v1696, %v999
        %v1730 = vsel %vm1728, %v1697, %v1001
        %v1731 = vsel %vm1728, %v1698, %v1003
        %v1732 = vsel %vm1728, %v1699, %v1005
        %v1733 = vsel %vm1728, %v1700, %v1007
        %v1734 = vsel %vm1728, %v1701, %v1009
        %v1735 = vsel %vm1728, %v1702, %v1011
        %v1736 = vsel %vm1728, %v1703, %v1013
        %v1737 = vsel %vm1728, %v1704, %v1015
        %v1738 = vsel %vm1728, %v1705, %v1017
        %v1739 = vsel %vm1728, %v1706, %v1019
        %v1740 = vsel %vm1728, %v1707, %v1021
        %v1741 = vsel %vm1728, %v1708, %v1023
        %v1742 = vsel %vm1728, %v1709, %v1025
        %v1743 = vsel %vm1728, %v1710, %v1027
        %v1744 = vsel %vm1728, %v1711, %v1029
        %v1745 = vsel %vm1728, %v1712, %v1031
        %v1746 = vsel %vm1728, %v1713, %v1033
        %v1747 = vsel %vm1728, %v1714, %v1035
        %v1748 = vsel %vm1728, %v1715, %v1037
        %v1749 = vsel %vm1728, %v1716, %v1039
        %v1750 = vsel %vm1728, %v1717, %v1041
        %v1751 = vsel %vm1728, %v1718, %v1043
        %v1752 = vsel %vm1728, %v1719, %v1045
        %v1753 = vsel %vm1728, %v1720, %v1047
        %v1754 = vsel %vm1728, %v1721, %v1049
        %v1755 = vsel %vm1728, %v1722, %v1051
        %v1756 = vsel %vm1728, %v1723, %v1053
        %v1757 = vsel %vm1728, %v1724, %v1055
        %v1758 = vsel %vm1728, %v1725, %v1057
        %v1759 = vsel %vm1728, %v1726, %v1059
        %v1760 = vsel %vm1728, %v1727, %v1061
        %vm1761 = vcmask 195584
        %v1762 = vsel %vm1761, %v1729, %v1097
        %v1763 = vsel %vm1761, %v1730, %v1099
        %v1764 = vsel %vm1761, %v1731, %v1101
        %v1765 = vsel %vm1761, %v1732, %v1103
        %v1766 = vsel %vm1761, %v1733, %v1105
        %v1767 = vsel %vm1761, %v1734, %v1107
        %v1768 = vsel %vm1761, %v1735, %v1109
        %v1769 = vsel %vm1761, %v1736, %v1111
        %v1770 = vsel %vm1761, %v1737, %v1113
        %v1771 = vsel %vm1761, %v1738, %v1115
        %v1772 = vsel %vm1761, %v1739, %v1117
        %v1773 = vsel %vm1761, %v1740, %v1119
        %v1774 = vsel %vm1761, %v1741, %v1121
        %v1775 = vsel %vm1761, %v1742, %v1123
        %v1776 = vsel %vm1761, %v1743, %v1125
        %v1777 = vsel %vm1761, %v1744, %v1127
        %v1778 = vsel %vm1761, %v1745, %v1129
        %v1779 = vsel %vm1761, %v1746, %v1131
        %v1780 = vsel %vm1761, %v1747, %v1133
        %v1781 = vsel %vm1761, %v1748, %v1135
        %v1782 = vsel %vm1761, %v1749, %v1137
        %v1783 = vsel %vm1761, %v1750, %v1139
        %v1784 = vsel %vm1761, %v1751, %v1141
        %v1785 = vsel %vm1761, %v1752, %v1143
        %v1786 = vsel %vm1761, %v1753, %v1145
        %v1787 = vsel %vm1761, %v1754, %v1147
        %v1788 = vsel %vm1761, %v1755, %v1149
        %v1789 = vsel %vm1761, %v1756, %v1151
        %v1790 = vsel %vm1761, %v1757, %v1153
        %v1791 = vsel %vm1761, %v1758, %v1155
        %v1792 = vsel %vm1761, %v1759, %v1157
        %v1793 = vsel %vm1761, %v1760, %v1159
        %vm1794 = vcmask 261120
        %v1795 = vsel %vm1794, %v1762, %v1199
        %v1796 = vsel %vm1794, %v1763, %v1201
        %v1797 = vsel %vm1794, %v1764, %v1203
        %v1798 = vsel %vm1794, %v1765, %v1205
        %v1799 = vsel %vm1794, %v1766, %v1207
        %v1800 = vsel %vm1794, %v1767, %v1209
        %v1801 = vsel %vm1794, %v1768, %v1211
        %v1802 = vsel %vm1794, %v1769, %v1213
        %v1803 = vsel %vm1794, %v1770, %v1215
        %v1804 = vsel %vm1794, %v1771, %v1217
        %v1805 = vsel %vm1794, %v1772, %v1219
        %v1806 = vsel %vm1794, %v1773, %v1221
        %v1807 = vsel %vm1794, %v1774, %v1223
        %v1808 = vsel %vm1794, %v1775, %v1225
        %v1809 = vsel %vm1794, %v1776, %v1227
        %v1810 = vsel %vm1794, %v1777, %v1229
        %v1811 = vsel %vm1794, %v1778, %v1231
        %v1812 = vsel %vm1794, %v1779, %v1233
        %v1813 = vsel %vm1794, %v1780, %v1235
        %v1814 = vsel %vm1794, %v1781, %v1237
        %v1815 = vsel %vm1794, %v1782, %v1239
        %v1816 = vsel %vm1794, %v1783, %v1241
        %v1817 = vsel %vm1794, %v1784, %v1243
        %v1818 = vsel %vm1794, %v1785, %v1245
        %v1819 = vsel %vm1794, %v1786, %v1247
        %v1820 = vsel %vm1794, %v1787, %v1249
        %v1821 = vsel %vm1794, %v1788, %v1251
        %v1822 = vsel %vm1794, %v1789, %v1253
        %v1823 = vsel %vm1794, %v1790, %v1255
        %v1824 = vsel %vm1794, %v1791, %v1257
        %v1825 = vsel %vm1794, %v1792, %v1259
        %v1826 = vsel %vm1794, %v1793, %v1261
        %vm1827 = vcmask 326656
        %v1828 = vsel %vm1827, %v1795, %v1300
        %v1829 = vsel %vm1827, %v1796, %v1302
        %v1830 = vsel %vm1827, %v1797, %v1304
        %v1831 = vsel %vm1827, %v1798, %v1306
        %v1832 = vsel %vm1827, %v1799, %v1308
        %v1833 = vsel %vm1827, %v1800, %v1310
        %v1834 = vsel %vm1827, %v1801, %v1312
        %v1835 = vsel %vm1827, %v1802, %v1314
        %v1836 = vsel %vm1827, %v1803, %v1316
        %v1837 = vsel %vm1827, %v1804, %v1318
        %v1838 = vsel %vm1827, %v1805, %v1320
        %v1839 = vsel %vm1827, %v1806, %v1322
        %v1840 = vsel %vm1827, %v1807, %v1324
        %v1841 = vsel %vm1827, %v1808, %v1326
        %v1842 = vsel %vm1827, %v1809, %v1328
        %v1843 = vsel %vm1827, %v1810, %v1330
        %v1844 = vsel %vm1827, %v1811, %v1332
        %v1845 = vsel %vm1827, %v1812, %v1334
        %v1846 = vsel %vm1827, %v1813, %v1336
        %v1847 = vsel %vm1827, %v1814, %v1338
        %v1848 = vsel %vm1827, %v1815, %v1340
        %v1849 = vsel %vm1827, %v1816, %v1342
        %v1850 = vsel %vm1827, %v1817, %v1344
        %v1851 = vsel %vm1827, %v1818, %v1346
        %v1852 = vsel %vm1827, %v1819, %v1348
        %v1853 = vsel %vm1827, %v1820, %v1350
        %v1854 = vsel %vm1827, %v1821, %v1352
        %v1855 = vsel %vm1827, %v1822, %v1354
        %v1856 = vsel %vm1827, %v1823, %v1356
        %v1857 = vsel %vm1827, %v1824, %v1358
        %v1858 = vsel %vm1827, %v1825, %v1360
        %v1859 = vsel %vm1827, %v1826, %v1362
        %vm1860 = vcmask 392192
        %v1861 = vsel %vm1860, %v1828, %v1398
        %v1862 = vsel %vm1860, %v1829, %v1400
        %v1863 = vsel %vm1860, %v1830, %v1402
        %v1864 = vsel %vm1860, %v1831, %v1404
        %v1865 = vsel %vm1860, %v1832, %v1406
        %v1866 = vsel %vm1860, %v1833, %v1408
        %v1867 = vsel %vm1860, %v1834, %v1410
        %v1868 = vsel %vm1860, %v1835, %v1412
        %v1869 = vsel %vm1860, %v1836, %v1414
        %v1870 = vsel %vm1860, %v1837, %v1416
        %v1871 = vsel %vm1860, %v1838, %v1418
        %v1872 = vsel %vm1860, %v1839, %v1420
        %v1873 = vsel %vm1860, %v1840, %v1422
        %v1874 = vsel %vm1860, %v1841, %v1424
        %v1875 = vsel %vm1860, %v1842, %v1426
        %v1876 = vsel %vm1860, %v1843, %v1428
        %v1877 = vsel %vm1860, %v1844, %v1430
        %v1878 = vsel %vm1860, %v1845, %v1432
        %v1879 = vsel %vm1860, %v1846, %v1434
        %v1880 = vsel %vm1860, %v1847, %v1436
        %v1881 = vsel %vm1860, %v1848, %v1438
        %v1882 = vsel %vm1860, %v1849, %v1440
        %v1883 = vsel %vm1860, %v1850, %v1442
        %v1884 = vsel %vm1860, %v1851, %v1444
        %v1885 = vsel %vm1860, %v1852, %v1446
        %v1886 = vsel %vm1860, %v1853, %v1448
        %v1887 = vsel %vm1860, %v1854, %v1450
        %v1888 = vsel %vm1860, %v1855, %v1452
        %v1889 = vsel %vm1860, %v1856, %v1454
        %v1890 = vsel %vm1860, %v1857, %v1456
        %v1891 = vsel %vm1860, %v1858, %v1458
        %v1892 = vsel %vm1860, %v1859, %v1460
        %vm1893 = vcmask 457728
        %v1894 = vsel %vm1893, %v1861, %v1500
        %v1895 = vsel %vm1893, %v1862, %v1502
        %v1896 = vsel %vm1893, %v1863, %v1504
        %v1897 = vsel %vm1893, %v1864, %v1506
        %v1898 = vsel %vm1893, %v1865, %v1508
        %v1899 = vsel %vm1893, %v1866, %v1510
        %v1900 = vsel %vm1893, %v1867, %v1512
        %v1901 = vsel %vm1893, %v1868, %v1514
        %v1902 = vsel %vm1893, %v1869, %v1516
        %v1903 = vsel %vm1893, %v1870, %v1518
        %v1904 = vsel %vm1893, %v1871, %v1520
        %v1905 = vsel %vm1893, %v1872, %v1522
        %v1906 = vsel %vm1893, %v1873, %v1524
        %v1907 = vsel %vm1893, %v1874, %v1526
        %v1908 = vsel %vm1893, %v1875, %v1528
        %v1909 = vsel %vm1893, %v1876, %v1530
        %v1910 = vsel %vm1893, %v1877, %v1532
        %v1911 = vsel %vm1893, %v1878, %v1534
        %v1912 = vsel %vm1893, %v1879, %v1536
        %v1913 = vsel %vm1893, %v1880, %v1538
        %v1914 = vsel %vm1893, %v1881, %v1540
        %v1915 = vsel %vm1893, %v1882, %v1542
        %v1916 = vsel %vm1893, %v1883, %v1544
        %v1917 = vsel %vm1893, %v1884, %v1546
        %v1918 = vsel %vm1893, %v1885, %v1548
        %v1919 = vsel %vm1893, %v1886, %v1550
        %v1920 = vsel %vm1893, %v1887, %v1552
        %v1921 = vsel %vm1893, %v1888, %v1554
        %v1922 = vsel %vm1893, %v1889, %v1556
        %v1923 = vsel %vm1893, %v1890, %v1558
        %v1924 = vsel %vm1893, %v1891, %v1560
        %v1925 = vsel %vm1893, %v1892, %v1562
        %vm1926 = vcmask 523264
        %v1927 = vsel %vm1926, %v1894, %v1601
        %v1928 = vsel %vm1926, %v1895, %v1603
        %v1929 = vsel %vm1926, %v1896, %v1605
        %v1930 = vsel %vm1926, %v1897, %v1607
        %v1931 = vsel %vm1926, %v1898, %v1609
        %v1932 = vsel %vm1926, %v1899, %v1611
        %v1933 = vsel %vm1926, %v1900, %v1613
        %v1934 = vsel %vm1926, %v1901, %v1615
        %v1935 = vsel %vm1926, %v1902, %v1617
        %v1936 = vsel %vm1926, %v1903, %v1619
        %v1937 = vsel %vm1926, %v1904, %v1621
        %v1938 = vsel %vm1926, %v1905, %v1623
        %v1939 = vsel %vm1926, %v1906, %v1625
        %v1940 = vsel %vm1926, %v1907, %v1627
        %v1941 = vsel %vm1926, %v1908, %v1629
        %v1942 = vsel %vm1926, %v1909, %v1631
        %v1943 = vsel %vm1926, %v1910, %v1633
        %v1944 = vsel %vm1926, %v1911, %v1635
        %v1945 = vsel %vm1926, %v1912, %v1637
        %v1946 = vsel %vm1926, %v1913, %v1639
        %v1947 = vsel %vm1926, %v1914, %v1641
        %v1948 = vsel %vm1926, %v1915, %v1643
        %v1949 = vsel %vm1926, %v1916, %v1645
        %v1950 = vsel %vm1926, %v1917, %v1647
        %v1951 = vsel %vm1926, %v1918, %v1649
        %v1952 = vsel %vm1926, %v1919, %v1651
        %v1953 = vsel %vm1926, %v1920, %v1653
        %v1954 = vsel %vm1926, %v1921, %v1655
        %v1955 = vsel %vm1926, %v1922, %v1657
        %v1956 = vsel %vm1926, %v1923, %v1659
        %v1957 = vsel %vm1926, %v1924, %v1661
        %v1958 = vsel %vm1926, %v1925, %v1663
        %v1959 = vld [vmem:[%s2] sm:$0xff]
        %v1960 = vld [vmem:[%s2 + $0x8] sm:$0xff]
        %v1961 = vld [vmem:[%s2 + $0x10] sm:$0xff]
        %v1962 = vld [vmem:[%s2 + $0x18] sm:$0xff]
        %v1963 = vld [vmem:[%s2 + $0x20] sm:$0xff]
        %v1964 = vld [vmem:[%s2 + $0x28] sm:$0xff]
        %v1965 = vld [vmem:[%s2 + $0x30] sm:$0xff]
        %v1966 = vld [vmem:[%s2 + $0x38] sm:$0xff]
        %v1967 = vld [vmem:[%s2 + $0x40] sm:$0xff]
        %v1968 = vld [vmem:[%s3] sm:$0x1]
        %v1970 = vperm.slane %v1968, 0
        %vm1972 = vcmask 588800
        %v1974 = vsel %vm1972, %v1927, 0
        %v1977 = vsel %vm1972, %v1928, 0
        %v1980 = vsel %vm1972, %v1929, 0
        %v1983 = vsel %vm1972, %v1930, 0
        %v1986 = vsel %vm1972, %v1931, 0
        %v1989 = vsel %vm1972, %v1932, 0
        %v1992 = vsel %vm1972, %v1933, 0
        %v1995 = vsel %vm1972, %v1934, 0
        %v1998 = vsel %vm1972, %v1935, 0
        %v2001 = vsel %vm1972, %v1936, 0
        %v2004 = vsel %vm1972, %v1937, 0
        %v2007 = vsel %vm1972, %v1938, 0
        %v2010 = vsel %vm1972, %v1939, 0
        %v2013 = vsel %vm1972, %v1940, 0
        %v2016 = vsel %vm1972, %v1941, 0
        %v2019 = vsel %vm1972, %v1942, 0
        %v2022 = vsel %vm1972, %v1943, 0
        %v2025 = vsel %vm1972, %v1944, 0
        %v2028 = vsel %vm1972, %v1945, 0
        %v2031 = vsel %vm1972, %v1946, 0
        %v2034 = vsel %vm1972, %v1947, 0
        %v2037 = vsel %vm1972, %v1948, 0
        %v2040 = vsel %vm1972, %v1949, 0
        %v2043 = vsel %vm1972, %v1950, 0
        %v2046 = vsel %vm1972, %v1951, 0
        %v2049 = vsel %vm1972, %v1952, 0
        %v2052 = vsel %vm1972, %v1953, 0
        %v2055 = vsel %vm1972, %v1954, 0
        %v2058 = vsel %vm1972, %v1955, 0
        %v2061 = vsel %vm1972, %v1956, 0
        %v2064 = vsel %vm1972, %v1957, 0
        %v2067 = vsel %vm1972, %v1958, 0
        %2069 = vmatpush.msra.mxu0 0.0
        %2070 = vmatpush.msra.mxu0 0.0
        %2071 = vmatpush.msra.mxu0 0.0
        %2072 = vmatpush.msra.mxu0 0.0
        %2073 = vmatpush.msra.mxu0 0.0
        %2074 = vmatpush.msra.mxu0 0.0
        %2075 = vmatpush.msra.mxu0 0.0
        %2076 = vmatpush.msra.mxu0 %v1967
        %2077 = vmatpush.msra.mxu0 %v1966
        %2078 = vmatpush.msra.mxu0 %v1965
        %2079 = vmatpush.msra.mxu0 %v1964
        %2080 = vmatpush.msra.mxu0 %v1963
        %2081 = vmatpush.msra.mxu0 %v1962
        %2082 = vmatpush.msra.mxu0 %v1961
        %2083 = vmatpush.msra.mxu0 %v1960
        %2084 = vmatpush.msra.mxu0 %v1959
        %2085 = vmatmul.f32.gmra.mxu0 %v1974
        %v2086 = vpop.f32.mrf.mxu0
        %v2087 = vadd.f32 %v1970, %v2086
        %2088 = vmatmul.f32.gmra.mxu0 %v1977
        %v2089 = vpop.f32.mrf.mxu0
        %v2090 = vadd.f32 %v1970, %v2089
        %2091 = vmatmul.f32.gmra.mxu0 %v1980
        %v2092 = vpop.f32.mrf.mxu0
        %v2093 = vadd.f32 %v1970, %v2092
        %2094 = vmatmul.f32.gmra.mxu0 %v1983
        %v2095 = vpop.f32.mrf.mxu0
        %v2096 = vadd.f32 %v1970, %v2095
        %2097 = vmatmul.f32.gmra.mxu0 %v1986
        %v2098 = vpop.f32.mrf.mxu0
        %v2099 = vadd.f32 %v1970, %v2098
        %2100 = vmatmul.f32.gmra.mxu0 %v1989
        %v2101 = vpop.f32.mrf.mxu0
        %v2102 = vadd.f32 %v1970, %v2101
        %2103 = vmatmul.f32.gmra.mxu0 %v1992
        %v2104 = vpop.f32.mrf.mxu0
        %v2105 = vadd.f32 %v1970, %v2104
        %2106 = vmatmul.f32.gmra.mxu0 %v1995
        %v2107 = vpop.f32.mrf.mxu0
        %v2108 = vadd.f32 %v1970, %v2107
        %2109 = vmatmul.f32.gmra.mxu0 %v1998
        %v2110 = vpop.f32.mrf.mxu0
        %v2111 = vadd.f32 %v1970, %v2110
        %2112 = vmatmul.f32.gmra.mxu0 %v2001
        %v2113 = vpop.f32.mrf.mxu0
        %v2114 = vadd.f32 %v1970, %v2113
        %2115 = vmatmul.f32.gmra.mxu0 %v2004
        %v2116 = vpop.f32.mrf.mxu0
        %v2117 = vadd.f32 %v1970, %v2116
        %2118 = vmatmul.f32.gmra.mxu0 %v2007
        %v2119 = vpop.f32.mrf.mxu0
        %v2120 = vadd.f32 %v1970, %v2119
        %2121 = vmatmul.f32.gmra.mxu0 %v2010
        %v2122 = vpop.f32.mrf.mxu0
        %v2123 = vadd.f32 %v1970, %v2122
        %2124 = vmatmul.f32.gmra.mxu0 %v2013
        %v2125 = vpop.f32.mrf.mxu0
        %v2126 = vadd.f32 %v1970, %v2125
        %2127 = vmatmul.f32.gmra.mxu0 %v2016
        %v2128 = vpop.f32.mrf.mxu0
        %v2129 = vadd.f32 %v1970, %v2128
        %2130 = vmatmul.f32.gmra.mxu0 %v2019
        %v2131 = vpop.f32.mrf.mxu0
        %v2132 = vadd.f32 %v1970, %v2131
        %2133 = vmatmul.f32.gmra.mxu0 %v2022
        %v2134 = vpop.f32.mrf.mxu0
        %v2135 = vadd.f32 %v1970, %v2134
        %2136 = vmatmul.f32.gmra.mxu0 %v2025
        %v2137 = vpop.f32.mrf.mxu0
        %v2138 = vadd.f32 %v1970, %v2137
        %2139 = vmatmul.f32.gmra.mxu0 %v2028
        %v2140 = vpop.f32.mrf.mxu0
        %v2141 = vadd.f32 %v1970, %v2140
        %2142 = vmatmul.f32.gmra.mxu0 %v2031
        %v2143 = vpop.f32.mrf.mxu0
        %v2144 = vadd.f32 %v1970, %v2143
        %2145 = vmatmul.f32.gmra.mxu0 %v2034
        %v2146 = vpop.f32.mrf.mxu0
        %v2147 = vadd.f32 %v1970, %v2146
        %2148 = vmatmul.f32.gmra.mxu0 %v2037
        %v2149 = vpop.f32.mrf.mxu0
        %v2150 = vadd.f32 %v1970, %v2149
        %2151 = vmatmul.f32.gmra.mxu0 %v2040
        %v2152 = vpop.f32.mrf.mxu0
        %v2153 = vadd.f32 %v1970, %v2152
        %2154 = vmatmul.f32.gmra.mxu0 %v2043
        %v2155 = vpop.f32.mrf.mxu0
        %v2156 = vadd.f32 %v1970, %v2155
        %2157 = vmatmul.f32.gmra.mxu0 %v2046
        %v2158 = vpop.f32.mrf.mxu0
        %v2159 = vadd.f32 %v1970, %v2158
        %2160 = vmatmul.f32.gmra.mxu0 %v2049
        %v2161 = vpop.f32.mrf.mxu0
        %v2162 = vadd.f32 %v1970, %v2161
        %2163 = vmatmul.f32.gmra.mxu0 %v2052
        %v2164 = vpop.f32.mrf.mxu0
        %v2165 = vadd.f32 %v1970, %v2164
        %2166 = vmatmul.f32.gmra.mxu0 %v2055
        %v2167 = vpop.f32.mrf.mxu0
        %v2168 = vadd.f32 %v1970, %v2167
        %2169 = vmatmul.f32.gmra.mxu0 %v2058
        %v2170 = vpop.f32.mrf.mxu0
        %v2171 = vadd.f32 %v1970, %v2170
        %2172 = vmatmul.f32.gmra.mxu0 %v2061
        %v2173 = vpop.f32.mrf.mxu0
        %v2174 = vadd.f32 %v1970, %v2173
        %2175 = vmatmul.f32.gmra.mxu0 %v2064
        %v2176 = vpop.f32.mrf.mxu0
        %v2177 = vadd.f32 %v1970, %v2176
        %2178 = vmatmul.f32.gmra.mxu0 %v2067
        %v2179 = vpop.f32.mrf.mxu0
        %v2180 = vadd.f32 %v1970, %v2179
        %2181 = vdwg.mxu0
        %v2182 = vmax.f32 %v2087, 0.0
        %v2183 = vmax.f32 %v2090, 0.0
        %v2184 = vmax.f32 %v2093, 0.0
        %v2185 = vmax.f32 %v2096, 0.0
        %v2186 = vmax.f32 %v2099, 0.0
        %v2187 = vmax.f32 %v2102, 0.0
        %v2188 = vmax.f32 %v2105, 0.0
        %v2189 = vmax.f32 %v2108, 0.0
        %v2190 = vmax.f32 %v2111, 0.0
        %v2191 = vmax.f32 %v2114, 0.0
        %v2192 = vmax.f32 %v2117, 0.0
        %v2193 = vmax.f32 %v2120, 0.0
        %v2194 = vmax.f32 %v2123, 0.0
        %v2195 = vmax.f32 %v2126, 0.0
        %v2196 = vmax.f32 %v2129, 0.0
        %v2197 = vmax.f32 %v2132, 0.0
        %v2198 = vmax.f32 %v2135, 0.0
        %v2199 = vmax.f32 %v2138, 0.0
        %v2200 = vmax.f32 %v2141, 0.0
        %v2201 = vmax.f32 %v2144, 0.0
        %v2202 = vmax.f32 %v2147, 0.0
        %v2203 = vmax.f32 %v2150, 0.0
        %v2204 = vmax.f32 %v2153, 0.0
        %v2205 = vmax.f32 %v2156, 0.0
        %v2206 = vmax.f32 %v2159, 0.0
        %v2207 = vmax.f32 %v2162, 0.0
        %v2208 = vmax.f32 %v2165, 0.0
        %v2209 = vmax.f32 %v2168, 0.0
        %v2210 = vmax.f32 %v2171, 0.0
        %v2211 = vmax.f32 %v2174, 0.0
        %v2212 = vmax.f32 %v2177, 0.0
        %v2213 = vmax.f32 %v2180, 0.0
        %s2214 = scalar_lea.vmem [#allocation3], 24
        %2215 = vst.msk [vmem:[%s2214 + $0x1] sm:$0xff] %vm270, %v2182
        %2216 = vst.msk [vmem:[%s2214 + $0x9] sm:$0xff] %vm270, %v2183
        %2217 = vst.msk [vmem:[%s2214 + $0x19] sm:$0xff] %vm270, %v2184
        %2218 = vst.msk [vmem:[%s2214 + $0x21] sm:$0xff] %vm270, %v2185
        %2219 = vst.msk [vmem:[%s2214 + $0x31] sm:$0xff] %vm270, %v2186
        %2220 = vst.msk [vmem:[%s2214 + $0x39] sm:$0xff] %vm270, %v2187
        %2221 = vst.msk [vmem:[%s2214 + $0x49] sm:$0xff] %vm270, %v2188
        %2222 = vst.msk [vmem:[%s2214 + $0x51] sm:$0xff] %vm270, %v2189
        %2223 = vst.msk [vmem:[%s2214 + $0x61] sm:$0xff] %vm270, %v2190
        %2224 = vst.msk [vmem:[%s2214 + $0x69] sm:$0xff] %vm270, %v2191
        %2225 = vst.msk [vmem:[%s2214 + $0x79] sm:$0xff] %vm270, %v2192
        %2226 = vst.msk [vmem:[%s2214 + $0x81] sm:$0xff] %vm270, %v2193
        %2227 = vst.msk [vmem:[%s2214 + $0x91] sm:$0xff] %vm270, %v2194
        %2228 = vst.msk [vmem:[%s2214 + $0x99] sm:$0xff] %vm270, %v2195
        %2229 = vst.msk [vmem:[%s2214 + $0xa9] sm:$0xff] %vm270, %v2196
        %2230 = vst.msk [vmem:[%s2214 + $0xb1] sm:$0xff] %vm270, %v2197
        %2231 = vst.msk [vmem:[%s2214 + $0xc1] sm:$0xff] %vm270, %v2198
        %2232 = vst.msk [vmem:[%s2214 + $0xc9] sm:$0xff] %vm270, %v2199
        %2233 = vst.msk [vmem:[%s2214 + $0xd9] sm:$0xff] %vm270, %v2200
        %2234 = vst.msk [vmem:[%s2214 + $0xe1] sm:$0xff] %vm270, %v2201
        %2235 = vst.msk [vmem:[%s2214 + $0xf1] sm:$0xff] %vm270, %v2202
        %2236 = vst.msk [vmem:[%s2214 + $0xf9] sm:$0xff] %vm270, %v2203
        %2237 = vst.msk [vmem:[%s2214 + $0x109] sm:$0xff] %vm270, %v2204
        %2238 = vst.msk [vmem:[%s2214 + $0x111] sm:$0xff] %vm270, %v2205
        %2239 = vst.msk [vmem:[%s2214 + $0x121] sm:$0xff] %vm270, %v2206
        %2240 = vst.msk [vmem:[%s2214 + $0x129] sm:$0xff] %vm270, %v2207
        %2241 = vst.msk [vmem:[%s2214 + $0x139] sm:$0xff] %vm270, %v2208
        %2242 = vst.msk [vmem:[%s2214 + $0x141] sm:$0xff] %vm270, %v2209
        %2243 = vst.msk [vmem:[%s2214 + $0x151] sm:$0xff] %vm270, %v2210
        %2244 = vst.msk [vmem:[%s2214 + $0x159] sm:$0xff] %vm270, %v2211
        %2245 = vst.msk [vmem:[%s2214 + $0x169] sm:$0xff] %vm270, %v2212
        %2246 = vst.msk [vmem:[%s2214 + $0x171] sm:$0xff] %vm270, %v2213
        %v2247 = vld [vmem:[#allocation3] sm:$0xff]
        %v2248 = vld [vmem:[#allocation3 + $0x8] sm:$0xff]
        %v2249 = vld [vmem:[#allocation3 + $0x10] sm:$0x3]
        %v2250 = vld [vmem:[#allocation3 + $0x18] sm:$0xff]
        %v2251 = vld [vmem:[#allocation3 + $0x20] sm:$0xff]
        %v2252 = vld [vmem:[#allocation3 + $0x28] sm:$0x3]
        %v2253 = vld [vmem:[#allocation3 + $0x30] sm:$0xff]
        %v2254 = vld [vmem:[#allocation3 + $0x38] sm:$0xff]
        %v2255 = vld [vmem:[#allocation3 + $0x40] sm:$0x3]
        %v2256 = vld [vmem:[#allocation3 + $0x48] sm:$0xff]
        %v2257 = vld [vmem:[#allocation3 + $0x50] sm:$0xff]
        %v2258 = vld [vmem:[#allocation3 + $0x58] sm:$0x3]
        %v2259 = vld [vmem:[#allocation3 + $0x60] sm:$0xff]
        %v2260 = vld [vmem:[#allocation3 + $0x68] sm:$0xff]
        %v2261 = vld [vmem:[#allocation3 + $0x70] sm:$0x3]
        %v2262 = vld [vmem:[#allocation3 + $0x78] sm:$0xff]
        %v2263 = vld [vmem:[#allocation3 + $0x80] sm:$0xff]
        %v2264 = vld [vmem:[#allocation3 + $0x88] sm:$0x3]
        %v2265 = vld [vmem:[#allocation3 + $0x90] sm:$0xff]
        %v2266 = vld [vmem:[#allocation3 + $0x98] sm:$0xff]
        %v2267 = vld [vmem:[#allocation3 + $0xa0] sm:$0x3]
        %v2268 = vld [vmem:[#allocation3 + $0xa8] sm:$0xff]
        %v2269 = vld [vmem:[#allocation3 + $0xb0] sm:$0xff]
        %v2270 = vld [vmem:[#allocation3 + $0xb8] sm:$0x3]
        %v2271 = vld [vmem:[#allocation3 + $0xc0] sm:$0xff]
        %v2272 = vld [vmem:[#allocation3 + $0xc8] sm:$0xff]
        %v2273 = vld [vmem:[#allocation3 + $0xd0] sm:$0x3]
        %v2274 = vld [vmem:[#allocation3 + $0xd8] sm:$0xff]
        %v2275 = vld [vmem:[#allocation3 + $0xe0] sm:$0xff]
        %v2276 = vld [vmem:[#allocation3 + $0xe8] sm:$0x3]
        %v2277 = vld [vmem:[#allocation3 + $0xf0] sm:$0xff]
        %v2278 = vld [vmem:[#allocation3 + $0xf8] sm:$0xff]
        %v2279 = vld [vmem:[#allocation3 + $0x100] sm:$0x3]
        %v2280 = vld [vmem:[#allocation3 + $0x108] sm:$0xff]
        %v2281 = vld [vmem:[#allocation3 + $0x110] sm:$0xff]
        %v2282 = vld [vmem:[#allocation3 + $0x118] sm:$0x3]
        %v2283 = vld [vmem:[#allocation3 + $0x120] sm:$0xff]
        %v2284 = vld [vmem:[#allocation3 + $0x128] sm:$0xff]
        %v2285 = vld [vmem:[#allocation3 + $0x130] sm:$0x3]
        %v2286 = vld [vmem:[#allocation3 + $0x138] sm:$0xff]
        %v2287 = vld [vmem:[#allocation3 + $0x140] sm:$0xff]
        %v2288 = vld [vmem:[#allocation3 + $0x148] sm:$0x3]
        %v2289 = vld [vmem:[#allocation3 + $0x150] sm:$0xff]
        %v2290 = vld [vmem:[#allocation3 + $0x158] sm:$0xff]
        %v2291 = vld [vmem:[#allocation3 + $0x160] sm:$0x3]
        %v2292 = vld [vmem:[#allocation3 + $0x168] sm:$0xff]
        %v2293 = vld [vmem:[#allocation3 + $0x170] sm:$0xff]
        %v2294 = vld [vmem:[#allocation3 + $0x178] sm:$0x3]
        %v2295 = vld [vmem:[#allocation3 + $0x180] sm:$0xff]
        %v2296 = vld [vmem:[#allocation3 + $0x188] sm:$0xff]
        %v2297 = vld [vmem:[#allocation3 + $0x190] sm:$0x3]
        %v2298 = vld [vmem:[#allocation3 + $0x198] sm:$0xff]
        %v2299 = vld [vmem:[#allocation3 + $0x1a0] sm:$0xff]
        %v2300 = vld [vmem:[#allocation3 + $0x1a8] sm:$0x3]
        %v2349 = vrot.slane %v2247, 1
        %v2350 = vrot.slane %v2248, 1
        %v2351 = vsel %vm740, %v2349, %v2350
        %v2352 = vrot.slane %v2249, 1
        %v2353 = vsel %vm740, %v2350, %v2352
        %v2354 = vrot.slane %v2250, 1
        %v2355 = vrot.slane %v2251, 1
        %v2356 = vsel %vm740, %v2354, %v2355
        %v2357 = vrot.slane %v2252, 1
        %v2358 = vsel %vm740, %v2355, %v2357
        %v2359 = vrot.slane %v2253, 1
        %v2360 = vrot.slane %v2254, 1
        %v2361 = vsel %vm740, %v2359, %v2360
        %v2362 = vrot.slane %v2255, 1
        %v2363 = vsel %vm740, %v2360, %v2362
        %v2364 = vrot.slane %v2256, 1
        %v2365 = vrot.slane %v2257, 1
        %v2366 = vsel %vm740, %v2364, %v2365
        %v2367 = vrot.slane %v2258, 1
        %v2368 = vsel %vm740, %v2365, %v2367
        %v2369 = vrot.slane %v2259, 1
        %v2370 = vrot.slane %v2260, 1
        %v2371 = vsel %vm740, %v2369, %v2370
        %v2372 = vrot.slane %v2261, 1
        %v2373 = vsel %vm740, %v2370, %v2372
        %v2374 = vrot.slane %v2262, 1
        %v2375 = vrot.slane %v2263, 1
        %v2376 = vsel %vm740, %v2374, %v2375
        %v2377 = vrot.slane %v2264, 1
        %v2378 = vsel %vm740, %v2375, %v2377
        %v2379 = vrot.slane %v2265, 1
        %v2380 = vrot.slane %v2266, 1
        %v2381 = vsel %vm740, %v2379, %v2380
        %v2382 = vrot.slane %v2267, 1
        %v2383 = vsel %vm740, %v2380, %v2382
        %v2384 = vrot.slane %v2268, 1
        %v2385 = vrot.slane %v2269, 1
        %v2386 = vsel %vm740, %v2384, %v2385
        %v2387 = vrot.slane %v2270, 1
        %v2388 = vsel %vm740, %v2385, %v2387
        %v2389 = vrot.slane %v2271, 1
        %v2390 = vrot.slane %v2272, 1
        %v2391 = vsel %vm740, %v2389, %v2390
        %v2392 = vrot.slane %v2273, 1
        %v2393 = vsel %vm740, %v2390, %v2392
        %v2394 = vrot.slane %v2274, 1
        %v2395 = vrot.slane %v2275, 1
        %v2396 = vsel %vm740, %v2394, %v2395
        %v2397 = vrot.slane %v2276, 1
        %v2398 = vsel %vm740, %v2395, %v2397
        %v2399 = vrot.slane %v2277, 1
        %v2400 = vrot.slane %v2278, 1
        %v2401 = vsel %vm740, %v2399, %v2400
        %v2402 = vrot.slane %v2279, 1
        %v2403 = vsel %vm740, %v2400, %v2402
        %v2404 = vrot.slane %v2280, 1
        %v2405 = vrot.slane %v2281, 1
        %v2406 = vsel %vm740, %v2404, %v2405
        %v2407 = vrot.slane %v2282, 1
        %v2408 = vsel %vm740, %v2405, %v2407
        %v2409 = vrot.slane %v2283, 1
        %v2410 = vrot.slane %v2284, 1
        %v2411 = vsel %vm740, %v2409, %v2410
        %v2412 = vrot.slane %v2285, 1
        %v2413 = vsel %vm740, %v2410, %v2412
        %v2414 = vrot.slane %v2286, 1
        %v2415 = vrot.slane %v2287, 1
        %v2416 = vsel %vm740, %v2414, %v2415
        %v2417 = vrot.slane %v2288, 1
        %v2418 = vsel %vm740, %v2415, %v2417
        %v2419 = vrot.slane %v2289, 1
        %v2420 = vrot.slane %v2290, 1
        %v2421 = vsel %vm740, %v2419, %v2420
        %v2422 = vrot.slane %v2291, 1
        %v2423 = vsel %vm740, %v2420, %v2422
        %v2424 = vrot.slane %v2292, 1
        %v2425 = vrot.slane %v2293, 1
        %v2426 = vsel %vm740, %v2424, %v2425
        %v2427 = vrot.slane %v2294, 1
        %v2428 = vsel %vm740, %v2425, %v2427
        %2429 = vrot.lane.b32.xlu0 %v2351, 8
        %v2430 = vpop.permute.xlu0 %2429
        %2431 = vrot.lane.b32.xlu0 %v2353, 8
        %v2432 = vpop.permute.xlu0 %2431
        %2433 = vrot.lane.b32.xlu0 %v2356, 8
        %v2434 = vpop.permute.xlu0 %2433
        %2435 = vrot.lane.b32.xlu0 %v2358, 8
        %v2436 = vpop.permute.xlu0 %2435
        %2437 = vrot.lane.b32.xlu0 %v2361, 8
        %v2438 = vpop.permute.xlu0 %2437
        %2439 = vrot.lane.b32.xlu0 %v2363, 8
        %v2440 = vpop.permute.xlu0 %2439
        %2441 = vrot.lane.b32.xlu0 %v2366, 8
        %v2442 = vpop.permute.xlu0 %2441
        %2443 = vrot.lane.b32.xlu0 %v2368, 8
        %v2444 = vpop.permute.xlu0 %2443
        %2445 = vrot.lane.b32.xlu0 %v2371, 8
        %v2446 = vpop.permute.xlu0 %2445
        %2447 = vrot.lane.b32.xlu0 %v2373, 8
        %v2448 = vpop.permute.xlu0 %2447
        %2449 = vrot.lane.b32.xlu0 %v2376, 8
        %v2450 = vpop.permute.xlu0 %2449
        %2451 = vrot.lane.b32.xlu0 %v2378, 8
        %v2452 = vpop.permute.xlu0 %2451
        %2453 = vrot.lane.b32.xlu0 %v2381, 8
        %v2454 = vpop.permute.xlu0 %2453
        %2455 = vrot.lane.b32.xlu0 %v2383, 8
        %v2456 = vpop.permute.xlu0 %2455
        %2457 = vrot.lane.b32.xlu0 %v2386, 8
        %v2458 = vpop.permute.xlu0 %2457
        %2459 = vrot.lane.b32.xlu0 %v2388, 8
        %v2460 = vpop.permute.xlu0 %2459
        %2461 = vrot.lane.b32.xlu0 %v2391, 8
        %v2462 = vpop.permute.xlu0 %2461
        %2463 = vrot.lane.b32.xlu0 %v2393, 8
        %v2464 = vpop.permute.xlu0 %2463
        %2465 = vrot.lane.b32.xlu0 %v2396, 8
        %v2466 = vpop.permute.xlu0 %2465
        %2467 = vrot.lane.b32.xlu0 %v2398, 8
        %v2468 = vpop.permute.xlu0 %2467
        %2469 = vrot.lane.b32.xlu0 %v2401, 8
        %v2470 = vpop.permute.xlu0 %2469
        %2471 = vrot.lane.b32.xlu0 %v2403, 8
        %v2472 = vpop.permute.xlu0 %2471
        %2473 = vrot.lane.b32.xlu0 %v2406, 8
        %v2474 = vpop.permute.xlu0 %2473
        %2475 = vrot.lane.b32.xlu0 %v2408, 8
        %v2476 = vpop.permute.xlu0 %2475
        %2477 = vrot.lane.b32.xlu0 %v2411, 8
        %v2478 = vpop.permute.xlu0 %2477
        %2479 = vrot.lane.b32.xlu0 %v2413, 8
        %v2480 = vpop.permute.xlu0 %2479
        %2481 = vrot.lane.b32.xlu0 %v2416, 8
        %v2482 = vpop.permute.xlu0 %2481
        %2483 = vrot.lane.b32.xlu0 %v2418, 8
        %v2484 = vpop.permute.xlu0 %2483
        %2485 = vrot.lane.b32.xlu0 %v2421, 8
        %v2486 = vpop.permute.xlu0 %2485
        %2487 = vrot.lane.b32.xlu0 %v2423, 8
        %v2488 = vpop.permute.xlu0 %2487
        %2489 = vrot.lane.b32.xlu0 %v2426, 8
        %v2490 = vpop.permute.xlu0 %2489
        %2491 = vrot.lane.b32.xlu0 %v2428, 8
        %v2492 = vpop.permute.xlu0 %2491
        %v2525 = vrot.slane %v2247, 2
        %v2526 = vrot.slane %v2248, 2
        %v2527 = vsel %vm917, %v2525, %v2526
        %v2528 = vrot.slane %v2249, 2
        %v2529 = vsel %vm917, %v2526, %v2528
        %v2530 = vrot.slane %v2250, 2
        %v2531 = vrot.slane %v2251, 2
        %v2532 = vsel %vm917, %v2530, %v2531
        %v2533 = vrot.slane %v2252, 2
        %v2534 = vsel %vm917, %v2531, %v2533
        %v2535 = vrot.slane %v2253, 2
        %v2536 = vrot.slane %v2254, 2
        %v2537 = vsel %vm917, %v2535, %v2536
        %v2538 = vrot.slane %v2255, 2
        %v2539 = vsel %vm917, %v2536, %v2538
        %v2540 = vrot.slane %v2256, 2
        %v2541 = vrot.slane %v2257, 2
        %v2542 = vsel %vm917, %v2540, %v2541
        %v2543 = vrot.slane %v2258, 2
        %v2544 = vsel %vm917, %v2541, %v2543
        %v2545 = vrot.slane %v2259, 2
        %v2546 = vrot.slane %v2260, 2
        %v2547 = vsel %vm917, %v2545, %v2546
        %v2548 = vrot.slane %v2261, 2
        %v2549 = vsel %vm917, %v2546, %v2548
        %v2550 = vrot.slane %v2262, 2
        %v2551 = vrot.slane %v2263, 2
        %v2552 = vsel %vm917, %v2550, %v2551
        %v2553 = vrot.slane %v2264, 2
        %v2554 = vsel %vm917, %v2551, %v2553
        %v2555 = vrot.slane %v2265, 2
        %v2556 = vrot.slane %v2266, 2
        %v2557 = vsel %vm917, %v2555, %v2556
        %v2558 = vrot.slane %v2267, 2
        %v2559 = vsel %vm917, %v2556, %v2558
        %v2560 = vrot.slane %v2268, 2
        %v2561 = vrot.slane %v2269, 2
        %v2562 = vsel %vm917, %v2560, %v2561
        %v2563 = vrot.slane %v2270, 2
        %v2564 = vsel %vm917, %v2561, %v2563
        %v2565 = vrot.slane %v2271, 2
        %v2566 = vrot.slane %v2272, 2
        %v2567 = vsel %vm917, %v2565, %v2566
        %v2568 = vrot.slane %v2273, 2
        %v2569 = vsel %vm917, %v2566, %v2568
        %v2570 = vrot.slane %v2274, 2
        %v2571 = vrot.slane %v2275, 2
        %v2572 = vsel %vm917, %v2570, %v2571
        %v2573 = vrot.slane %v2276, 2
        %v2574 = vsel %vm917, %v2571, %v2573
        %v2575 = vrot.slane %v2277, 2
        %v2576 = vrot.slane %v2278, 2
        %v2577 = vsel %vm917, %v2575, %v2576
        %v2578 = vrot.slane %v2279, 2
        %v2579 = vsel %vm917, %v2576, %v2578
        %v2580 = vrot.slane %v2280, 2
        %v2581 = vrot.slane %v2281, 2
        %v2582 = vsel %vm917, %v2580, %v2581
        %v2583 = vrot.slane %v2282, 2
        %v2584 = vsel %vm917, %v2581, %v2583
        %v2585 = vrot.slane %v2283, 2
        %v2586 = vrot.slane %v2284, 2
        %v2587 = vsel %vm917, %v2585, %v2586
        %v2588 = vrot.slane %v2285, 2
        %v2589 = vsel %vm917, %v2586, %v2588
        %v2590 = vrot.slane %v2286, 2
        %v2591 = vrot.slane %v2287, 2
        %v2592 = vsel %vm917, %v2590, %v2591
        %v2593 = vrot.slane %v2288, 2
        %v2594 = vsel %vm917, %v2591, %v2593
        %v2595 = vrot.slane %v2289, 2
        %v2596 = vrot.slane %v2290, 2
        %v2597 = vsel %vm917, %v2595, %v2596
        %v2598 = vrot.slane %v2291, 2
        %v2599 = vsel %vm917, %v2596, %v2598
        %v2600 = vrot.slane %v2292, 2
        %v2601 = vrot.slane %v2293, 2
        %v2602 = vsel %vm917, %v2600, %v2601
        %v2603 = vrot.slane %v2294, 2
        %v2604 = vsel %vm917, %v2601, %v2603
        %2605 = vrot.lane.b32.xlu0 %v2527, 16
        %v2606 = vpop.permute.xlu0 %2605
        %2607 = vrot.lane.b32.xlu0 %v2529, 16
        %v2608 = vpop.permute.xlu0 %2607
        %2609 = vrot.lane.b32.xlu0 %v2532, 16
        %v2610 = vpop.permute.xlu0 %2609
        %2611 = vrot.lane.b32.xlu0 %v2534, 16
        %v2612 = vpop.permute.xlu0 %2611
        %2613 = vrot.lane.b32.xlu0 %v2537, 16
        %v2614 = vpop.permute.xlu0 %2613
        %2615 = vrot.lane.b32.xlu0 %v2539, 16
        %v2616 = vpop.permute.xlu0 %2615
        %2617 = vrot.lane.b32.xlu0 %v2542, 16
        %v2618 = vpop.permute.xlu0 %2617
        %2619 = vrot.lane.b32.xlu0 %v2544, 16
        %v2620 = vpop.permute.xlu0 %2619
        %2621 = vrot.lane.b32.xlu0 %v2547, 16
        %v2622 = vpop.permute.xlu0 %2621
        %2623 = vrot.lane.b32.xlu0 %v2549, 16
        %v2624 = vpop.permute.xlu0 %2623
        %2625 = vrot.lane.b32.xlu0 %v2552, 16
        %v2626 = vpop.permute.xlu0 %2625
        %2627 = vrot.lane.b32.xlu0 %v2554, 16
        %v2628 = vpop.permute.xlu0 %2627
        %2629 = vrot.lane.b32.xlu0 %v2557, 16
        %v2630 = vpop.permute.xlu0 %2629
        %2631 = vrot.lane.b32.xlu0 %v2559, 16
        %v2632 = vpop.permute.xlu0 %2631
        %2633 = vrot.lane.b32.xlu0 %v2562, 16
        %v2634 = vpop.permute.xlu0 %2633
        %2635 = vrot.lane.b32.xlu0 %v2564, 16
        %v2636 = vpop.permute.xlu0 %2635
        %2637 = vrot.lane.b32.xlu0 %v2567, 16
        %v2638 = vpop.permute.xlu0 %2637
        %2639 = vrot.lane.b32.xlu0 %v2569, 16
        %v2640 = vpop.permute.xlu0 %2639
        %2641 = vrot.lane.b32.xlu0 %v2572, 16
        %v2642 = vpop.permute.xlu0 %2641
        %2643 = vrot.lane.b32.xlu0 %v2574, 16
        %v2644 = vpop.permute.xlu0 %2643
        %2645 = vrot.lane.b32.xlu0 %v2577, 16
        %v2646 = vpop.permute.xlu0 %2645
        %2647 = vrot.lane.b32.xlu0 %v2579, 16
        %v2648 = vpop.permute.xlu0 %2647
        %2649 = vrot.lane.b32.xlu0 %v2582, 16
        %v2650 = vpop.permute.xlu0 %2649
        %2651 = vrot.lane.b32.xlu0 %v2584, 16
        %v2652 = vpop.permute.xlu0 %2651
        %2653 = vrot.lane.b32.xlu0 %v2587, 16
        %v2654 = vpop.permute.xlu0 %2653
        %2655 = vrot.lane.b32.xlu0 %v2589, 16
        %v2656 = vpop.permute.xlu0 %2655
        %2657 = vrot.lane.b32.xlu0 %v2592, 16
        %v2658 = vpop.permute.xlu0 %2657
        %2659 = vrot.lane.b32.xlu0 %v2594, 16
        %v2660 = vpop.permute.xlu0 %2659
        %2661 = vrot.lane.b32.xlu0 %v2597, 16
        %v2662 = vpop.permute.xlu0 %2661
        %2663 = vrot.lane.b32.xlu0 %v2599, 16
        %v2664 = vpop.permute.xlu0 %2663
        %2665 = vrot.lane.b32.xlu0 %v2602, 16
        %v2666 = vpop.permute.xlu0 %2665
        %2667 = vrot.lane.b32.xlu0 %v2604, 16
        %v2668 = vpop.permute.xlu0 %2667
        %2703 = vrot.lane.b32.xlu0 %v2250, 24
        %v2704 = vpop.permute.xlu0 %2703
        %2705 = vrot.lane.b32.xlu0 %v2251, 24
        %v2706 = vpop.permute.xlu0 %2705
        %2707 = vrot.lane.b32.xlu0 %v2253, 24
        %v2708 = vpop.permute.xlu0 %2707
        %2709 = vrot.lane.b32.xlu0 %v2254, 24
        %v2710 = vpop.permute.xlu0 %2709
        %2711 = vrot.lane.b32.xlu0 %v2256, 24
        %v2712 = vpop.permute.xlu0 %2711
        %2713 = vrot.lane.b32.xlu0 %v2257, 24
        %v2714 = vpop.permute.xlu0 %2713
        %2715 = vrot.lane.b32.xlu0 %v2259, 24
        %v2716 = vpop.permute.xlu0 %2715
        %2717 = vrot.lane.b32.xlu0 %v2260, 24
        %v2718 = vpop.permute.xlu0 %2717
        %2719 = vrot.lane.b32.xlu0 %v2262, 24
        %v2720 = vpop.permute.xlu0 %2719
        %2721 = vrot.lane.b32.xlu0 %v2263, 24
        %v2722 = vpop.permute.xlu0 %2721
        %2723 = vrot.lane.b32.xlu0 %v2265, 24
        %v2724 = vpop.permute.xlu0 %2723
        %2725 = vrot.lane.b32.xlu0 %v2266, 24
        %v2726 = vpop.permute.xlu0 %2725
        %2727 = vrot.lane.b32.xlu0 %v2268, 24
        %v2728 = vpop.permute.xlu0 %2727
        %2729 = vrot.lane.b32.xlu0 %v2269, 24
        %v2730 = vpop.permute.xlu0 %2729
        %2731 = vrot.lane.b32.xlu0 %v2271, 24
        %v2732 = vpop.permute.xlu0 %2731
        %2733 = vrot.lane.b32.xlu0 %v2272, 24
        %v2734 = vpop.permute.xlu0 %2733
        %2735 = vrot.lane.b32.xlu0 %v2274, 24
        %v2736 = vpop.permute.xlu0 %2735
        %2737 = vrot.lane.b32.xlu0 %v2275, 24
        %v2738 = vpop.permute.xlu0 %2737
        %2739 = vrot.lane.b32.xlu0 %v2277, 24
        %v2740 = vpop.permute.xlu0 %2739
        %2741 = vrot.lane.b32.xlu0 %v2278, 24
        %v2742 = vpop.permute.xlu0 %2741
        %2743 = vrot.lane.b32.xlu0 %v2280, 24
        %v2744 = vpop.permute.xlu0 %2743
        %2745 = vrot.lane.b32.xlu0 %v2281, 24
        %v2746 = vpop.permute.xlu0 %2745
        %2747 = vrot.lane.b32.xlu0 %v2283, 24
        %v2748 = vpop.permute.xlu0 %2747
        %2749 = vrot.lane.b32.xlu0 %v2284, 24
        %v2750 = vpop.permute.xlu0 %2749
        %2751 = vrot.lane.b32.xlu0 %v2286, 24
        %v2752 = vpop.permute.xlu0 %2751
        %2753 = vrot.lane.b32.xlu0 %v2287, 24
        %v2754 = vpop.permute.xlu0 %2753
        %2755 = vrot.lane.b32.xlu0 %v2289, 24
        %v2756 = vpop.permute.xlu0 %2755
        %2757 = vrot.lane.b32.xlu0 %v2290, 24
        %v2758 = vpop.permute.xlu0 %2757
        %2759 = vrot.lane.b32.xlu0 %v2292, 24
        %v2760 = vpop.permute.xlu0 %2759
        %2761 = vrot.lane.b32.xlu0 %v2293, 24
        %v2762 = vpop.permute.xlu0 %2761
        %2763 = vrot.lane.b32.xlu0 %v2295, 24
        %v2764 = vpop.permute.xlu0 %2763
        %2765 = vrot.lane.b32.xlu0 %v2296, 24
        %v2766 = vpop.permute.xlu0 %2765
        %v2800 = vrot.slane %v2295, 1
        %v2801 = vrot.slane %v2296, 1
        %v2802 = vsel %vm740, %v2800, %v2801
        %v2803 = vrot.slane %v2297, 1
        %v2804 = vsel %vm740, %v2801, %v2803
        %2805 = vrot.lane.b32.xlu0 %v2356, 32
        %v2806 = vpop.permute.xlu0 %2805
        %2807 = vrot.lane.b32.xlu0 %v2358, 32
        %v2808 = vpop.permute.xlu0 %2807
        %2809 = vrot.lane.b32.xlu0 %v2361, 32
        %v2810 = vpop.permute.xlu0 %2809
        %2811 = vrot.lane.b32.xlu0 %v2363, 32
        %v2812 = vpop.permute.xlu0 %2811
        %2813 = vrot.lane.b32.xlu0 %v2366, 32
        %v2814 = vpop.permute.xlu0 %2813
        %2815 = vrot.lane.b32.xlu0 %v2368, 32
        %v2816 = vpop.permute.xlu0 %2815
        %2817 = vrot.lane.b32.xlu0 %v2371, 32
        %v2818 = vpop.permute.xlu0 %2817
        %2819 = vrot.lane.b32.xlu0 %v2373, 32
        %v2820 = vpop.permute.xlu0 %2819
        %2821 = vrot.lane.b32.xlu0 %v2376, 32
        %v2822 = vpop.permute.xlu0 %2821
        %2823 = vrot.lane.b32.xlu0 %v2378, 32
        %v2824 = vpop.permute.xlu0 %2823
        %2825 = vrot.lane.b32.xlu0 %v2381, 32
        %v2826 = vpop.permute.xlu0 %2825
        %2827 = vrot.lane.b32.xlu0 %v2383, 32
        %v2828 = vpop.permute.xlu0 %2827
        %2829 = vrot.lane.b32.xlu0 %v2386, 32
        %v2830 = vpop.permute.xlu0 %2829
        %2831 = vrot.lane.b32.xlu0 %v2388, 32
        %v2832 = vpop.permute.xlu0 %2831
        %2833 = vrot.lane.b32.xlu0 %v2391, 32
        %v2834 = vpop.permute.xlu0 %2833
        %2835 = vrot.lane.b32.xlu0 %v2393, 32
        %v2836 = vpop.permute.xlu0 %2835
        %2837 = vrot.lane.b32.xlu0 %v2396, 32
        %v2838 = vpop.permute.xlu0 %2837
        %2839 = vrot.lane.b32.xlu0 %v2398, 32
        %v2840 = vpop.permute.xlu0 %2839
        %2841 = vrot.lane.b32.xlu0 %v2401, 32
        %v2842 = vpop.permute.xlu0 %2841
        %2843 = vrot.lane.b32.xlu0 %v2403, 32
        %v2844 = vpop.permute.xlu0 %2843
        %2845 = vrot.lane.b32.xlu0 %v2406, 32
        %v2846 = vpop.permute.xlu0 %2845
        %2847 = vrot.lane.b32.xlu0 %v2408, 32
        %v2848 = vpop.permute.xlu0 %2847
        %2849 = vrot.lane.b32.xlu0 %v2411, 32
        %v2850 = vpop.permute.xlu0 %2849
        %2851 = vrot.lane.b32.xlu0 %v2413, 32
        %v2852 = vpop.permute.xlu0 %2851
        %2853 = vrot.lane.b32.xlu0 %v2416, 32
        %v2854 = vpop.permute.xlu0 %2853
        %2855 = vrot.lane.b32.xlu0 %v2418, 32
        %v2856 = vpop.permute.xlu0 %2855
        %2857 = vrot.lane.b32.xlu0 %v2421, 32
        %v2858 = vpop.permute.xlu0 %2857
        %2859 = vrot.lane.b32.xlu0 %v2423, 32
        %v2860 = vpop.permute.xlu0 %2859
        %2861 = vrot.lane.b32.xlu0 %v2426, 32
        %v2862 = vpop.permute.xlu0 %2861
        %2863 = vrot.lane.b32.xlu0 %v2428, 32
        %v2864 = vpop.permute.xlu0 %2863
        %2865 = vrot.lane.b32.xlu0 %v2802, 32
        %v2866 = vpop.permute.xlu0 %2865
        %2867 = vrot.lane.b32.xlu0 %v2804, 32
        %v2868 = vpop.permute.xlu0 %2867
        %v2901 = vrot.slane %v2295, 2
        %v2902 = vrot.slane %v2296, 2
        %v2903 = vsel %vm917, %v2901, %v2902
        %v2904 = vrot.slane %v2297, 2
        %v2905 = vsel %vm917, %v2902, %v2904
        %2906 = vrot.lane.b32.xlu0 %v2532, 40
        %v2907 = vpop.permute.xlu0 %2906
        %2908 = vrot.lane.b32.xlu0 %v2534, 40
        %v2909 = vpop.permute.xlu0 %2908
        %2910 = vrot.lane.b32.xlu0 %v2537, 40
        %v2911 = vpop.permute.xlu0 %2910
        %2912 = vrot.lane.b32.xlu0 %v2539, 40
        %v2913 = vpop.permute.xlu0 %2912
        %2914 = vrot.lane.b32.xlu0 %v2542, 40
        %v2915 = vpop.permute.xlu0 %2914
        %2916 = vrot.lane.b32.xlu0 %v2544, 40
        %v2917 = vpop.permute.xlu0 %2916
        %2918 = vrot.lane.b32.xlu0 %v2547, 40
        %v2919 = vpop.permute.xlu0 %2918
        %2920 = vrot.lane.b32.xlu0 %v2549, 40
        %v2921 = vpop.permute.xlu0 %2920
        %2922 = vrot.lane.b32.xlu0 %v2552, 40
        %v2923 = vpop.permute.xlu0 %2922
        %2924 = vrot.lane.b32.xlu0 %v2554, 40
        %v2925 = vpop.permute.xlu0 %2924
        %2926 = vrot.lane.b32.xlu0 %v2557, 40
        %v2927 = vpop.permute.xlu0 %2926
        %2928 = vrot.lane.b32.xlu0 %v2559, 40
        %v2929 = vpop.permute.xlu0 %2928
        %2930 = vrot.lane.b32.xlu0 %v2562, 40
        %v2931 = vpop.permute.xlu0 %2930
        %2932 = vrot.lane.b32.xlu0 %v2564, 40
        %v2933 = vpop.permute.xlu0 %2932
        %2934 = vrot.lane.b32.xlu0 %v2567, 40
        %v2935 = vpop.permute.xlu0 %2934
        %2936 = vrot.lane.b32.xlu0 %v2569, 40
        %v2937 = vpop.permute.xlu0 %2936
        %2938 = vrot.lane.b32.xlu0 %v2572, 40
        %v2939 = vpop.permute.xlu0 %2938
        %2940 = vrot.lane.b32.xlu0 %v2574, 40
        %v2941 = vpop.permute.xlu0 %2940
        %2942 = vrot.lane.b32.xlu0 %v2577, 40
        %v2943 = vpop.permute.xlu0 %2942
        %2944 = vrot.lane.b32.xlu0 %v2579, 40
        %v2945 = vpop.permute.xlu0 %2944
        %2946 = vrot.lane.b32.xlu0 %v2582, 40
        %v2947 = vpop.permute.xlu0 %2946
        %2948 = vrot.lane.b32.xlu0 %v2584, 40
        %v2949 = vpop.permute.xlu0 %2948
        %2950 = vrot.lane.b32.xlu0 %v2587, 40
        %v2951 = vpop.permute.xlu0 %2950
        %2952 = vrot.lane.b32.xlu0 %v2589, 40
        %v2953 = vpop.permute.xlu0 %2952
        %2954 = vrot.lane.b32.xlu0 %v2592, 40
        %v2955 = vpop.permute.xlu0 %2954
        %2956 = vrot.lane.b32.xlu0 %v2594, 40
        %v2957 = vpop.permute.xlu0 %2956
        %2958 = vrot.lane.b32.xlu0 %v2597, 40
        %v2959 = vpop.permute.xlu0 %2958
        %2960 = vrot.lane.b32.xlu0 %v2599, 40
        %v2961 = vpop.permute.xlu0 %2960
        %2962 = vrot.lane.b32.xlu0 %v2602, 40
        %v2963 = vpop.permute.xlu0 %2962
        %2964 = vrot.lane.b32.xlu0 %v2604, 40
        %v2965 = vpop.permute.xlu0 %2964
        %2966 = vrot.lane.b32.xlu0 %v2903, 40
        %v2967 = vpop.permute.xlu0 %2966
        %2968 = vrot.lane.b32.xlu0 %v2905, 40
        %v2969 = vpop.permute.xlu0 %2968
        %3004 = vrot.lane.b32.xlu0 %v2253, 48
        %v3005 = vpop.permute.xlu0 %3004
        %3006 = vrot.lane.b32.xlu0 %v2254, 48
        %v3007 = vpop.permute.xlu0 %3006
        %3008 = vrot.lane.b32.xlu0 %v2256, 48
        %v3009 = vpop.permute.xlu0 %3008
        %3010 = vrot.lane.b32.xlu0 %v2257, 48
        %v3011 = vpop.permute.xlu0 %3010
        %3012 = vrot.lane.b32.xlu0 %v2259, 48
        %v3013 = vpop.permute.xlu0 %3012
        %3014 = vrot.lane.b32.xlu0 %v2260, 48
        %v3015 = vpop.permute.xlu0 %3014
        %3016 = vrot.lane.b32.xlu0 %v2262, 48
        %v3017 = vpop.permute.xlu0 %3016
        %3018 = vrot.lane.b32.xlu0 %v2263, 48
        %v3019 = vpop.permute.xlu0 %3018
        %3020 = vrot.lane.b32.xlu0 %v2265, 48
        %v3021 = vpop.permute.xlu0 %3020
        %3022 = vrot.lane.b32.xlu0 %v2266, 48
        %v3023 = vpop.permute.xlu0 %3022
        %3024 = vrot.lane.b32.xlu0 %v2268, 48
        %v3025 = vpop.permute.xlu0 %3024
        %3026 = vrot.lane.b32.xlu0 %v2269, 48
        %v3027 = vpop.permute.xlu0 %3026
        %3028 = vrot.lane.b32.xlu0 %v2271, 48
        %v3029 = vpop.permute.xlu0 %3028
        %3030 = vrot.lane.b32.xlu0 %v2272, 48
        %v3031 = vpop.permute.xlu0 %3030
        %3032 = vrot.lane.b32.xlu0 %v2274, 48
        %v3033 = vpop.permute.xlu0 %3032
        %3034 = vrot.lane.b32.xlu0 %v2275, 48
        %v3035 = vpop.permute.xlu0 %3034
        %3036 = vrot.lane.b32.xlu0 %v2277, 48
        %v3037 = vpop.permute.xlu0 %3036
        %3038 = vrot.lane.b32.xlu0 %v2278, 48
        %v3039 = vpop.permute.xlu0 %3038
        %3040 = vrot.lane.b32.xlu0 %v2280, 48
        %v3041 = vpop.permute.xlu0 %3040
        %3042 = vrot.lane.b32.xlu0 %v2281, 48
        %v3043 = vpop.permute.xlu0 %3042
        %3044 = vrot.lane.b32.xlu0 %v2283, 48
        %v3045 = vpop.permute.xlu0 %3044
        %3046 = vrot.lane.b32.xlu0 %v2284, 48
        %v3047 = vpop.permute.xlu0 %3046
        %3048 = vrot.lane.b32.xlu0 %v2286, 48
        %v3049 = vpop.permute.xlu0 %3048
        %3050 = vrot.lane.b32.xlu0 %v2287, 48
        %v3051 = vpop.permute.xlu0 %3050
        %3052 = vrot.lane.b32.xlu0 %v2289, 48
        %v3053 = vpop.permute.xlu0 %3052
        %3054 = vrot.lane.b32.xlu0 %v2290, 48
        %v3055 = vpop.permute.xlu0 %3054
        %3056 = vrot.lane.b32.xlu0 %v2292, 48
        %v3057 = vpop.permute.xlu0 %3056
        %3058 = vrot.lane.b32.xlu0 %v2293, 48
        %v3059 = vpop.permute.xlu0 %3058
        %3060 = vrot.lane.b32.xlu0 %v2295, 48
        %v3061 = vpop.permute.xlu0 %3060
        %3062 = vrot.lane.b32.xlu0 %v2296, 48
        %v3063 = vpop.permute.xlu0 %3062
        %3064 = vrot.lane.b32.xlu0 %v2298, 48
        %v3065 = vpop.permute.xlu0 %3064
        %3066 = vrot.lane.b32.xlu0 %v2299, 48
        %v3067 = vpop.permute.xlu0 %3066
        %v3101 = vrot.slane %v2298, 1
        %v3102 = vrot.slane %v2299, 1
        %v3103 = vsel %vm740, %v3101, %v3102
        %v3104 = vrot.slane %v2300, 1
        %v3105 = vsel %vm740, %v3102, %v3104
        %3106 = vrot.lane.b32.xlu0 %v2361, 56
        %v3107 = vpop.permute.xlu0 %3106
        %3108 = vrot.lane.b32.xlu0 %v2363, 56
        %v3109 = vpop.permute.xlu0 %3108
        %3110 = vrot.lane.b32.xlu0 %v2366, 56
        %v3111 = vpop.permute.xlu0 %3110
        %3112 = vrot.lane.b32.xlu0 %v2368, 56
        %v3113 = vpop.permute.xlu0 %3112
        %3114 = vrot.lane.b32.xlu0 %v2371, 56
        %v3115 = vpop.permute.xlu0 %3114
        %3116 = vrot.lane.b32.xlu0 %v2373, 56
        %v3117 = vpop.permute.xlu0 %3116
        %3118 = vrot.lane.b32.xlu0 %v2376, 56
        %v3119 = vpop.permute.xlu0 %3118
        %3120 = vrot.lane.b32.xlu0 %v2378, 56
        %v3121 = vpop.permute.xlu0 %3120
        %3122 = vrot.lane.b32.xlu0 %v2381, 56
        %v3123 = vpop.permute.xlu0 %3122
        %3124 = vrot.lane.b32.xlu0 %v2383, 56
        %v3125 = vpop.permute.xlu0 %3124
        %3126 = vrot.lane.b32.xlu0 %v2386, 56
        %v3127 = vpop.permute.xlu0 %3126
        %3128 = vrot.lane.b32.xlu0 %v2388, 56
        %v3129 = vpop.permute.xlu0 %3128
        %3130 = vrot.lane.b32.xlu0 %v2391, 56
        %v3131 = vpop.permute.xlu0 %3130
        %3132 = vrot.lane.b32.xlu0 %v2393, 56
        %v3133 = vpop.permute.xlu0 %3132
        %3134 = vrot.lane.b32.xlu0 %v2396, 56
        %v3135 = vpop.permute.xlu0 %3134
        %3136 = vrot.lane.b32.xlu0 %v2398, 56
        %v3137 = vpop.permute.xlu0 %3136
        %3138 = vrot.lane.b32.xlu0 %v2401, 56
        %v3139 = vpop.permute.xlu0 %3138
        %3140 = vrot.lane.b32.xlu0 %v2403, 56
        %v3141 = vpop.permute.xlu0 %3140
        %3142 = vrot.lane.b32.xlu0 %v2406, 56
        %v3143 = vpop.permute.xlu0 %3142
        %3144 = vrot.lane.b32.xlu0 %v2408, 56
        %v3145 = vpop.permute.xlu0 %3144
        %3146 = vrot.lane.b32.xlu0 %v2411, 56
        %v3147 = vpop.permute.xlu0 %3146
        %3148 = vrot.lane.b32.xlu0 %v2413, 56
        %v3149 = vpop.permute.xlu0 %3148
        %3150 = vrot.lane.b32.xlu0 %v2416, 56
        %v3151 = vpop.permute.xlu0 %3150
        %3152 = vrot.lane.b32.xlu0 %v2418, 56
        %v3153 = vpop.permute.xlu0 %3152
        %3154 = vrot.lane.b32.xlu0 %v2421, 56
        %v3155 = vpop.permute.xlu0 %3154
        %3156 = vrot.lane.b32.xlu0 %v2423, 56
        %v3157 = vpop.permute.xlu0 %3156
        %3158 = vrot.lane.b32.xlu0 %v2426, 56
        %v3159 = vpop.permute.xlu0 %3158
        %3160 = vrot.lane.b32.xlu0 %v2428, 56
        %v3161 = vpop.permute.xlu0 %3160
        %3162 = vrot.lane.b32.xlu0 %v2802, 56
        %v3163 = vpop.permute.xlu0 %3162
        %3164 = vrot.lane.b32.xlu0 %v2804, 56
        %v3165 = vpop.permute.xlu0 %3164
        %3166 = vrot.lane.b32.xlu0 %v3103, 56
        %v3167 = vpop.permute.xlu0 %3166
        %3168 = vrot.lane.b32.xlu0 %v3105, 56
        %v3169 = vpop.permute.xlu0 %3168
        %v3202 = vrot.slane %v2298, 2
        %v3203 = vrot.slane %v2299, 2
        %v3204 = vsel %vm917, %v3202, %v3203
        %v3205 = vrot.slane %v2300, 2
        %v3206 = vsel %vm917, %v3203, %v3205
        %3207 = vrot.lane.b32.xlu0 %v2537, 64
        %v3208 = vpop.permute.xlu0 %3207
        %3209 = vrot.lane.b32.xlu0 %v2539, 64
        %v3210 = vpop.permute.xlu0 %3209
        %3211 = vrot.lane.b32.xlu0 %v2542, 64
        %v3212 = vpop.permute.xlu0 %3211
        %3213 = vrot.lane.b32.xlu0 %v2544, 64
        %v3214 = vpop.permute.xlu0 %3213
        %3215 = vrot.lane.b32.xlu0 %v2547, 64
        %v3216 = vpop.permute.xlu0 %3215
        %3217 = vrot.lane.b32.xlu0 %v2549, 64
        %v3218 = vpop.permute.xlu0 %3217
        %3219 = vrot.lane.b32.xlu0 %v2552, 64
        %v3220 = vpop.permute.xlu0 %3219
        %3221 = vrot.lane.b32.xlu0 %v2554, 64
        %v3222 = vpop.permute.xlu0 %3221
        %3223 = vrot.lane.b32.xlu0 %v2557, 64
        %v3224 = vpop.permute.xlu0 %3223
        %3225 = vrot.lane.b32.xlu0 %v2559, 64
        %v3226 = vpop.permute.xlu0 %3225
        %3227 = vrot.lane.b32.xlu0 %v2562, 64
        %v3228 = vpop.permute.xlu0 %3227
        %3229 = vrot.lane.b32.xlu0 %v2564, 64
        %v3230 = vpop.permute.xlu0 %3229
        %3231 = vrot.lane.b32.xlu0 %v2567, 64
        %v3232 = vpop.permute.xlu0 %3231
        %3233 = vrot.lane.b32.xlu0 %v2569, 64
        %v3234 = vpop.permute.xlu0 %3233
        %3235 = vrot.lane.b32.xlu0 %v2572, 64
        %v3236 = vpop.permute.xlu0 %3235
        %3237 = vrot.lane.b32.xlu0 %v2574, 64
        %v3238 = vpop.permute.xlu0 %3237
        %3239 = vrot.lane.b32.xlu0 %v2577, 64
        %v3240 = vpop.permute.xlu0 %3239
        %3241 = vrot.lane.b32.xlu0 %v2579, 64
        %v3242 = vpop.permute.xlu0 %3241
        %3243 = vrot.lane.b32.xlu0 %v2582, 64
        %v3244 = vpop.permute.xlu0 %3243
        %3245 = vrot.lane.b32.xlu0 %v2584, 64
        %v3246 = vpop.permute.xlu0 %3245
        %3247 = vrot.lane.b32.xlu0 %v2587, 64
        %v3248 = vpop.permute.xlu0 %3247
        %3249 = vrot.lane.b32.xlu0 %v2589, 64
        %v3250 = vpop.permute.xlu0 %3249
        %3251 = vrot.lane.b32.xlu0 %v2592, 64
        %v3252 = vpop.permute.xlu0 %3251
        %3253 = vrot.lane.b32.xlu0 %v2594, 64
        %v3254 = vpop.permute.xlu0 %3253
        %3255 = vrot.lane.b32.xlu0 %v2597, 64
        %v3256 = vpop.permute.xlu0 %3255
        %3257 = vrot.lane.b32.xlu0 %v2599, 64
        %v3258 = vpop.permute.xlu0 %3257
        %3259 = vrot.lane.b32.xlu0 %v2602, 64
        %v3260 = vpop.permute.xlu0 %3259
        %3261 = vrot.lane.b32.xlu0 %v2604, 64
        %v3262 = vpop.permute.xlu0 %3261
        %3263 = vrot.lane.b32.xlu0 %v2903, 64
        %v3264 = vpop.permute.xlu0 %3263
        %3265 = vrot.lane.b32.xlu0 %v2905, 64
        %v3266 = vpop.permute.xlu0 %3265
        %3267 = vrot.lane.b32.xlu0 %v3204, 64
        %v3268 = vpop.permute.xlu0 %3267
        %3269 = vrot.lane.b32.xlu0 %v3206, 64
        %v3270 = vpop.permute.xlu0 %3269
        %v3303 = vsel %vm270, %v2247, %v2430
        %v3304 = vsel %vm270, %v2248, %v2432
        %v3305 = vsel %vm270, %v2250, %v2434
        %v3306 = vsel %vm270, %v2251, %v2436
        %v3307 = vsel %vm270, %v2253, %v2438
        %v3308 = vsel %vm270, %v2254, %v2440
        %v3309 = vsel %vm270, %v2256, %v2442
        %v3310 = vsel %vm270, %v2257, %v2444
        %v3311 = vsel %vm270, %v2259, %v2446
        %v3312 = vsel %vm270, %v2260, %v2448
        %v3313 = vsel %vm270, %v2262, %v2450
        %v3314 = vsel %vm270, %v2263, %v2452
        %v3315 = vsel %vm270, %v2265, %v2454
        %v3316 = vsel %vm270, %v2266, %v2456
        %v3317 = vsel %vm270, %v2268, %v2458
        %v3318 = vsel %vm270, %v2269, %v2460
        %v3319 = vsel %vm270, %v2271, %v2462
        %v3320 = vsel %vm270, %v2272, %v2464
        %v3321 = vsel %vm270, %v2274, %v2466
        %v3322 = vsel %vm270, %v2275, %v2468
        %v3323 = vsel %vm270, %v2277, %v2470
        %v3324 = vsel %vm270, %v2278, %v2472
        %v3325 = vsel %vm270, %v2280, %v2474
        %v3326 = vsel %vm270, %v2281, %v2476
        %v3327 = vsel %vm270, %v2283, %v2478
        %v3328 = vsel %vm270, %v2284, %v2480
        %v3329 = vsel %vm270, %v2286, %v2482
        %v3330 = vsel %vm270, %v2287, %v2484
        %v3331 = vsel %vm270, %v2289, %v2486
        %v3332 = vsel %vm270, %v2290, %v2488
        %v3333 = vsel %vm270, %v2292, %v2490
        %v3334 = vsel %vm270, %v2293, %v2492
        %v3335 = vsel %vm1728, %v3303, %v2606
        %v3336 = vsel %vm1728, %v3304, %v2608
        %v3337 = vsel %vm1728, %v3305, %v2610
        %v3338 = vsel %vm1728, %v3306, %v2612
        %v3339 = vsel %vm1728, %v3307, %v2614
        %v3340 = vsel %vm1728, %v3308, %v2616
        %v3341 = vsel %vm1728, %v3309, %v2618
        %v3342 = vsel %vm1728, %v3310, %v2620
        %v3343 = vsel %vm1728, %v3311, %v2622
        %v3344 = vsel %vm1728, %v3312, %v2624
        %v3345 = vsel %vm1728, %v3313, %v2626
        %v3346 = vsel %vm1728, %v3314, %v2628
        %v3347 = vsel %vm1728, %v3315, %v2630
        %v3348 = vsel %vm1728, %v3316, %v2632
        %v3349 = vsel %vm1728, %v3317, %v2634
        %v3350 = vsel %vm1728, %v3318, %v2636
        %v3351 = vsel %vm1728, %v3319, %v2638
        %v3352 = vsel %vm1728, %v3320, %v2640
        %v3353 = vsel %vm1728, %v3321, %v2642
        %v3354 = vsel %vm1728, %v3322, %v2644
        %v3355 = vsel %vm1728, %v3323, %v2646
        %v3356 = vsel %vm1728, %v3324, %v2648
        %v3357 = vsel %vm1728, %v3325, %v2650
        %v3358 = vsel %vm1728, %v3326, %v2652
        %v3359 = vsel %vm1728, %v3327, %v2654
        %v3360 = vsel %vm1728, %v3328, %v2656
        %v3361 = vsel %vm1728, %v3329, %v2658
        %v3362 = vsel %vm1728, %v3330, %v2660
        %v3363 = vsel %vm1728, %v3331, %v2662
        %v3364 = vsel %vm1728, %v3332, %v2664
        %v3365 = vsel %vm1728, %v3333, %v2666
        %v3366 = vsel %vm1728, %v3334, %v2668
        %v3367 = vsel %vm1761, %v3335, %v2704
        %v3368 = vsel %vm1761, %v3336, %v2706
        %v3369 = vsel %vm1761, %v3337, %v2708
        %v3370 = vsel %vm1761, %v3338, %v2710
        %v3371 = vsel %vm1761, %v3339, %v2712
        %v3372 = vsel %vm1761, %v3340, %v2714
        %v3373 = vsel %vm1761, %v3341, %v2716
        %v3374 = vsel %vm1761, %v3342, %v2718
        %v3375 = vsel %vm1761, %v3343, %v2720
        %v3376 = vsel %vm1761, %v3344, %v2722
        %v3377 = vsel %vm1761, %v3345, %v2724
        %v3378 = vsel %vm1761, %v3346, %v2726
        %v3379 = vsel %vm1761, %v3347, %v2728
        %v3380 = vsel %vm1761, %v3348, %v2730
        %v3381 = vsel %vm1761, %v3349, %v2732
        %v3382 = vsel %vm1761, %v3350, %v2734
        %v3383 = vsel %vm1761, %v3351, %v2736
        %v3384 = vsel %vm1761, %v3352, %v2738
        %v3385 = vsel %vm1761, %v3353, %v2740
        %v3386 = vsel %vm1761, %v3354, %v2742
        %v3387 = vsel %vm1761, %v3355, %v2744
        %v3388 = vsel %vm1761, %v3356, %v2746
        %v3389 = vsel %vm1761, %v3357, %v2748
        %v3390 = vsel %vm1761, %v3358, %v2750
        %v3391 = vsel %vm1761, %v3359, %v2752
        %v3392 = vsel %vm1761, %v3360, %v2754
        %v3393 = vsel %vm1761, %v3361, %v2756
        %v3394 = vsel %vm1761, %v3362, %v2758
        %v3395 = vsel %vm1761, %v3363, %v2760
        %v3396 = vsel %vm1761, %v3364, %v2762
        %v3397 = vsel %vm1761, %v3365, %v2764
        %v3398 = vsel %vm1761, %v3366, %v2766
        %v3399 = vsel %vm1794, %v3367, %v2806
        %v3400 = vsel %vm1794, %v3368, %v2808
        %v3401 = vsel %vm1794, %v3369, %v2810
        %v3402 = vsel %vm1794, %v3370, %v2812
        %v3403 = vsel %vm1794, %v3371, %v2814
        %v3404 = vsel %vm1794, %v3372, %v2816
        %v3405 = vsel %vm1794, %v3373, %v2818
        %v3406 = vsel %vm1794, %v3374, %v2820
        %v3407 = vsel %vm1794, %v3375, %v2822
        %v3408 = vsel %vm1794, %v3376, %v2824
        %v3409 = vsel %vm1794, %v3377, %v2826
        %v3410 = vsel %vm1794, %v3378, %v2828
        %v3411 = vsel %vm1794, %v3379, %v2830
        %v3412 = vsel %vm1794, %v3380, %v2832
        %v3413 = vsel %vm1794, %v3381, %v2834
        %v3414 = vsel %vm1794, %v3382, %v2836
        %v3415 = vsel %vm1794, %v3383, %v2838
        %v3416 = vsel %vm1794, %v3384, %v2840
        %v3417 = vsel %vm1794, %v3385, %v2842
        %v3418 = vsel %vm1794, %v3386, %v2844
        %v3419 = vsel %vm1794, %v3387, %v2846
        %v3420 = vsel %vm1794, %v3388, %v2848
        %v3421 = vsel %vm1794, %v3389, %v2850
        %v3422 = vsel %vm1794, %v3390, %v2852
        %v3423 = vsel %vm1794, %v3391, %v2854
        %v3424 = vsel %vm1794, %v3392, %v2856
        %v3425 = vsel %vm1794, %v3393, %v2858
        %v3426 = vsel %vm1794, %v3394, %v2860
        %v3427 = vsel %vm1794, %v3395, %v2862
        %v3428 = vsel %vm1794, %v3396, %v2864
        %v3429 = vsel %vm1794, %v3397, %v2866
        %v3430 = vsel %vm1794, %v3398, %v2868
        %v3431 = vsel %vm1827, %v3399, %v2907
        %v3432 = vsel %vm1827, %v3400, %v2909
        %v3433 = vsel %vm1827, %v3401, %v2911
        %v3434 = vsel %vm1827, %v3402, %v2913
        %v3435 = vsel %vm1827, %v3403, %v2915
        %v3436 = vsel %vm1827, %v3404, %v2917
        %v3437 = vsel %vm1827, %v3405, %v2919
        %v3438 = vsel %vm1827, %v3406, %v2921
        %v3439 = vsel %vm1827, %v3407, %v2923
        %v3440 = vsel %vm1827, %v3408, %v2925
        %v3441 = vsel %vm1827, %v3409, %v2927
        %v3442 = vsel %vm1827, %v3410, %v2929
        %v3443 = vsel %vm1827, %v3411, %v2931
        %v3444 = vsel %vm1827, %v3412, %v2933
        %v3445 = vsel %vm1827, %v3413, %v2935
        %v3446 = vsel %vm1827, %v3414, %v2937
        %v3447 = vsel %vm1827, %v3415, %v2939
        %v3448 = vsel %vm1827, %v3416, %v2941
        %v3449 = vsel %vm1827, %v3417, %v2943
        %v3450 = vsel %vm1827, %v3418, %v2945
        %v3451 = vsel %vm1827, %v3419, %v2947
        %v3452 = vsel %vm1827, %v3420, %v2949
        %v3453 = vsel %vm1827, %v3421, %v2951
        %v3454 = vsel %vm1827, %v3422, %v2953
        %v3455 = vsel %vm1827, %v3423, %v2955
        %v3456 = vsel %vm1827, %v3424, %v2957
        %v3457 = vsel %vm1827, %v3425, %v2959
        %v3458 = vsel %vm1827, %v3426, %v2961
        %v3459 = vsel %vm1827, %v3427, %v2963
        %v3460 = vsel %vm1827, %v3428, %v2965
        %v3461 = vsel %vm1827, %v3429, %v2967
        %v3462 = vsel %vm1827, %v3430, %v2969
        %v3463 = vsel %vm1860, %v3431, %v3005
        %v3464 = vsel %vm1860, %v3432, %v3007
        %v3465 = vsel %vm1860, %v3433, %v3009
        %v3466 = vsel %vm1860, %v3434, %v3011
        %v3467 = vsel %vm1860, %v3435, %v3013
        %v3468 = vsel %vm1860, %v3436, %v3015
        %v3469 = vsel %vm1860, %v3437, %v3017
        %v3470 = vsel %vm1860, %v3438, %v3019
        %v3471 = vsel %vm1860, %v3439, %v3021
        %v3472 = vsel %vm1860, %v3440, %v3023
        %v3473 = vsel %vm1860, %v3441, %v3025
        %v3474 = vsel %vm1860, %v3442, %v3027
        %v3475 = vsel %vm1860, %v3443, %v3029
        %v3476 = vsel %vm1860, %v3444, %v3031
        %v3477 = vsel %vm1860, %v3445, %v3033
        %v3478 = vsel %vm1860, %v3446, %v3035
        %v3479 = vsel %vm1860, %v3447, %v3037
        %v3480 = vsel %vm1860, %v3448, %v3039
        %v3481 = vsel %vm1860, %v3449, %v3041
        %v3482 = vsel %vm1860, %v3450, %v3043
        %v3483 = vsel %vm1860, %v3451, %v3045
        %v3484 = vsel %vm1860, %v3452, %v3047
        %v3485 = vsel %vm1860, %v3453, %v3049
        %v3486 = vsel %vm1860, %v3454, %v3051
        %v3487 = vsel %vm1860, %v3455, %v3053
        %v3488 = vsel %vm1860, %v3456, %v3055
        %v3489 = vsel %vm1860, %v3457, %v3057
        %v3490 = vsel %vm1860, %v3458, %v3059
        %v3491 = vsel %vm1860, %v3459, %v3061
        %v3492 = vsel %vm1860, %v3460, %v3063
        %v3493 = vsel %vm1860, %v3461, %v3065
        %v3494 = vsel %vm1860, %v3462, %v3067
        %v3495 = vsel %vm1893, %v3463, %v3107
        %v3496 = vsel %vm1893, %v3464, %v3109
        %v3497 = vsel %vm1893, %v3465, %v3111
        %v3498 = vsel %vm1893, %v3466, %v3113
        %v3499 = vsel %vm1893, %v3467, %v3115
        %v3500 = vsel %vm1893, %v3468, %v3117
        %v3501 = vsel %vm1893, %v3469, %v3119
        %v3502 = vsel %vm1893, %v3470, %v3121
        %v3503 = vsel %vm1893, %v3471, %v3123
        %v3504 = vsel %vm1893, %v3472, %v3125
        %v3505 = vsel %vm1893, %v3473, %v3127
        %v3506 = vsel %vm1893, %v3474, %v3129
        %v3507 = vsel %vm1893, %v3475, %v3131
        %v3508 = vsel %vm1893, %v3476, %v3133
        %v3509 = vsel %vm1893, %v3477, %v3135
        %v3510 = vsel %vm1893, %v3478, %v3137
        %v3511 = vsel %vm1893, %v3479, %v3139
        %v3512 = vsel %vm1893, %v3480, %v3141
        %v3513 = vsel %vm1893, %v3481, %v3143
        %v3514 = vsel %vm1893, %v3482, %v3145
        %v3515 = vsel %vm1893, %v3483, %v3147
        %v3516 = vsel %vm1893, %v3484, %v3149
        %v3517 = vsel %vm1893, %v3485, %v3151
        %v3518 = vsel %vm1893, %v3486, %v3153
        %v3519 = vsel %vm1893, %v3487, %v3155
        %v3520 = vsel %vm1893, %v3488, %v3157
        %v3521 = vsel %vm1893, %v3489, %v3159
        %v3522 = vsel %vm1893, %v3490, %v3161
        %v3523 = vsel %vm1893, %v3491, %v3163
        %v3524 = vsel %vm1893, %v3492, %v3165
        %v3525 = vsel %vm1893, %v3493, %v3167
        %v3526 = vsel %vm1893, %v3494, %v3169
        %v3527 = vsel %vm1926, %v3495, %v3208
        %v3528 = vsel %vm1926, %v3496, %v3210
        %v3529 = vsel %vm1926, %v3497, %v3212
        %v3530 = vsel %vm1926, %v3498, %v3214
        %v3531 = vsel %vm1926, %v3499, %v3216
        %v3532 = vsel %vm1926, %v3500, %v3218
        %v3533 = vsel %vm1926, %v3501, %v3220
        %v3534 = vsel %vm1926, %v3502, %v3222
        %v3535 = vsel %vm1926, %v3503, %v3224
        %v3536 = vsel %vm1926, %v3504, %v3226
        %v3537 = vsel %vm1926, %v3505, %v3228
        %v3538 = vsel %vm1926, %v3506, %v3230
        %v3539 = vsel %vm1926, %v3507, %v3232
        %v3540 = vsel %vm1926, %v3508, %v3234
        %v3541 = vsel %vm1926, %v3509, %v3236
        %v3542 = vsel %vm1926, %v3510, %v3238
        %v3543 = vsel %vm1926, %v3511, %v3240
        %v3544 = vsel %vm1926, %v3512, %v3242
        %v3545 = vsel %vm1926, %v3513, %v3244
        %v3546 = vsel %vm1926, %v3514, %v3246
        %v3547 = vsel %vm1926, %v3515, %v3248
        %v3548 = vsel %vm1926, %v3516, %v3250
        %v3549 = vsel %vm1926, %v3517, %v3252
        %v3550 = vsel %vm1926, %v3518, %v3254
        %v3551 = vsel %vm1926, %v3519, %v3256
        %v3552 = vsel %vm1926, %v3520, %v3258
        %v3553 = vsel %vm1926, %v3521, %v3260
        %v3554 = vsel %vm1926, %v3522, %v3262
        %v3555 = vsel %vm1926, %v3523, %v3264
        %v3556 = vsel %vm1926, %v3524, %v3266
        %v3557 = vsel %vm1926, %v3525, %v3268
        %v3558 = vsel %vm1926, %v3526, %v3270
        %v3559 = vld [vmem:[%s4] sm:$0xff]
        %v3560 = vld [vmem:[%s5] sm:$0xff]
        %3562 = vset.pattern.permute.xlu0 0
        %3563 = vperm.xlu0 %3562, %v3560
        %v3564 = vpop.permute.xlu0 %3563
        %v3567 = vsel %vm1972, %v3559, 0
        %v3570 = vsel %vm1972, %v3527, 0
        %v3573 = vsel %vm1972, %v3528, 0
        %v3576 = vsel %vm1972, %v3529, 0
        %v3579 = vsel %vm1972, %v3530, 0
        %v3582 = vsel %vm1972, %v3531, 0
        %v3585 = vsel %vm1972, %v3532, 0
        %v3588 = vsel %vm1972, %v3533, 0
        %v3591 = vsel %vm1972, %v3534, 0
        %v3594 = vsel %vm1972, %v3535, 0
        %v3597 = vsel %vm1972, %v3536, 0
        %v3600 = vsel %vm1972, %v3537, 0
        %v3603 = vsel %vm1972, %v3538, 0
        %v3606 = vsel %vm1972, %v3539, 0
        %v3609 = vsel %vm1972, %v3540, 0
        %v3612 = vsel %vm1972, %v3541, 0
        %v3615 = vsel %vm1972, %v3542, 0
        %v3618 = vsel %vm1972, %v3543, 0
        %v3621 = vsel %vm1972, %v3544, 0
        %v3624 = vsel %vm1972, %v3545, 0
        %v3627 = vsel %vm1972, %v3546, 0
        %v3630 = vsel %vm1972, %v3547, 0
        %v3633 = vsel %vm1972, %v3548, 0
        %v3636 = vsel %vm1972, %v3549, 0
        %v3639 = vsel %vm1972, %v3550, 0
        %v3642 = vsel %vm1972, %v3551, 0
        %v3645 = vsel %vm1972, %v3552, 0
        %v3648 = vsel %vm1972, %v3553, 0
        %v3651 = vsel %vm1972, %v3554, 0
        %v3654 = vsel %vm1972, %v3555, 0
        %v3657 = vsel %vm1972, %v3556, 0
        %v3660 = vsel %vm1972, %v3557, 0
        %v3663 = vsel %vm1972, %v3558, 0
        %3665 = vmatpush.xpose.msra.mxu0 %v3615
        %3666 = vmatpush.xpose.msra.mxu0 %v3612
        %3667 = vmatpush.xpose.msra.mxu0 %v3609
        %3668 = vmatpush.xpose.msra.mxu0 %v3606
        %3669 = vmatpush.xpose.msra.mxu0 %v3603
        %3670 = vmatpush.xpose.msra.mxu0 %v3600
        %3671 = vmatpush.xpose.msra.mxu0 %v3597
        %3672 = vmatpush.xpose.msra.mxu0 %v3594
        %3673 = vmatpush.xpose.msra.mxu0 %v3591
        %3674 = vmatpush.xpose.msra.mxu0 %v3588
        %3675 = vmatpush.xpose.msra.mxu0 %v3585
        %3676 = vmatpush.xpose.msra.mxu0 %v3582
        %3677 = vmatpush.xpose.msra.mxu0 %v3579
        %3678 = vmatpush.xpose.msra.mxu0 %v3576
        %3679 = vmatpush.xpose.msra.mxu0 %v3573
        %3680 = vmatpush.xpose.msra.mxu0 %v3570
        %3681 = vmatmul.f32.gmra.mxu0 %v3567
        %v3682 = vpop.f32.mrf.mxu0
        %v3683 = vadd.f32 %v3564, %v3682
        %3684 = vdwg.mxu0
        %3685 = vmatpush.xpose.msra.mxu0 %v3663
        %3686 = vmatpush.xpose.msra.mxu0 %v3660
        %3687 = vmatpush.xpose.msra.mxu0 %v3657
        %3688 = vmatpush.xpose.msra.mxu0 %v3654
        %3689 = vmatpush.xpose.msra.mxu0 %v3651
        %3690 = vmatpush.xpose.msra.mxu0 %v3648
        %3691 = vmatpush.xpose.msra.mxu0 %v3645
        %3692 = vmatpush.xpose.msra.mxu0 %v3642
        %3693 = vmatpush.xpose.msra.mxu0 %v3639
        %3694 = vmatpush.xpose.msra.mxu0 %v3636
        %3695 = vmatpush.xpose.msra.mxu0 %v3633
        %3696 = vmatpush.xpose.msra.mxu0 %v3630
        %3697 = vmatpush.xpose.msra.mxu0 %v3627
        %3698 = vmatpush.xpose.msra.mxu0 %v3624
        %3699 = vmatpush.xpose.msra.mxu0 %v3621
        %3700 = vmatpush.xpose.msra.mxu0 %v3618
        %3701 = vmatmul.f32.gmra.mxu0 %v3567
        %v3702 = vpop.f32.mrf.mxu0
        %v3703 = vadd.f32 %v3564, %v3702
        %3704 = vdwg.mxu0
        %v3705 = vmax.f32 %v3683, 0.0
        %v3706 = vmax.f32 %v3703, 0.0
        %3707 = vst [vmem:[%s259] sm:$0xff] %v3705
        %3708 = vst [vmem:[%s259 + $0x8] sm:$0xff] %v3706
        %s3709 = sand.u32 %s164, 1
        %s3710 = scalar_lea.sflag [#allocation5], %s3709
        %s3711 = sand.u32 %s164, 1
        %s3712 = smul.addr %s3711, 16
        %s3713 = scalar_lea.vmem [#allocation4], %s3712
        // Predicated region
        $region45: #{tpu_custom_call.1} parent=43 // pred_check
          %p3714 = pneg %p174
        $region46: #{tpu_custom_call.1} parent=43 // pred_check_branch
          %3716 = sbr.rel (%p3714) target = $region48
        $region47: #{tpu_custom_call.1} parent=43 // pred_region
          %3718 = vsyncadd %s3710, 0
          %s3719 = smul.addr %s20, 2
          %s3720 = smul.addr %s3719, 8
          %s3721 = scalar_lea.hbm %s6, %s3720
          %s3723 = sshll.u32 %s3713, 4
          %s3724 = int_to_ptr.vmem [resolvable:$true] %s3723
          %s3725 = sshll.u32 %s3721, 4
          %s3726 = int_to_ptr.hbm [resolvable:$true] %s3725
          %3728 = dma.vmem_to_hbm [thread:$0]  %s3724, 256, %s3726, %s3710
        $region48: #{tpu_custom_call.1} parent=43 // pred_fallthru
          _
      $region44: #{tpu_custom_call.1} parent=5 // pred_fallthru
        _
      %p3729 = scmp.le.s32.totalorder 2, %s15
      // Predicated region
      $region49: #{tpu_custom_call.1} parent=5 // pred_check
        %p3730 = pneg %p3729
      $region50: #{tpu_custom_call.1} parent=5 // pred_check_branch
        %3732 = sbr.rel (%p3730) target = $region52
      $region51: #{tpu_custom_call.1} parent=5 // pred_region
        %s3733 = ssub.s32 %s15, 2
        // Predicated region
        $region53: #{tpu_custom_call.1} parent=51 // pred_check
          %p3734 = pneg %p180
        $region54: #{tpu_custom_call.1} parent=51 // pred_check_branch
          %3736 = sbr.rel (%p3734) target = $region56
        $region55: #{tpu_custom_call.1} parent=51 // pred_region
          %s3737 = sand.u32 %s165, 1
          %s3738 = scalar_lea.sflag [#allocation5], %s3737
          %s3739 = sand.u32 %s165, 1
          %s3740 = smul.addr %s3739, 16
          %s3741 = scalar_lea.vmem [#allocation4], %s3740
          %3743 = dma.done %s3738, 256
        $region56: #{tpu_custom_call.1} parent=51 // pred_fallthru
          _
      $region52: #{tpu_custom_call.1} parent=5 // pred_fallthru
        _
    $region6: #{tpu_custom_call.1} parent=1 // loop_footer
      %s19 = sadd.s32 1, %s15
    $region7: #{tpu_custom_call.1} parent=1 // loop_footer_branch
      %14 = sbr.rel target = $region3
    $region8: #{tpu_custom_call.1} parent=1 // loop_exit
      _
    %3744 = vsyncpa [#allocation5], 1
    %s3745 = scalar_lea.sflag [#allocation5], 1
    %3746 = vsyncpa %s3745, 1

</llo_original>
